<compile_context>
chip_gen: v7x
topology: tpu7x:2x2x1
jax: 0.10.0
libtpu: 0.0.40
codegen_flags: <defaults>
</compile_context>

<pallas_src>
import functools

import jax
import jax.numpy as jnp
from jax.experimental import pallas as pl
from jax.experimental.pallas import tpu as pltpu


def _bce_partial_kernel(x_ref, y_ref, pw_ref, out_ref, *, block_rows, valid_rows):
    """One grid step: per-block partial sum of the stable BCE-with-logits loss."""
    x = x_ref[...].astype(jnp.float32)        # (tb, N) logits, cast in-kernel
    y = y_ref[...].astype(jnp.float32)        # (tb, N) targets in [0, 1]
    pw = pw_ref[...]                          # (1,  N) pos_weight (resident block)

    # PyTorch's numerically stable formulation (exp(-|x|) <= 1, no overflow).
    log_weight = 1.0 + (pw - 1.0) * y
    loss = (1.0 - y) * x + log_weight * (
        jnp.log1p(jnp.exp(-jnp.abs(x))) + jnp.maximum(-x, 0.0)
    )

    if valid_rows is not None:
        # Batch was zero-padded up to a multiple of the row tile: mask pad rows.
        row = (pl.program_id(0) * block_rows
               + jax.lax.broadcasted_iota(jnp.int32, loss.shape, 0))
        loss = jnp.where(row < valid_rows, loss, 0.0)

    # Sublane reduce (XLU) -> (1, N) partial sum; lane-dense (1, 1, N) store.
    out_ref[...] = jnp.sum(loss, axis=0, keepdims=True)[None, :, :]


def bce_with_logits_loss(y_pred, y_true, pos_weight, *, target_block_bytes=4 << 20):
    """nn.BCEWithLogitsLoss(pos_weight=pos_weight)(y_pred, y_true), reduction='mean'."""
    assert y_pred.ndim == 2 and y_pred.shape == y_true.shape
    B, N = y_pred.shape
    pw = jnp.asarray(pos_weight, jnp.float32).reshape(1, N)
    inv_count = 1.0 / float(B * N)

    # Row-tile sizing: ~target_block_bytes per input block (multiple of 8 rows).
    bytes_per_row = N * max(jnp.dtype(y_pred.dtype).itemsize,
                            jnp.dtype(y_true.dtype).itemsize)
    tb_cap = max(8, (int(target_block_bytes) // bytes_per_row) // 8 * 8)

    if B <= tb_cap:
        # Whole problem in one grid step; full-dim block needs no 8-row alignment.
        tb, b_pad, valid_rows = B, B, None
    else:
        tb = tb_cap
        b_pad = pl.cdiv(B, tb) * tb
        valid_rows = B if b_pad != B else None
        if b_pad != B:
            pad = ((0, b_pad - B), (0, 0))
            y_pred = jnp.pad(y_pred, pad)
            y_true = jnp.pad(y_true, pad)

    grid = (b_pad // tb,)
    kernel = functools.partial(
        _bce_partial_kernel, block_rows=tb, valid_rows=valid_rows
    )

    partials = pl.pallas_call(
        kernel,
        out_shape=jax.ShapeDtypeStruct((grid[0], 1, N), jnp.float32),
        grid_spec=pltpu.PrefetchScalarGridSpec(
            num_scalar_prefetch=0,
            grid=grid,
            in_specs=[
                pl.BlockSpec((tb, N), lambda i: (i, 0)),   # logits tile (native dtype)
                pl.BlockSpec((tb, N), lambda i: (i, 0)),   # target tile (native dtype)
                pl.BlockSpec((1, N), lambda i: (0, 0)),    # pos_weight (resident)
            ],
            out_specs=pl.BlockSpec((1, 1, N), lambda i: (i, 0, 0)),
        ),
        compiler_params=pltpu.CompilerParams(
            dimension_semantics=("parallel",),             # independent partial sums
            vmem_limit_bytes=48 << 20,
        ),
    )(y_pred, y_true, pw)

    # Tiny finishing reduction over (G, 1, N) partial sums.
    return jnp.sum(partials) * inv_count


def _ref_loss(x, y, pw):
    lw = 1.0 + (pw[None, :] - 1.0) * y
    return jnp.mean(
        (1.0 - y) * x
        + lw * (jnp.log1p(jnp.exp(-jnp.abs(x))) + jnp.maximum(-x, 0.0))
    )


if __name__ == "__main__":
    # (batch, num_classes) logits / targets, per-class pos_weight; N multiple of 128.
    B, N = 256, 512
    key = jax.random.PRNGKey(0)
    k_x, k_y, k_w = jax.random.split(key, 3)
    y_pred = jax.random.normal(k_x, (B, N), jnp.float32)                 # logits
    y_true = jax.random.bernoulli(k_y, 0.3, (B, N)).astype(jnp.float32)  # {0,1} labels
    pos_weight = jax.random.uniform(k_w, (N,), jnp.float32, 0.5, 3.0)

    loss = jax.block_until_ready(bce_with_logits_loss(y_pred, y_true, pos_weight))
    ref = _ref_loss(y_pred, y_true, pos_weight)
    assert loss.shape == ()
    assert bool(jnp.isfinite(loss))
    assert bool(jnp.allclose(loss, ref, rtol=1e-5, atol=1e-6)), (float(loss), float(ref))

    # Exercise the multi-step + ragged-batch (pad + mask) path with a tiny block budget.
    B2, N2 = 300, 256
    x2 = jax.random.normal(jax.random.PRNGKey(1), (B2, N2), jnp.float32)
    y2 = jax.random.bernoulli(jax.random.PRNGKey(2), 0.5, (B2, N2)).astype(jnp.float32)
    pw2 = jax.random.uniform(jax.random.PRNGKey(3), (N2,), jnp.float32, 0.5, 2.0)
    loss2 = jax.block_until_ready(
        bce_with_logits_loss(x2, y2, pw2, target_block_bytes=64 * 1024)
    )
    ref2 = _ref_loss(x2, y2, pw2)
    assert bool(jnp.allclose(loss2, ref2, rtol=1e-5, atol=1e-6)), (float(loss2), float(ref2))

    print("KERNEL_OK")
</pallas_src>

<mosaic_0001>
module attributes {stable_mosaic.version = 11 : i64} {
  func.func @_bce_partial_kernel(%arg0: i32, %arg1: memref<256x512xf32, #tpu.memory_space<vmem>>, %arg2: memref<256x512xf32, #tpu.memory_space<vmem>>, %arg3: memref<1x512xf32, #tpu.memory_space<vmem>>, %arg4: memref<1x1x512xf32, #tpu.memory_space<vmem>>) attributes {dimension_semantics = [#tpu.dimension_semantics<parallel>], iteration_bounds = array<i64: 1>, scalar_prefetch = 0 : i64, scratch_operands = 0 : i64, tpu.core_type = #tpu.core_type<tc>, window_params = [{transform_indices = @transform_0, window_bounds = array<i64: 256, 512>}, {transform_indices = @transform_1, window_bounds = array<i64: 256, 512>}, {pipeline_mode = #tpu.pipeline_mode<synchronous>, transform_indices = @transform_2, window_bounds = array<i64: 1, 512>}, {transform_indices = @transform_3, window_bounds = array<i64: 1, 1, 512>}]} {
    %c0 = arith.constant 0 : index
    %c0_0 = arith.constant 0 : index
    %0 = vector.load %arg1[%c0, %c0_0] : memref<256x512xf32, #tpu.memory_space<vmem>>, vector<256x512xf32>
    %c0_1 = arith.constant 0 : index
    %c0_2 = arith.constant 0 : index
    %1 = vector.load %arg2[%c0_1, %c0_2] : memref<256x512xf32, #tpu.memory_space<vmem>>, vector<256x512xf32>
    %c0_3 = arith.constant 0 : index
    %c0_4 = arith.constant 0 : index
    %2 = vector.load %arg3[%c0_3, %c0_4] : memref<1x512xf32, #tpu.memory_space<vmem>>, vector<1x512xf32>
    %cst = arith.constant 1.000000e+00 : f32
    %3 = vector.broadcast %cst : f32 to vector<1x512xf32>
    %4 = arith.subf %2, %3 : vector<1x512xf32>
    %5 = vector.broadcast %4 : vector<1x512xf32> to vector<256x512xf32>
    %6 = arith.mulf %5, %1 : vector<256x512xf32>
    %cst_5 = arith.constant 1.000000e+00 : f32
    %7 = vector.broadcast %cst_5 : f32 to vector<256x512xf32>
    %8 = arith.addf %7, %6 : vector<256x512xf32>
    %cst_6 = arith.constant 1.000000e+00 : f32
    %9 = vector.broadcast %cst_6 : f32 to vector<256x512xf32>
    %10 = arith.subf %9, %1 : vector<256x512xf32>
    %11 = arith.mulf %10, %0 : vector<256x512xf32>
    %12 = math.absf %0 : vector<256x512xf32>
    %cst_7 = arith.constant 0.000000e+00 : f32
    %13 = vector.broadcast %cst_7 : f32 to vector<256x512xf32>
    %14 = arith.subf %13, %12 : vector<256x512xf32>
    %15 = math.exp %14 : vector<256x512xf32>
    %16 = math.log1p %15 : vector<256x512xf32>
    %cst_8 = arith.constant 0.000000e+00 : f32
    %17 = vector.broadcast %cst_8 : f32 to vector<256x512xf32>
    %18 = arith.subf %17, %0 : vector<256x512xf32>
    %cst_9 = arith.constant 0.000000e+00 : f32
    %19 = vector.broadcast %cst_9 : f32 to vector<256x512xf32>
    %20 = arith.maximumf %18, %19 : vector<256x512xf32>
    %21 = arith.addf %16, %20 : vector<256x512xf32>
    %22 = arith.mulf %8, %21 : vector<256x512xf32>
    %23 = arith.addf %11, %22 : vector<256x512xf32>
    %cst_10 = arith.constant dense<0.000000e+00> : vector<512xf32>
    %24 = vector.multi_reduction <add>, %23, %cst_10 [0] : vector<256x512xf32> to vector<512xf32>
    %25 = vector.shape_cast %24 : vector<512xf32> to vector<1x512xf32>
    %26 = vector.shape_cast %25 : vector<1x512xf32> to vector<1x1x512xf32>
    %c0_11 = arith.constant 0 : index
    %c0_12 = arith.constant 0 : index
    %c0_13 = arith.constant 0 : index
    %27 = vector.load %arg4[%c0_11, %c0_12, %c0_13] : memref<1x1x512xf32, #tpu.memory_space<vmem>>, vector<1x1x512xf32>
    tpu.vector_store %arg4[%c0_11, %c0_12, %c0_13], %26 {strides = array<i32>} : memref<1x1x512xf32, #tpu.memory_space<vmem>>, vector<1x1x512xf32>,
    return
  }
  func.func @transform_0(%arg0: i32) -> (i32, i32) {
    %c0_i32 = arith.constant 0 : i32
    %c0_i32_0 = arith.constant 0 : i32
    return %arg0, %c0_i32 : i32, i32
  }
  func.func @transform_1(%arg0: i32) -> (i32, i32) {
    %c0_i32 = arith.constant 0 : i32
    %c0_i32_0 = arith.constant 0 : i32
    return %arg0, %c0_i32 : i32, i32
  }
  func.func @transform_2(%arg0: i32) -> (i32, i32) {
    %c0_i32 = arith.constant 0 : i32
    %c0_i32_0 = arith.constant 0 : i32
    %c0_i32_1 = arith.constant 0 : i32
    return %c0_i32, %c0_i32_0 : i32, i32
  }
  func.func @transform_3(%arg0: i32) -> (i32, i32, i32) {
    %c0_i32 = arith.constant 0 : i32
    %c0_i32_0 = arith.constant 0 : i32
    %c0_i32_1 = arith.constant 0 : i32
    return %arg0, %c0_i32, %c0_i32_0 : i32, i32, i32
  }
}

</mosaic_0001>

<llo_original>
// kernel: tpu_custom_call.1
$region0: #{tpu_custom_call.1}
  #allocation0 [shape = 'u32[]', space=smem, size = 0x4, offset = 0x4, fixed_abs, tag = 'smem constant byte address 0x4 - core index']
  #allocation1 [shape = 'u32[144,128]{1,0:T(1,128)}', space=vmem, size = 0x12000, scoped, tag = 'internal scratch']
  %s0 = inlined_call_operand.hbm [shape: f32[256,512], index: 0, kind: input, shape index: {}]
  %s1 = inlined_call_operand.hbm [shape: f32[256,512], index: 1, kind: input, shape index: {}]
  %s2 = inlined_call_operand.vmem [shape: f32[1,512], index: 2, kind: input, shape index: {}]
  %s3 = inlined_call_operand.hbm [shape: f32[1,1,512], index: 3, kind: output, shape index: {}]
  %s4 = sld [smem:[#allocation0]]
  $region30: #{tpu_custom_call.1} parent=0
    _
  %s6 = ssub.s32 1, %s4
  %s7 = scalar_select 0, %s6, %s4
  $region1: #{tpu_custom_call.1} parent=0
    #allocation2 [shape = 'u8[524288]{0}', space=vmem, size = 0x80000, scoped, tag = 'input window, operand 0, single buffered']
    #allocation3 [shape = 's32[1]{0}', space=sflag, size = 0x4, scoped, tag = 'scoped memory for tpu_custom_call.1']
    #allocation4 [shape = 's32[1]{0}', space=sflag, size = 0x4, scoped, tag = 'scoped memory for tpu_custom_call.1']
    #allocation5 [shape = 'u8[524288]{0}', space=vmem, size = 0x80000, scoped, tag = 'input window, operand 1, single buffered']
    #allocation6 [shape = 's32[1]{0}', space=sflag, size = 0x4, scoped, tag = 'scoped memory for tpu_custom_call.1']
    #allocation7 [shape = 'u8[2048]{0}', space=vmem, size = 0x800, scoped, tag = 'output window, operand 0, single buffered']
    %8 = vsyncpa [#allocation3], 0
    %9 = vsyncpa [#allocation6], 0
    %10 = vsyncpa [#allocation4], 0
    // Predicated region
    $region2: #{tpu_custom_call.1} parent=1 // pred_check
      _
    $region3: #{tpu_custom_call.1} parent=1 // pred_check_branch
      %12 = sbr.rel (0) target = $region5
    $region4: #{tpu_custom_call.1} parent=1 // pred_region
      %s14 = ssub.s32 16384, 16384
      %15 = vsyncadd [#allocation3], %s14
      %s16 = sshll.u32 [#allocation2], 4
      %s17 = int_to_ptr.vmem [resolvable:$true] %s16
      %22 = dma.hbm_to_vmem [thread:$0]  %s0, 16384, %s17, [#allocation3], 512, 512, 32
    $region5: #{tpu_custom_call.1} parent=1 // pred_fallthru
      _
    // Predicated region
    $region6: #{tpu_custom_call.1} parent=1 // pred_check
      _
    $region7: #{tpu_custom_call.1} parent=1 // pred_check_branch
      %24 = sbr.rel (0) target = $region9
    $region8: #{tpu_custom_call.1} parent=1 // pred_region
      %s26 = ssub.s32 16384, 16384
      %27 = vsyncadd [#allocation6], %s26
      %s28 = sshll.u32 [#allocation5], 4
      %s29 = int_to_ptr.vmem [resolvable:$true] %s28
      %34 = dma.hbm_to_vmem [thread:$0]  %s1, 16384, %s29, [#allocation6], 512, 512, 32
    $region9: #{tpu_custom_call.1} parent=1 // pred_fallthru
      _
    // Predicated region
    $region10: #{tpu_custom_call.1} parent=1 // pred_check
      _
    $region11: #{tpu_custom_call.1} parent=1 // pred_check_branch
      %36 = sbr.rel (0) target = $region13
    $region12: #{tpu_custom_call.1} parent=1 // pred_region
      _
    $region13: #{tpu_custom_call.1} parent=1 // pred_fallthru
      _
    // Predicated region
    $region14: #{tpu_custom_call.1} parent=1 // pred_check
      _
    $region15: #{tpu_custom_call.1} parent=1 // pred_check_branch
      %38 = sbr.rel (0) target = $region17
    $region16: #{tpu_custom_call.1} parent=1 // pred_region
      %39 = dma.done [#allocation3], 16384
    $region17: #{tpu_custom_call.1} parent=1 // pred_fallthru
      _
    // Predicated region
    $region18: #{tpu_custom_call.1} parent=1 // pred_check
      _
    $region19: #{tpu_custom_call.1} parent=1 // pred_check_branch
      %41 = sbr.rel (0) target = $region21
    $region20: #{tpu_custom_call.1} parent=1 // pred_region
      %42 = dma.done [#allocation6], 16384
    $region21: #{tpu_custom_call.1} parent=1 // pred_fallthru
      _
    %v43 = vld [vmem:[#allocation2] sm:$0xff]
    %v44 = vld [vmem:[#allocation2 + $0x8] sm:$0xff]
    %v45 = vld [vmem:[#allocation2 + $0x10] sm:$0xff]
    %v46 = vld [vmem:[#allocation2 + $0x18] sm:$0xff]
    %v47 = vld [vmem:[#allocation2 + $0x20] sm:$0xff]
    %v48 = vld [vmem:[#allocation2 + $0x28] sm:$0xff]
    %v49 = vld [vmem:[#allocation2 + $0x30] sm:$0xff]
    %v50 = vld [vmem:[#allocation2 + $0x38] sm:$0xff]
    %v51 = vld [vmem:[#allocation2 + $0x40] sm:$0xff]
    %v52 = vld [vmem:[#allocation2 + $0x48] sm:$0xff]
    %v53 = vld [vmem:[#allocation2 + $0x50] sm:$0xff]
    %v54 = vld [vmem:[#allocation2 + $0x58] sm:$0xff]
    %v55 = vld [vmem:[#allocation2 + $0x60] sm:$0xff]
    %v56 = vld [vmem:[#allocation2 + $0x68] sm:$0xff]
    %v57 = vld [vmem:[#allocation2 + $0x70] sm:$0xff]
    %v58 = vld [vmem:[#allocation2 + $0x78] sm:$0xff]
    %v59 = vld [vmem:[#allocation2 + $0x80] sm:$0xff]
    %v60 = vld [vmem:[#allocation2 + $0x88] sm:$0xff]
    %v61 = vld [vmem:[#allocation2 + $0x90] sm:$0xff]
    %v62 = vld [vmem:[#allocation2 + $0x98] sm:$0xff]
    %v63 = vld [vmem:[#allocation2 + $0xa0] sm:$0xff]
    %v64 = vld [vmem:[#allocation2 + $0xa8] sm:$0xff]
    %v65 = vld [vmem:[#allocation2 + $0xb0] sm:$0xff]
    %v66 = vld [vmem:[#allocation2 + $0xb8] sm:$0xff]
    %v67 = vld [vmem:[#allocation2 + $0xc0] sm:$0xff]
    %v68 = vld [vmem:[#allocation2 + $0xc8] sm:$0xff]
    %v69 = vld [vmem:[#allocation2 + $0xd0] sm:$0xff]
    %v70 = vld [vmem:[#allocation2 + $0xd8] sm:$0xff]
    %v71 = vld [vmem:[#allocation2 + $0xe0] sm:$0xff]
    %v72 = vld [vmem:[#allocation2 + $0xe8] sm:$0xff]
    %v73 = vld [vmem:[#allocation2 + $0xf0] sm:$0xff]
    %v74 = vld [vmem:[#allocation2 + $0xf8] sm:$0xff]
    %v75 = vld [vmem:[#allocation2 + $0x100] sm:$0xff]
    %v76 = vld [vmem:[#allocation2 + $0x108] sm:$0xff]
    %v77 = vld [vmem:[#allocation2 + $0x110] sm:$0xff]
    %v78 = vld [vmem:[#allocation2 + $0x118] sm:$0xff]
    %v79 = vld [vmem:[#allocation2 + $0x120] sm:$0xff]
    %v80 = vld [vmem:[#allocation2 + $0x128] sm:$0xff]
    %v81 = vld [vmem:[#allocation2 + $0x130] sm:$0xff]
    %v82 = vld [vmem:[#allocation2 + $0x138] sm:$0xff]
    %v83 = vld [vmem:[#allocation2 + $0x140] sm:$0xff]
    %v84 = vld [vmem:[#allocation2 + $0x148] sm:$0xff]
    %v85 = vld [vmem:[#allocation2 + $0x150] sm:$0xff]
    %v86 = vld [vmem:[#allocation2 + $0x158] sm:$0xff]
    %v87 = vld [vmem:[#allocation2 + $0x160] sm:$0xff]
    %v88 = vld [vmem:[#allocation2 + $0x168] sm:$0xff]
    %v89 = vld [vmem:[#allocation2 + $0x170] sm:$0xff]
    %v90 = vld [vmem:[#allocation2 + $0x178] sm:$0xff]
    %v91 = vld [vmem:[#allocation2 + $0x180] sm:$0xff]
    %v92 = vld [vmem:[#allocation2 + $0x188] sm:$0xff]
    %v93 = vld [vmem:[#allocation2 + $0x190] sm:$0xff]
    %v94 = vld [vmem:[#allocation2 + $0x198] sm:$0xff]
    %v95 = vld [vmem:[#allocation2 + $0x1a0] sm:$0xff]
    %v96 = vld [vmem:[#allocation2 + $0x1a8] sm:$0xff]
    %v97 = vld [vmem:[#allocation2 + $0x1b0] sm:$0xff]
    %v98 = vld [vmem:[#allocation2 + $0x1b8] sm:$0xff]
    %v99 = vld [vmem:[#allocation2 + $0x1c0] sm:$0xff]
    %v100 = vld [vmem:[#allocation2 + $0x1c8] sm:$0xff]
    %v101 = vld [vmem:[#allocation2 + $0x1d0] sm:$0xff]
    %v102 = vld [vmem:[#allocation2 + $0x1d8] sm:$0xff]
    %v103 = vld [vmem:[#allocation2 + $0x1e0] sm:$0xff]
    %v104 = vld [vmem:[#allocation2 + $0x1e8] sm:$0xff]
    %v105 = vld [vmem:[#allocation2 + $0x1f0] sm:$0xff]
    %v106 = vld [vmem:[#allocation2 + $0x1f8] sm:$0xff]
    %v107 = vld [vmem:[#allocation2 + $0x200] sm:$0xff]
    %v108 = vld [vmem:[#allocation2 + $0x208] sm:$0xff]
    %v109 = vld [vmem:[#allocation2 + $0x210] sm:$0xff]
    %v110 = vld [vmem:[#allocation2 + $0x218] sm:$0xff]
    %v111 = vld [vmem:[#allocation2 + $0x220] sm:$0xff]
    %v112 = vld [vmem:[#allocation2 + $0x228] sm:$0xff]
    %v113 = vld [vmem:[#allocation2 + $0x230] sm:$0xff]
    %v114 = vld [vmem:[#allocation2 + $0x238] sm:$0xff]
    %v115 = vld [vmem:[#allocation2 + $0x240] sm:$0xff]
    %v116 = vld [vmem:[#allocation2 + $0x248] sm:$0xff]
    %v117 = vld [vmem:[#allocation2 + $0x250] sm:$0xff]
    %v118 = vld [vmem:[#allocation2 + $0x258] sm:$0xff]
    %v119 = vld [vmem:[#allocation2 + $0x260] sm:$0xff]
    %v120 = vld [vmem:[#allocation2 + $0x268] sm:$0xff]
    %v121 = vld [vmem:[#allocation2 + $0x270] sm:$0xff]
    %v122 = vld [vmem:[#allocation2 + $0x278] sm:$0xff]
    %v123 = vld [vmem:[#allocation2 + $0x280] sm:$0xff]
    %v124 = vld [vmem:[#allocation2 + $0x288] sm:$0xff]
    %v125 = vld [vmem:[#allocation2 + $0x290] sm:$0xff]
    %v126 = vld [vmem:[#allocation2 + $0x298] sm:$0xff]
    %v127 = vld [vmem:[#allocation2 + $0x2a0] sm:$0xff]
    %v128 = vld [vmem:[#allocation2 + $0x2a8] sm:$0xff]
    %v129 = vld [vmem:[#allocation2 + $0x2b0] sm:$0xff]
    %v130 = vld [vmem:[#allocation2 + $0x2b8] sm:$0xff]
    %v131 = vld [vmem:[#allocation2 + $0x2c0] sm:$0xff]
    %v132 = vld [vmem:[#allocation2 + $0x2c8] sm:$0xff]
    %v133 = vld [vmem:[#allocation2 + $0x2d0] sm:$0xff]
    %v134 = vld [vmem:[#allocation2 + $0x2d8] sm:$0xff]
    %v135 = vld [vmem:[#allocation2 + $0x2e0] sm:$0xff]
    %v136 = vld [vmem:[#allocation2 + $0x2e8] sm:$0xff]
    %v137 = vld [vmem:[#allocation2 + $0x2f0] sm:$0xff]
    %v138 = vld [vmem:[#allocation2 + $0x2f8] sm:$0xff]
    %v139 = vld [vmem:[#allocation2 + $0x300] sm:$0xff]
    %v140 = vld [vmem:[#allocation2 + $0x308] sm:$0xff]
    %v141 = vld [vmem:[#allocation2 + $0x310] sm:$0xff]
    %v142 = vld [vmem:[#allocation2 + $0x318] sm:$0xff]
    %v143 = vld [vmem:[#allocation2 + $0x320] sm:$0xff]
    %v144 = vld [vmem:[#allocation2 + $0x328] sm:$0xff]
    %v145 = vld [vmem:[#allocation2 + $0x330] sm:$0xff]
    %v146 = vld [vmem:[#allocation2 + $0x338] sm:$0xff]
    %v147 = vld [vmem:[#allocation2 + $0x340] sm:$0xff]
    %v148 = vld [vmem:[#allocation2 + $0x348] sm:$0xff]
    %v149 = vld [vmem:[#allocation2 + $0x350] sm:$0xff]
    %v150 = vld [vmem:[#allocation2 + $0x358] sm:$0xff]
    %v151 = vld [vmem:[#allocation2 + $0x360] sm:$0xff]
    %v152 = vld [vmem:[#allocation2 + $0x368] sm:$0xff]
    %v153 = vld [vmem:[#allocation2 + $0x370] sm:$0xff]
    %v154 = vld [vmem:[#allocation2 + $0x378] sm:$0xff]
    %v155 = vld [vmem:[#allocation2 + $0x380] sm:$0xff]
    %v156 = vld [vmem:[#allocation2 + $0x388] sm:$0xff]
    %v157 = vld [vmem:[#allocation2 + $0x390] sm:$0xff]
    %v158 = vld [vmem:[#allocation2 + $0x398] sm:$0xff]
    %v159 = vld [vmem:[#allocation2 + $0x3a0] sm:$0xff]
    %v160 = vld [vmem:[#allocation2 + $0x3a8] sm:$0xff]
    %v161 = vld [vmem:[#allocation2 + $0x3b0] sm:$0xff]
    %v162 = vld [vmem:[#allocation2 + $0x3b8] sm:$0xff]
    %v163 = vld [vmem:[#allocation2 + $0x3c0] sm:$0xff]
    %v164 = vld [vmem:[#allocation2 + $0x3c8] sm:$0xff]
    %v165 = vld [vmem:[#allocation2 + $0x3d0] sm:$0xff]
    %v166 = vld [vmem:[#allocation2 + $0x3d8] sm:$0xff]
    %v167 = vld [vmem:[#allocation2 + $0x3e0] sm:$0xff]
    %v168 = vld [vmem:[#allocation2 + $0x3e8] sm:$0xff]
    %v169 = vld [vmem:[#allocation2 + $0x3f0] sm:$0xff]
    %v170 = vld [vmem:[#allocation2 + $0x3f8] sm:$0xff]
    %v171 = vld [vmem:[#allocation5] sm:$0xff]
    %v172 = vld [vmem:[#allocation5 + $0x8] sm:$0xff]
    %v173 = vld [vmem:[#allocation5 + $0x10] sm:$0xff]
    %v174 = vld [vmem:[#allocation5 + $0x18] sm:$0xff]
    %v175 = vld [vmem:[#allocation5 + $0x20] sm:$0xff]
    %v176 = vld [vmem:[#allocation5 + $0x28] sm:$0xff]
    %v177 = vld [vmem:[#allocation5 + $0x30] sm:$0xff]
    %v178 = vld [vmem:[#allocation5 + $0x38] sm:$0xff]
    %v179 = vld [vmem:[#allocation5 + $0x40] sm:$0xff]
    %v180 = vld [vmem:[#allocation5 + $0x48] sm:$0xff]
    %v181 = vld [vmem:[#allocation5 + $0x50] sm:$0xff]
    %v182 = vld [vmem:[#allocation5 + $0x58] sm:$0xff]
    %v183 = vld [vmem:[#allocation5 + $0x60] sm:$0xff]
    %v184 = vld [vmem:[#allocation5 + $0x68] sm:$0xff]
    %v185 = vld [vmem:[#allocation5 + $0x70] sm:$0xff]
    %v186 = vld [vmem:[#allocation5 + $0x78] sm:$0xff]
    %v187 = vld [vmem:[#allocation5 + $0x80] sm:$0xff]
    %v188 = vld [vmem:[#allocation5 + $0x88] sm:$0xff]
    %v189 = vld [vmem:[#allocation5 + $0x90] sm:$0xff]
    %v190 = vld [vmem:[#allocation5 + $0x98] sm:$0xff]
    %v191 = vld [vmem:[#allocation5 + $0xa0] sm:$0xff]
    %v192 = vld [vmem:[#allocation5 + $0xa8] sm:$0xff]
    %v193 = vld [vmem:[#allocation5 + $0xb0] sm:$0xff]
    %v194 = vld [vmem:[#allocation5 + $0xb8] sm:$0xff]
    %v195 = vld [vmem:[#allocation5 + $0xc0] sm:$0xff]
    %v196 = vld [vmem:[#allocation5 + $0xc8] sm:$0xff]
    %v197 = vld [vmem:[#allocation5 + $0xd0] sm:$0xff]
    %v198 = vld [vmem:[#allocation5 + $0xd8] sm:$0xff]
    %v199 = vld [vmem:[#allocation5 + $0xe0] sm:$0xff]
    %v200 = vld [vmem:[#allocation5 + $0xe8] sm:$0xff]
    %v201 = vld [vmem:[#allocation5 + $0xf0] sm:$0xff]
    %v202 = vld [vmem:[#allocation5 + $0xf8] sm:$0xff]
    %v203 = vld [vmem:[#allocation5 + $0x100] sm:$0xff]
    %v204 = vld [vmem:[#allocation5 + $0x108] sm:$0xff]
    %v205 = vld [vmem:[#allocation5 + $0x110] sm:$0xff]
    %v206 = vld [vmem:[#allocation5 + $0x118] sm:$0xff]
    %v207 = vld [vmem:[#allocation5 + $0x120] sm:$0xff]
    %v208 = vld [vmem:[#allocation5 + $0x128] sm:$0xff]
    %v209 = vld [vmem:[#allocation5 + $0x130] sm:$0xff]
    %v210 = vld [vmem:[#allocation5 + $0x138] sm:$0xff]
    %v211 = vld [vmem:[#allocation5 + $0x140] sm:$0xff]
    %v212 = vld [vmem:[#allocation5 + $0x148] sm:$0xff]
    %v213 = vld [vmem:[#allocation5 + $0x150] sm:$0xff]
    %v214 = vld [vmem:[#allocation5 + $0x158] sm:$0xff]
    %v215 = vld [vmem:[#allocation5 + $0x160] sm:$0xff]
    %v216 = vld [vmem:[#allocation5 + $0x168] sm:$0xff]
    %v217 = vld [vmem:[#allocation5 + $0x170] sm:$0xff]
    %v218 = vld [vmem:[#allocation5 + $0x178] sm:$0xff]
    %v219 = vld [vmem:[#allocation5 + $0x180] sm:$0xff]
    %v220 = vld [vmem:[#allocation5 + $0x188] sm:$0xff]
    %v221 = vld [vmem:[#allocation5 + $0x190] sm:$0xff]
    %v222 = vld [vmem:[#allocation5 + $0x198] sm:$0xff]
    %v223 = vld [vmem:[#allocation5 + $0x1a0] sm:$0xff]
    %v224 = vld [vmem:[#allocation5 + $0x1a8] sm:$0xff]
    %v225 = vld [vmem:[#allocation5 + $0x1b0] sm:$0xff]
    %v226 = vld [vmem:[#allocation5 + $0x1b8] sm:$0xff]
    %v227 = vld [vmem:[#allocation5 + $0x1c0] sm:$0xff]
    %v228 = vld [vmem:[#allocation5 + $0x1c8] sm:$0xff]
    %v229 = vld [vmem:[#allocation5 + $0x1d0] sm:$0xff]
    %v230 = vld [vmem:[#allocation5 + $0x1d8] sm:$0xff]
    %v231 = vld [vmem:[#allocation5 + $0x1e0] sm:$0xff]
    %v232 = vld [vmem:[#allocation5 + $0x1e8] sm:$0xff]
    %v233 = vld [vmem:[#allocation5 + $0x1f0] sm:$0xff]
    %v234 = vld [vmem:[#allocation5 + $0x1f8] sm:$0xff]
    %v235 = vld [vmem:[#allocation5 + $0x200] sm:$0xff]
    %v236 = vld [vmem:[#allocation5 + $0x208] sm:$0xff]
    %v237 = vld [vmem:[#allocation5 + $0x210] sm:$0xff]
    %v238 = vld [vmem:[#allocation5 + $0x218] sm:$0xff]
    %v239 = vld [vmem:[#allocation5 + $0x220] sm:$0xff]
    %v240 = vld [vmem:[#allocation5 + $0x228] sm:$0xff]
    %v241 = vld [vmem:[#allocation5 + $0x230] sm:$0xff]
    %v242 = vld [vmem:[#allocation5 + $0x238] sm:$0xff]
    %v243 = vld [vmem:[#allocation5 + $0x240] sm:$0xff]
    %v244 = vld [vmem:[#allocation5 + $0x248] sm:$0xff]
    %v245 = vld [vmem:[#allocation5 + $0x250] sm:$0xff]
    %v246 = vld [vmem:[#allocation5 + $0x258] sm:$0xff]
    %v247 = vld [vmem:[#allocation5 + $0x260] sm:$0xff]
    %v248 = vld [vmem:[#allocation5 + $0x268] sm:$0xff]
    %v249 = vld [vmem:[#allocation5 + $0x270] sm:$0xff]
    %v250 = vld [vmem:[#allocation5 + $0x278] sm:$0xff]
    %v251 = vld [vmem:[#allocation5 + $0x280] sm:$0xff]
    %v252 = vld [vmem:[#allocation5 + $0x288] sm:$0xff]
    %v253 = vld [vmem:[#allocation5 + $0x290] sm:$0xff]
    %v254 = vld [vmem:[#allocation5 + $0x298] sm:$0xff]
    %v255 = vld [vmem:[#allocation5 + $0x2a0] sm:$0xff]
    %v256 = vld [vmem:[#allocation5 + $0x2a8] sm:$0xff]
    %v257 = vld [vmem:[#allocation5 + $0x2b0] sm:$0xff]
    %v258 = vld [vmem:[#allocation5 + $0x2b8] sm:$0xff]
    %v259 = vld [vmem:[#allocation5 + $0x2c0] sm:$0xff]
    %v260 = vld [vmem:[#allocation5 + $0x2c8] sm:$0xff]
    %v261 = vld [vmem:[#allocation5 + $0x2d0] sm:$0xff]
    %v262 = vld [vmem:[#allocation5 + $0x2d8] sm:$0xff]
    %v263 = vld [vmem:[#allocation5 + $0x2e0] sm:$0xff]
    %v264 = vld [vmem:[#allocation5 + $0x2e8] sm:$0xff]
    %v265 = vld [vmem:[#allocation5 + $0x2f0] sm:$0xff]
    %v266 = vld [vmem:[#allocation5 + $0x2f8] sm:$0xff]
    %v267 = vld [vmem:[#allocation5 + $0x300] sm:$0xff]
    %v268 = vld [vmem:[#allocation5 + $0x308] sm:$0xff]
    %v269 = vld [vmem:[#allocation5 + $0x310] sm:$0xff]
    %v270 = vld [vmem:[#allocation5 + $0x318] sm:$0xff]
    %v271 = vld [vmem:[#allocation5 + $0x320] sm:$0xff]
    %v272 = vld [vmem:[#allocation5 + $0x328] sm:$0xff]
    %v273 = vld [vmem:[#allocation5 + $0x330] sm:$0xff]
    %v274 = vld [vmem:[#allocation5 + $0x338] sm:$0xff]
    %v275 = vld [vmem:[#allocation5 + $0x340] sm:$0xff]
    %v276 = vld [vmem:[#allocation5 + $0x348] sm:$0xff]
    %v277 = vld [vmem:[#allocation5 + $0x350] sm:$0xff]
    %v278 = vld [vmem:[#allocation5 + $0x358] sm:$0xff]
    %v279 = vld [vmem:[#allocation5 + $0x360] sm:$0xff]
    %v280 = vld [vmem:[#allocation5 + $0x368] sm:$0xff]
    %v281 = vld [vmem:[#allocation5 + $0x370] sm:$0xff]
    %v282 = vld [vmem:[#allocation5 + $0x378] sm:$0xff]
    %v283 = vld [vmem:[#allocation5 + $0x380] sm:$0xff]
    %v284 = vld [vmem:[#allocation5 + $0x388] sm:$0xff]
    %v285 = vld [vmem:[#allocation5 + $0x390] sm:$0xff]
    %v286 = vld [vmem:[#allocation5 + $0x398] sm:$0xff]
    %v287 = vld [vmem:[#allocation5 + $0x3a0] sm:$0xff]
    %v288 = vld [vmem:[#allocation5 + $0x3a8] sm:$0xff]
    %v289 = vld [vmem:[#allocation5 + $0x3b0] sm:$0xff]
    %v290 = vld [vmem:[#allocation5 + $0x3b8] sm:$0xff]
    %v291 = vld [vmem:[#allocation5 + $0x3c0] sm:$0xff]
    %v292 = vld [vmem:[#allocation5 + $0x3c8] sm:$0xff]
    %v293 = vld [vmem:[#allocation5 + $0x3d0] sm:$0xff]
    %v294 = vld [vmem:[#allocation5 + $0x3d8] sm:$0xff]
    %v295 = vld [vmem:[#allocation5 + $0x3e0] sm:$0xff]
    %v296 = vld [vmem:[#allocation5 + $0x3e8] sm:$0xff]
    %v297 = vld [vmem:[#allocation5 + $0x3f0] sm:$0xff]
    %v298 = vld [vmem:[#allocation5 + $0x3f8] sm:$0xff]
    %v299 = vld [vmem:[%s2] sm:$0xf]
    %v300 = vsub.f32 %v299, 1.0
    %v302 = vlaneseq
    %v303 = vshrl.u32 %v302, 7
    %v304 = vsub.s32 0, %v303
    %v305 = vrot.slane %v300, %v304
    %v306 = vlaneseq
    %v307 = vshrl.u32 %v306, 7
    %v308 = vsub.s32 1, %v307
    %v309 = vrot.slane %v300, %v308
    %v310 = vlaneseq
    %v311 = vshrl.u32 %v310, 7
    %v312 = vsub.s32 2, %v311
    %v313 = vrot.slane %v300, %v312
    %v314 = vlaneseq
    %v315 = vshrl.u32 %v314, 7
    %v316 = vsub.s32 3, %v315
    %v317 = vrot.slane %v300, %v316
    %v322 = vmul.f32 %v305, %v171
    %v323 = vmul.f32 %v309, %v172
    %v324 = vmul.f32 %v313, %v173
    %v325 = vmul.f32 %v317, %v174
    %v326 = vmul.f32 %v305, %v175
    %v327 = vmul.f32 %v309, %v176
    %v328 = vmul.f32 %v313, %v177
    %v329 = vmul.f32 %v317, %v178
    %v330 = vmul.f32 %v305, %v179
    %v331 = vmul.f32 %v309, %v180
    %v332 = vmul.f32 %v313, %v181
    %v333 = vmul.f32 %v317, %v182
    %v334 = vmul.f32 %v305, %v183
    %v335 = vmul.f32 %v309, %v184
    %v336 = vmul.f32 %v313, %v185
    %v337 = vmul.f32 %v317, %v186
    %v338 = vmul.f32 %v305, %v187
    %v339 = vmul.f32 %v309, %v188
    %v340 = vmul.f32 %v313, %v189
    %v341 = vmul.f32 %v317, %v190
    %v342 = vmul.f32 %v305, %v191
    %v343 = vmul.f32 %v309, %v192
    %v344 = vmul.f32 %v313, %v193
    %v345 = vmul.f32 %v317, %v194
    %v346 = vmul.f32 %v305, %v195
    %v347 = vmul.f32 %v309, %v196
    %v348 = vmul.f32 %v313, %v197
    %v349 = vmul.f32 %v317, %v198
    %v350 = vmul.f32 %v305, %v199
    %v351 = vmul.f32 %v309, %v200
    %v352 = vmul.f32 %v313, %v201
    %v353 = vmul.f32 %v317, %v202
    %v354 = vmul.f32 %v305, %v203
    %v355 = vmul.f32 %v309, %v204
    %v356 = vmul.f32 %v313, %v205
    %v357 = vmul.f32 %v317, %v206
    %v358 = vmul.f32 %v305, %v207
    %v359 = vmul.f32 %v309, %v208
    %v360 = vmul.f32 %v313, %v209
    %v361 = vmul.f32 %v317, %v210
    %v362 = vmul.f32 %v305, %v211
    %v363 = vmul.f32 %v309, %v212
    %v364 = vmul.f32 %v313, %v213
    %v365 = vmul.f32 %v317, %v214
    %v366 = vmul.f32 %v305, %v215
    %v367 = vmul.f32 %v309, %v216
    %v368 = vmul.f32 %v313, %v217
    %v369 = vmul.f32 %v317, %v218
    %v370 = vmul.f32 %v305, %v219
    %v371 = vmul.f32 %v309, %v220
    %v372 = vmul.f32 %v313, %v221
    %v373 = vmul.f32 %v317, %v222
    %v374 = vmul.f32 %v305, %v223
    %v375 = vmul.f32 %v309, %v224
    %v376 = vmul.f32 %v313, %v225
    %v377 = vmul.f32 %v317, %v226
    %v378 = vmul.f32 %v305, %v227
    %v379 = vmul.f32 %v309, %v228
    %v380 = vmul.f32 %v313, %v229
    %v381 = vmul.f32 %v317, %v230
    %v382 = vmul.f32 %v305, %v231
    %v383 = vmul.f32 %v309, %v232
    %v384 = vmul.f32 %v313, %v233
    %v385 = vmul.f32 %v317, %v234
    %v386 = vmul.f32 %v305, %v235
    %v387 = vmul.f32 %v309, %v236
    %v388 = vmul.f32 %v313, %v237
    %v389 = vmul.f32 %v317, %v238
    %v390 = vmul.f32 %v305, %v239
    %v391 = vmul.f32 %v309, %v240
    %v392 = vmul.f32 %v313, %v241
    %v393 = vmul.f32 %v317, %v242
    %v394 = vmul.f32 %v305, %v243
    %v395 = vmul.f32 %v309, %v244
    %v396 = vmul.f32 %v313, %v245
    %v397 = vmul.f32 %v317, %v246
    %v398 = vmul.f32 %v305, %v247
    %v399 = vmul.f32 %v309, %v248
    %v400 = vmul.f32 %v313, %v249
    %v401 = vmul.f32 %v317, %v250
    %v402 = vmul.f32 %v305, %v251
    %v403 = vmul.f32 %v309, %v252
    %v404 = vmul.f32 %v313, %v253
    %v405 = vmul.f32 %v317, %v254
    %v406 = vmul.f32 %v305, %v255
    %v407 = vmul.f32 %v309, %v256
    %v408 = vmul.f32 %v313, %v257
    %v409 = vmul.f32 %v317, %v258
    %v410 = vmul.f32 %v305, %v259
    %v411 = vmul.f32 %v309, %v260
    %v412 = vmul.f32 %v313, %v261
    %v413 = vmul.f32 %v317, %v262
    %v414 = vmul.f32 %v305, %v263
    %v415 = vmul.f32 %v309, %v264
    %v416 = vmul.f32 %v313, %v265
    %v417 = vmul.f32 %v317, %v266
    %v418 = vmul.f32 %v305, %v267
    %v419 = vmul.f32 %v309, %v268
    %v420 = vmul.f32 %v313, %v269
    %v421 = vmul.f32 %v317, %v270
    %v422 = vmul.f32 %v305, %v271
    %v423 = vmul.f32 %v309, %v272
    %v424 = vmul.f32 %v313, %v273
    %v425 = vmul.f32 %v317, %v274
    %v426 = vmul.f32 %v305, %v275
    %v427 = vmul.f32 %v309, %v276
    %v428 = vmul.f32 %v313, %v277
    %v429 = vmul.f32 %v317, %v278
    %v430 = vmul.f32 %v305, %v279
    %v431 = vmul.f32 %v309, %v280
    %v432 = vmul.f32 %v313, %v281
    %v433 = vmul.f32 %v317, %v282
    %v434 = vmul.f32 %v305, %v283
    %v435 = vmul.f32 %v309, %v284
    %v436 = vmul.f32 %v313, %v285
    %v437 = vmul.f32 %v317, %v286
    %v438 = vmul.f32 %v305, %v287
    %v439 = vmul.f32 %v309, %v288
    %v440 = vmul.f32 %v313, %v289
    %v441 = vmul.f32 %v317, %v290
    %v442 = vmul.f32 %v305, %v291
    %v443 = vmul.f32 %v309, %v292
    %v444 = vmul.f32 %v313, %v293
    %v445 = vmul.f32 %v317, %v294
    %v446 = vmul.f32 %v305, %v295
    %v447 = vmul.f32 %v309, %v296
    %v448 = vmul.f32 %v313, %v297
    %v449 = vmul.f32 %v317, %v298
    %v450 = vadd.f32 %v322, 1.0
    %v451 = vadd.f32 %v323, 1.0
    %v452 = vadd.f32 %v324, 1.0
    %v453 = vadd.f32 %v325, 1.0
    %v454 = vadd.f32 %v326, 1.0
    %v455 = vadd.f32 %v327, 1.0
    %v456 = vadd.f32 %v328, 1.0
    %v457 = vadd.f32 %v329, 1.0
    %v458 = vadd.f32 %v330, 1.0
    %v459 = vadd.f32 %v331, 1.0
    %v460 = vadd.f32 %v332, 1.0
    %v461 = vadd.f32 %v333, 1.0
    %v462 = vadd.f32 %v334, 1.0
    %v463 = vadd.f32 %v335, 1.0
    %v464 = vadd.f32 %v336, 1.0
    %v465 = vadd.f32 %v337, 1.0
    %v466 = vadd.f32 %v338, 1.0
    %v467 = vadd.f32 %v339, 1.0
    %v468 = vadd.f32 %v340, 1.0
    %v469 = vadd.f32 %v341, 1.0
    %v470 = vadd.f32 %v342, 1.0
    %v471 = vadd.f32 %v343, 1.0
    %v472 = vadd.f32 %v344, 1.0
    %v473 = vadd.f32 %v345, 1.0
    %v474 = vadd.f32 %v346, 1.0
    %v475 = vadd.f32 %v347, 1.0
    %v476 = vadd.f32 %v348, 1.0
    %v477 = vadd.f32 %v349, 1.0
    %v478 = vadd.f32 %v350, 1.0
    %v479 = vadd.f32 %v351, 1.0
    %v480 = vadd.f32 %v352, 1.0
    %v481 = vadd.f32 %v353, 1.0
    %v482 = vadd.f32 %v354, 1.0
    %v483 = vadd.f32 %v355, 1.0
    %v484 = vadd.f32 %v356, 1.0
    %v485 = vadd.f32 %v357, 1.0
    %v486 = vadd.f32 %v358, 1.0
    %v487 = vadd.f32 %v359, 1.0
    %v488 = vadd.f32 %v360, 1.0
    %v489 = vadd.f32 %v361, 1.0
    %v490 = vadd.f32 %v362, 1.0
    %v491 = vadd.f32 %v363, 1.0
    %v492 = vadd.f32 %v364, 1.0
    %v493 = vadd.f32 %v365, 1.0
    %v494 = vadd.f32 %v366, 1.0
    %v495 = vadd.f32 %v367, 1.0
    %v496 = vadd.f32 %v368, 1.0
    %v497 = vadd.f32 %v369, 1.0
    %v498 = vadd.f32 %v370, 1.0
    %v499 = vadd.f32 %v371, 1.0
    %v500 = vadd.f32 %v372, 1.0
    %v501 = vadd.f32 %v373, 1.0
    %v502 = vadd.f32 %v374, 1.0
    %v503 = vadd.f32 %v375, 1.0
    %v504 = vadd.f32 %v376, 1.0
    %v505 = vadd.f32 %v377, 1.0
    %v506 = vadd.f32 %v378, 1.0
    %v507 = vadd.f32 %v379, 1.0
    %v508 = vadd.f32 %v380, 1.0
    %v509 = vadd.f32 %v381, 1.0
    %v510 = vadd.f32 %v382, 1.0
    %v511 = vadd.f32 %v383, 1.0
    %v512 = vadd.f32 %v384, 1.0
    %v513 = vadd.f32 %v385, 1.0
    %v514 = vadd.f32 %v386, 1.0
    %v515 = vadd.f32 %v387, 1.0
    %v516 = vadd.f32 %v388, 1.0
    %v517 = vadd.f32 %v389, 1.0
    %v518 = vadd.f32 %v390, 1.0
    %v519 = vadd.f32 %v391, 1.0
    %v520 = vadd.f32 %v392, 1.0
    %v521 = vadd.f32 %v393, 1.0
    %v522 = vadd.f32 %v394, 1.0
    %v523 = vadd.f32 %v395, 1.0
    %v524 = vadd.f32 %v396, 1.0
    %v525 = vadd.f32 %v397, 1.0
    %v526 = vadd.f32 %v398, 1.0
    %v527 = vadd.f32 %v399, 1.0
    %v528 = vadd.f32 %v400, 1.0
    %v529 = vadd.f32 %v401, 1.0
    %v530 = vadd.f32 %v402, 1.0
    %v531 = vadd.f32 %v403, 1.0
    %v532 = vadd.f32 %v404, 1.0
    %v533 = vadd.f32 %v405, 1.0
    %v534 = vadd.f32 %v406, 1.0
    %v535 = vadd.f32 %v407, 1.0
    %v536 = vadd.f32 %v408, 1.0
    %v537 = vadd.f32 %v409, 1.0
    %v538 = vadd.f32 %v410, 1.0
    %v539 = vadd.f32 %v411, 1.0
    %v540 = vadd.f32 %v412, 1.0
    %v541 = vadd.f32 %v413, 1.0
    %v542 = vadd.f32 %v414, 1.0
    %v543 = vadd.f32 %v415, 1.0
    %v544 = vadd.f32 %v416, 1.0
    %v545 = vadd.f32 %v417, 1.0
    %v546 = vadd.f32 %v418, 1.0
    %v547 = vadd.f32 %v419, 1.0
    %v548 = vadd.f32 %v420, 1.0
    %v549 = vadd.f32 %v421, 1.0
    %v550 = vadd.f32 %v422, 1.0
    %v551 = vadd.f32 %v423, 1.0
    %v552 = vadd.f32 %v424, 1.0
    %v553 = vadd.f32 %v425, 1.0
    %v554 = vadd.f32 %v426, 1.0
    %v555 = vadd.f32 %v427, 1.0
    %v556 = vadd.f32 %v428, 1.0
    %v557 = vadd.f32 %v429, 1.0
    %v558 = vadd.f32 %v430, 1.0
    %v559 = vadd.f32 %v431, 1.0
    %v560 = vadd.f32 %v432, 1.0
    %v561 = vadd.f32 %v433, 1.0
    %v562 = vadd.f32 %v434, 1.0
    %v563 = vadd.f32 %v435, 1.0
    %v564 = vadd.f32 %v436, 1.0
    %v565 = vadd.f32 %v437, 1.0
    %v566 = vadd.f32 %v438, 1.0
    %v567 = vadd.f32 %v439, 1.0
    %v568 = vadd.f32 %v440, 1.0
    %v569 = vadd.f32 %v441, 1.0
    %v570 = vadd.f32 %v442, 1.0
    %v571 = vadd.f32 %v443, 1.0
    %v572 = vadd.f32 %v444, 1.0
    %v573 = vadd.f32 %v445, 1.0
    %v574 = vadd.f32 %v446, 1.0
    %v575 = vadd.f32 %v447, 1.0
    %v576 = vadd.f32 %v448, 1.0
    %v577 = vadd.f32 %v449, 1.0
    %v578 = vsub.f32 1.0, %v171
    %v579 = vsub.f32 1.0, %v172
    %v580 = vsub.f32 1.0, %v173
    %v581 = vsub.f32 1.0, %v174
    %v582 = vsub.f32 1.0, %v175
    %v583 = vsub.f32 1.0, %v176
    %v584 = vsub.f32 1.0, %v177
    %v585 = vsub.f32 1.0, %v178
    %v586 = vsub.f32 1.0, %v179
    %v587 = vsub.f32 1.0, %v180
    %v588 = vsub.f32 1.0, %v181
    %v589 = vsub.f32 1.0, %v182
    %v590 = vsub.f32 1.0, %v183
    %v591 = vsub.f32 1.0, %v184
    %v592 = vsub.f32 1.0, %v185
    %v593 = vsub.f32 1.0, %v186
    %v594 = vsub.f32 1.0, %v187
    %v595 = vsub.f32 1.0, %v188
    %v596 = vsub.f32 1.0, %v189
    %v597 = vsub.f32 1.0, %v190
    %v598 = vsub.f32 1.0, %v191
    %v599 = vsub.f32 1.0, %v192
    %v600 = vsub.f32 1.0, %v193
    %v601 = vsub.f32 1.0, %v194
    %v602 = vsub.f32 1.0, %v195
    %v603 = vsub.f32 1.0, %v196
    %v604 = vsub.f32 1.0, %v197
    %v605 = vsub.f32 1.0, %v198
    %v606 = vsub.f32 1.0, %v199
    %v607 = vsub.f32 1.0, %v200
    %v608 = vsub.f32 1.0, %v201
    %v609 = vsub.f32 1.0, %v202
    %v610 = vsub.f32 1.0, %v203
    %v611 = vsub.f32 1.0, %v204
    %v612 = vsub.f32 1.0, %v205
    %v613 = vsub.f32 1.0, %v206
    %v614 = vsub.f32 1.0, %v207
    %v615 = vsub.f32 1.0, %v208
    %v616 = vsub.f32 1.0, %v209
    %v617 = vsub.f32 1.0, %v210
    %v618 = vsub.f32 1.0, %v211
    %v619 = vsub.f32 1.0, %v212
    %v620 = vsub.f32 1.0, %v213
    %v621 = vsub.f32 1.0, %v214
    %v622 = vsub.f32 1.0, %v215
    %v623 = vsub.f32 1.0, %v216
    %v624 = vsub.f32 1.0, %v217
    %v625 = vsub.f32 1.0, %v218
    %v626 = vsub.f32 1.0, %v219
    %v627 = vsub.f32 1.0, %v220
    %v628 = vsub.f32 1.0, %v221
    %v629 = vsub.f32 1.0, %v222
    %v630 = vsub.f32 1.0, %v223
    %v631 = vsub.f32 1.0, %v224
    %v632 = vsub.f32 1.0, %v225
    %v633 = vsub.f32 1.0, %v226
    %v634 = vsub.f32 1.0, %v227
    %v635 = vsub.f32 1.0, %v228
    %v636 = vsub.f32 1.0, %v229
    %v637 = vsub.f32 1.0, %v230
    %v638 = vsub.f32 1.0, %v231
    %v639 = vsub.f32 1.0, %v232
    %v640 = vsub.f32 1.0, %v233
    %v641 = vsub.f32 1.0, %v234
    %v642 = vsub.f32 1.0, %v235
    %v643 = vsub.f32 1.0, %v236
    %v644 = vsub.f32 1.0, %v237
    %v645 = vsub.f32 1.0, %v238
    %v646 = vsub.f32 1.0, %v239
    %v647 = vsub.f32 1.0, %v240
    %v648 = vsub.f32 1.0, %v241
    %v649 = vsub.f32 1.0, %v242
    %v650 = vsub.f32 1.0, %v243
    %v651 = vsub.f32 1.0, %v244
    %v652 = vsub.f32 1.0, %v245
    %v653 = vsub.f32 1.0, %v246
    %v654 = vsub.f32 1.0, %v247
    %v655 = vsub.f32 1.0, %v248
    %v656 = vsub.f32 1.0, %v249
    %v657 = vsub.f32 1.0, %v250
    %v658 = vsub.f32 1.0, %v251
    %v659 = vsub.f32 1.0, %v252
    %v660 = vsub.f32 1.0, %v253
    %v661 = vsub.f32 1.0, %v254
    %v662 = vsub.f32 1.0, %v255
    %v663 = vsub.f32 1.0, %v256
    %v664 = vsub.f32 1.0, %v257
    %v665 = vsub.f32 1.0, %v258
    %v666 = vsub.f32 1.0, %v259
    %v667 = vsub.f32 1.0, %v260
    %v668 = vsub.f32 1.0, %v261
    %v669 = vsub.f32 1.0, %v262
    %v670 = vsub.f32 1.0, %v263
    %v671 = vsub.f32 1.0, %v264
    %v672 = vsub.f32 1.0, %v265
    %v673 = vsub.f32 1.0, %v266
    %v674 = vsub.f32 1.0, %v267
    %v675 = vsub.f32 1.0, %v268
    %v676 = vsub.f32 1.0, %v269
    %v677 = vsub.f32 1.0, %v270
    %v678 = vsub.f32 1.0, %v271
    %v679 = vsub.f32 1.0, %v272
    %v680 = vsub.f32 1.0, %v273
    %v681 = vsub.f32 1.0, %v274
    %v682 = vsub.f32 1.0, %v275
    %v683 = vsub.f32 1.0, %v276
    %v684 = vsub.f32 1.0, %v277
    %v685 = vsub.f32 1.0, %v278
    %v686 = vsub.f32 1.0, %v279
    %v687 = vsub.f32 1.0, %v280
    %v688 = vsub.f32 1.0, %v281
    %v689 = vsub.f32 1.0, %v282
    %v690 = vsub.f32 1.0, %v283
    %v691 = vsub.f32 1.0, %v284
    %v692 = vsub.f32 1.0, %v285
    %v693 = vsub.f32 1.0, %v286
    %v694 = vsub.f32 1.0, %v287
    %v695 = vsub.f32 1.0, %v288
    %v696 = vsub.f32 1.0, %v289
    %v697 = vsub.f32 1.0, %v290
    %v698 = vsub.f32 1.0, %v291
    %v699 = vsub.f32 1.0, %v292
    %v700 = vsub.f32 1.0, %v293
    %v701 = vsub.f32 1.0, %v294
    %v702 = vsub.f32 1.0, %v295
    %v703 = vsub.f32 1.0, %v296
    %v704 = vsub.f32 1.0, %v297
    %v705 = vsub.f32 1.0, %v298
    %v706 = vmul.f32 %v578, %v43
    %v707 = vmul.f32 %v579, %v44
    %v708 = vmul.f32 %v580, %v45
    %v709 = vmul.f32 %v581, %v46
    %v710 = vmul.f32 %v582, %v47
    %v711 = vmul.f32 %v583, %v48
    %v712 = vmul.f32 %v584, %v49
    %v713 = vmul.f32 %v585, %v50
    %v714 = vmul.f32 %v586, %v51
    %v715 = vmul.f32 %v587, %v52
    %v716 = vmul.f32 %v588, %v53
    %v717 = vmul.f32 %v589, %v54
    %v718 = vmul.f32 %v590, %v55
    %v719 = vmul.f32 %v591, %v56
    %v720 = vmul.f32 %v592, %v57
    %v721 = vmul.f32 %v593, %v58
    %v722 = vmul.f32 %v594, %v59
    %v723 = vmul.f32 %v595, %v60
    %v724 = vmul.f32 %v596, %v61
    %v725 = vmul.f32 %v597, %v62
    %v726 = vmul.f32 %v598, %v63
    %v727 = vmul.f32 %v599, %v64
    %v728 = vmul.f32 %v600, %v65
    %v729 = vmul.f32 %v601, %v66
    %v730 = vmul.f32 %v602, %v67
    %v731 = vmul.f32 %v603, %v68
    %v732 = vmul.f32 %v604, %v69
    %v733 = vmul.f32 %v605, %v70
    %v734 = vmul.f32 %v606, %v71
    %v735 = vmul.f32 %v607, %v72
    %v736 = vmul.f32 %v608, %v73
    %v737 = vmul.f32 %v609, %v74
    %v738 = vmul.f32 %v610, %v75
    %v739 = vmul.f32 %v611, %v76
    %v740 = vmul.f32 %v612, %v77
    %v741 = vmul.f32 %v613, %v78
    %v742 = vmul.f32 %v614, %v79
    %v743 = vmul.f32 %v615, %v80
    %v744 = vmul.f32 %v616, %v81
    %v745 = vmul.f32 %v617, %v82
    %v746 = vmul.f32 %v618, %v83
    %v747 = vmul.f32 %v619, %v84
    %v748 = vmul.f32 %v620, %v85
    %v749 = vmul.f32 %v621, %v86
    %v750 = vmul.f32 %v622, %v87
    %v751 = vmul.f32 %v623, %v88
    %v752 = vmul.f32 %v624, %v89
    %v753 = vmul.f32 %v625, %v90
    %v754 = vmul.f32 %v626, %v91
    %v755 = vmul.f32 %v627, %v92
    %v756 = vmul.f32 %v628, %v93
    %v757 = vmul.f32 %v629, %v94
    %v758 = vmul.f32 %v630, %v95
    %v759 = vmul.f32 %v631, %v96
    %v760 = vmul.f32 %v632, %v97
    %v761 = vmul.f32 %v633, %v98
    %v762 = vmul.f32 %v634, %v99
    %v763 = vmul.f32 %v635, %v100
    %v764 = vmul.f32 %v636, %v101
    %v765 = vmul.f32 %v637, %v102
    %v766 = vmul.f32 %v638, %v103
    %v767 = vmul.f32 %v639, %v104
    %v768 = vmul.f32 %v640, %v105
    %v769 = vmul.f32 %v641, %v106
    %v770 = vmul.f32 %v642, %v107
    %v771 = vmul.f32 %v643, %v108
    %v772 = vmul.f32 %v644, %v109
    %v773 = vmul.f32 %v645, %v110
    %v774 = vmul.f32 %v646, %v111
    %v775 = vmul.f32 %v647, %v112
    %v776 = vmul.f32 %v648, %v113
    %v777 = vmul.f32 %v649, %v114
    %v778 = vmul.f32 %v650, %v115
    %v779 = vmul.f32 %v651, %v116
    %v780 = vmul.f32 %v652, %v117
    %v781 = vmul.f32 %v653, %v118
    %v782 = vmul.f32 %v654, %v119
    %v783 = vmul.f32 %v655, %v120
    %v784 = vmul.f32 %v656, %v121
    %v785 = vmul.f32 %v657, %v122
    %v786 = vmul.f32 %v658, %v123
    %v787 = vmul.f32 %v659, %v124
    %v788 = vmul.f32 %v660, %v125
    %v789 = vmul.f32 %v661, %v126
    %v790 = vmul.f32 %v662, %v127
    %v791 = vmul.f32 %v663, %v128
    %v792 = vmul.f32 %v664, %v129
    %v793 = vmul.f32 %v665, %v130
    %v794 = vmul.f32 %v666, %v131
    %v795 = vmul.f32 %v667, %v132
    %v796 = vmul.f32 %v668, %v133
    %v797 = vmul.f32 %v669, %v134
    %v798 = vmul.f32 %v670, %v135
    %v799 = vmul.f32 %v671, %v136
    %v800 = vmul.f32 %v672, %v137
    %v801 = vmul.f32 %v673, %v138
    %v802 = vmul.f32 %v674, %v139
    %v803 = vmul.f32 %v675, %v140
    %v804 = vmul.f32 %v676, %v141
    %v805 = vmul.f32 %v677, %v142
    %v806 = vmul.f32 %v678, %v143
    %v807 = vmul.f32 %v679, %v144
    %v808 = vmul.f32 %v680, %v145
    %v809 = vmul.f32 %v681, %v146
    %v810 = vmul.f32 %v682, %v147
    %v811 = vmul.f32 %v683, %v148
    %v812 = vmul.f32 %v684, %v149
    %v813 = vmul.f32 %v685, %v150
    %v814 = vmul.f32 %v686, %v151
    %v815 = vmul.f32 %v687, %v152
    %v816 = vmul.f32 %v688, %v153
    %v817 = vmul.f32 %v689, %v154
    %v818 = vmul.f32 %v690, %v155
    %v819 = vmul.f32 %v691, %v156
    %v820 = vmul.f32 %v692, %v157
    %v821 = vmul.f32 %v693, %v158
    %v822 = vmul.f32 %v694, %v159
    %v823 = vmul.f32 %v695, %v160
    %v824 = vmul.f32 %v696, %v161
    %v825 = vmul.f32 %v697, %v162
    %v826 = vmul.f32 %v698, %v163
    %v827 = vmul.f32 %v699, %v164
    %v828 = vmul.f32 %v700, %v165
    %v829 = vmul.f32 %v701, %v166
    %v830 = vmul.f32 %v702, %v167
    %v831 = vmul.f32 %v703, %v168
    %v832 = vmul.f32 %v704, %v169
    %v833 = vmul.f32 %v705, %v170
    %v834 = vand.u32 2147483647, %v43
    %v835 = vand.u32 2147483647, %v44
    %v836 = vand.u32 2147483647, %v45
    %v837 = vand.u32 2147483647, %v46
    %v838 = vand.u32 2147483647, %v47
    %v839 = vand.u32 2147483647, %v48
    %v840 = vand.u32 2147483647, %v49
    %v841 = vand.u32 2147483647, %v50
    %v842 = vand.u32 2147483647, %v51
    %v843 = vand.u32 2147483647, %v52
    %v844 = vand.u32 2147483647, %v53
    %v845 = vand.u32 2147483647, %v54
    %v846 = vand.u32 2147483647, %v55
    %v847 = vand.u32 2147483647, %v56
    %v848 = vand.u32 2147483647, %v57
    %v849 = vand.u32 2147483647, %v58
    %v850 = vand.u32 2147483647, %v59
    %v851 = vand.u32 2147483647, %v60
    %v852 = vand.u32 2147483647, %v61
    %v853 = vand.u32 2147483647, %v62
    %v854 = vand.u32 2147483647, %v63
    %v855 = vand.u32 2147483647, %v64
    %v856 = vand.u32 2147483647, %v65
    %v857 = vand.u32 2147483647, %v66
    %v858 = vand.u32 2147483647, %v67
    %v859 = vand.u32 2147483647, %v68
    %v860 = vand.u32 2147483647, %v69
    %v861 = vand.u32 2147483647, %v70
    %v862 = vand.u32 2147483647, %v71
    %v863 = vand.u32 2147483647, %v72
    %v864 = vand.u32 2147483647, %v73
    %v865 = vand.u32 2147483647, %v74
    %v866 = vand.u32 2147483647, %v75
    %v867 = vand.u32 2147483647, %v76
    %v868 = vand.u32 2147483647, %v77
    %v869 = vand.u32 2147483647, %v78
    %v870 = vand.u32 2147483647, %v79
    %v871 = vand.u32 2147483647, %v80
    %v872 = vand.u32 2147483647, %v81
    %v873 = vand.u32 2147483647, %v82
    %v874 = vand.u32 2147483647, %v83
    %v875 = vand.u32 2147483647, %v84
    %v876 = vand.u32 2147483647, %v85
    %v877 = vand.u32 2147483647, %v86
    %v878 = vand.u32 2147483647, %v87
    %v879 = vand.u32 2147483647, %v88
    %v880 = vand.u32 2147483647, %v89
    %v881 = vand.u32 2147483647, %v90
    %v882 = vand.u32 2147483647, %v91
    %v883 = vand.u32 2147483647, %v92
    %v884 = vand.u32 2147483647, %v93
    %v885 = vand.u32 2147483647, %v94
    %v886 = vand.u32 2147483647, %v95
    %v887 = vand.u32 2147483647, %v96
    %v888 = vand.u32 2147483647, %v97
    %v889 = vand.u32 2147483647, %v98
    %v890 = vand.u32 2147483647, %v99
    %v891 = vand.u32 2147483647, %v100
    %v892 = vand.u32 2147483647, %v101
    %v893 = vand.u32 2147483647, %v102
    %v894 = vand.u32 2147483647, %v103
    %v895 = vand.u32 2147483647, %v104
    %v896 = vand.u32 2147483647, %v105
    %v897 = vand.u32 2147483647, %v106
    %v898 = vand.u32 2147483647, %v107
    %v899 = vand.u32 2147483647, %v108
    %v900 = vand.u32 2147483647, %v109
    %v901 = vand.u32 2147483647, %v110
    %v902 = vand.u32 2147483647, %v111
    %v903 = vand.u32 2147483647, %v112
    %v904 = vand.u32 2147483647, %v113
    %v905 = vand.u32 2147483647, %v114
    %v906 = vand.u32 2147483647, %v115
    %v907 = vand.u32 2147483647, %v116
    %v908 = vand.u32 2147483647, %v117
    %v909 = vand.u32 2147483647, %v118
    %v910 = vand.u32 2147483647, %v119
    %v911 = vand.u32 2147483647, %v120
    %v912 = vand.u32 2147483647, %v121
    %v913 = vand.u32 2147483647, %v122
    %v914 = vand.u32 2147483647, %v123
    %v915 = vand.u32 2147483647, %v124
    %v916 = vand.u32 2147483647, %v125
    %v917 = vand.u32 2147483647, %v126
    %v918 = vand.u32 2147483647, %v127
    %v919 = vand.u32 2147483647, %v128
    %v920 = vand.u32 2147483647, %v129
    %v921 = vand.u32 2147483647, %v130
    %v922 = vand.u32 2147483647, %v131
    %v923 = vand.u32 2147483647, %v132
    %v924 = vand.u32 2147483647, %v133
    %v925 = vand.u32 2147483647, %v134
    %v926 = vand.u32 2147483647, %v135
    %v927 = vand.u32 2147483647, %v136
    %v928 = vand.u32 2147483647, %v137
    %v929 = vand.u32 2147483647, %v138
    %v930 = vand.u32 2147483647, %v139
    %v931 = vand.u32 2147483647, %v140
    %v932 = vand.u32 2147483647, %v141
    %v933 = vand.u32 2147483647, %v142
    %v934 = vand.u32 2147483647, %v143
    %v935 = vand.u32 2147483647, %v144
    %v936 = vand.u32 2147483647, %v145
    %v937 = vand.u32 2147483647, %v146
    %v938 = vand.u32 2147483647, %v147
    %v939 = vand.u32 2147483647, %v148
    %v940 = vand.u32 2147483647, %v149
    %v941 = vand.u32 2147483647, %v150
    %v942 = vand.u32 2147483647, %v151
    %v943 = vand.u32 2147483647, %v152
    %v944 = vand.u32 2147483647, %v153
    %v945 = vand.u32 2147483647, %v154
    %v946 = vand.u32 2147483647, %v155
    %v947 = vand.u32 2147483647, %v156
    %v948 = vand.u32 2147483647, %v157
    %v949 = vand.u32 2147483647, %v158
    %v950 = vand.u32 2147483647, %v159
    %v951 = vand.u32 2147483647, %v160
    %v952 = vand.u32 2147483647, %v161
    %v953 = vand.u32 2147483647, %v162
    %v954 = vand.u32 2147483647, %v163
    %v955 = vand.u32 2147483647, %v164
    %v956 = vand.u32 2147483647, %v165
    %v957 = vand.u32 2147483647, %v166
    %v958 = vand.u32 2147483647, %v167
    %v959 = vand.u32 2147483647, %v168
    %v960 = vand.u32 2147483647, %v169
    %v961 = vand.u32 2147483647, %v170
    %v962 = vsub.f32 0.0, %v834
    %v963 = vsub.f32 0.0, %v835
    %v964 = vsub.f32 0.0, %v836
    %v965 = vsub.f32 0.0, %v837
    %v966 = vsub.f32 0.0, %v838
    %v967 = vsub.f32 0.0, %v839
    %v968 = vsub.f32 0.0, %v840
    %v969 = vsub.f32 0.0, %v841
    %v970 = vsub.f32 0.0, %v842
    %v971 = vsub.f32 0.0, %v843
    %v972 = vsub.f32 0.0, %v844
    %v973 = vsub.f32 0.0, %v845
    %v974 = vsub.f32 0.0, %v846
    %v975 = vsub.f32 0.0, %v847
    %v976 = vsub.f32 0.0, %v848
    %v977 = vsub.f32 0.0, %v849
    %v978 = vsub.f32 0.0, %v850
    %v979 = vsub.f32 0.0, %v851
    %v980 = vsub.f32 0.0, %v852
    %v981 = vsub.f32 0.0, %v853
    %v982 = vsub.f32 0.0, %v854
    %v983 = vsub.f32 0.0, %v855
    %v984 = vsub.f32 0.0, %v856
    %v985 = vsub.f32 0.0, %v857
    %v986 = vsub.f32 0.0, %v858
    %v987 = vsub.f32 0.0, %v859
    %v988 = vsub.f32 0.0, %v860
    %v989 = vsub.f32 0.0, %v861
    %v990 = vsub.f32 0.0, %v862
    %v991 = vsub.f32 0.0, %v863
    %v992 = vsub.f32 0.0, %v864
    %v993 = vsub.f32 0.0, %v865
    %v994 = vsub.f32 0.0, %v866
    %v995 = vsub.f32 0.0, %v867
    %v996 = vsub.f32 0.0, %v868
    %v997 = vsub.f32 0.0, %v869
    %v998 = vsub.f32 0.0, %v870
    %v999 = vsub.f32 0.0, %v871
    %v1000 = vsub.f32 0.0, %v872
    %v1001 = vsub.f32 0.0, %v873
    %v1002 = vsub.f32 0.0, %v874
    %v1003 = vsub.f32 0.0, %v875
    %v1004 = vsub.f32 0.0, %v876
    %v1005 = vsub.f32 0.0, %v877
    %v1006 = vsub.f32 0.0, %v878
    %v1007 = vsub.f32 0.0, %v879
    %v1008 = vsub.f32 0.0, %v880
    %v1009 = vsub.f32 0.0, %v881
    %v1010 = vsub.f32 0.0, %v882
    %v1011 = vsub.f32 0.0, %v883
    %v1012 = vsub.f32 0.0, %v884
    %v1013 = vsub.f32 0.0, %v885
    %v1014 = vsub.f32 0.0, %v886
    %v1015 = vsub.f32 0.0, %v887
    %v1016 = vsub.f32 0.0, %v888
    %v1017 = vsub.f32 0.0, %v889
    %v1018 = vsub.f32 0.0, %v890
    %v1019 = vsub.f32 0.0, %v891
    %v1020 = vsub.f32 0.0, %v892
    %v1021 = vsub.f32 0.0, %v893
    %v1022 = vsub.f32 0.0, %v894
    %v1023 = vsub.f32 0.0, %v895
    %v1024 = vsub.f32 0.0, %v896
    %v1025 = vsub.f32 0.0, %v897
    %v1026 = vsub.f32 0.0, %v898
    %v1027 = vsub.f32 0.0, %v899
    %v1028 = vsub.f32 0.0, %v900
    %v1029 = vsub.f32 0.0, %v901
    %v1030 = vsub.f32 0.0, %v902
    %v1031 = vsub.f32 0.0, %v903
    %v1032 = vsub.f32 0.0, %v904
    %v1033 = vsub.f32 0.0, %v905
    %v1034 = vsub.f32 0.0, %v906
    %v1035 = vsub.f32 0.0, %v907
    %v1036 = vsub.f32 0.0, %v908
    %v1037 = vsub.f32 0.0, %v909
    %v1038 = vsub.f32 0.0, %v910
    %v1039 = vsub.f32 0.0, %v911
    %v1040 = vsub.f32 0.0, %v912
    %v1041 = vsub.f32 0.0, %v913
    %v1042 = vsub.f32 0.0, %v914
    %v1043 = vsub.f32 0.0, %v915
    %v1044 = vsub.f32 0.0, %v916
    %v1045 = vsub.f32 0.0, %v917
    %v1046 = vsub.f32 0.0, %v918
    %v1047 = vsub.f32 0.0, %v919
    %v1048 = vsub.f32 0.0, %v920
    %v1049 = vsub.f32 0.0, %v921
    %v1050 = vsub.f32 0.0, %v922
    %v1051 = vsub.f32 0.0, %v923
    %v1052 = vsub.f32 0.0, %v924
    %v1053 = vsub.f32 0.0, %v925
    %v1054 = vsub.f32 0.0, %v926
    %v1055 = vsub.f32 0.0, %v927
    %v1056 = vsub.f32 0.0, %v928
    %v1057 = vsub.f32 0.0, %v929
    %v1058 = vsub.f32 0.0, %v930
    %v1059 = vsub.f32 0.0, %v931
    %v1060 = vsub.f32 0.0, %v932
    %v1061 = vsub.f32 0.0, %v933
    %v1062 = vsub.f32 0.0, %v934
    %v1063 = vsub.f32 0.0, %v935
    %v1064 = vsub.f32 0.0, %v936
    %v1065 = vsub.f32 0.0, %v937
    %v1066 = vsub.f32 0.0, %v938
    %v1067 = vsub.f32 0.0, %v939
    %v1068 = vsub.f32 0.0, %v940
    %v1069 = vsub.f32 0.0, %v941
    %v1070 = vsub.f32 0.0, %v942
    %v1071 = vsub.f32 0.0, %v943
    %v1072 = vsub.f32 0.0, %v944
    %v1073 = vsub.f32 0.0, %v945
    %v1074 = vsub.f32 0.0, %v946
    %v1075 = vsub.f32 0.0, %v947
    %v1076 = vsub.f32 0.0, %v948
    %v1077 = vsub.f32 0.0, %v949
    %v1078 = vsub.f32 0.0, %v950
    %v1079 = vsub.f32 0.0, %v951
    %v1080 = vsub.f32 0.0, %v952
    %v1081 = vsub.f32 0.0, %v953
    %v1082 = vsub.f32 0.0, %v954
    %v1083 = vsub.f32 0.0, %v955
    %v1084 = vsub.f32 0.0, %v956
    %v1085 = vsub.f32 0.0, %v957
    %v1086 = vsub.f32 0.0, %v958
    %v1087 = vsub.f32 0.0, %v959
    %v1088 = vsub.f32 0.0, %v960
    %v1089 = vsub.f32 0.0, %v961
    %v1090 = vmul.f32 %v962, 1.442695
    %v1091 = vpow.pop %v1090
    %v1092 = vmul.f32 %v963, 1.442695
    %v1093 = vpow.pop %v1092
    %v1094 = vmul.f32 %v964, 1.442695
    %v1095 = vpow.pop %v1094
    %v1096 = vmul.f32 %v965, 1.442695
    %v1097 = vpow.pop %v1096
    %v1098 = vmul.f32 %v966, 1.442695
    %v1099 = vpow.pop %v1098
    %v1100 = vmul.f32 %v967, 1.442695
    %v1101 = vpow.pop %v1100
    %v1102 = vmul.f32 %v968, 1.442695
    %v1103 = vpow.pop %v1102
    %v1104 = vmul.f32 %v969, 1.442695
    %v1105 = vpow.pop %v1104
    %v1106 = vmul.f32 %v970, 1.442695
    %v1107 = vpow.pop %v1106
    %v1108 = vmul.f32 %v971, 1.442695
    %v1109 = vpow.pop %v1108
    %v1110 = vmul.f32 %v972, 1.442695
    %v1111 = vpow.pop %v1110
    %v1112 = vmul.f32 %v973, 1.442695
    %v1113 = vpow.pop %v1112
    %v1114 = vmul.f32 %v974, 1.442695
    %v1115 = vpow.pop %v1114
    %v1116 = vmul.f32 %v975, 1.442695
    %v1117 = vpow.pop %v1116
    %v1118 = vmul.f32 %v976, 1.442695
    %v1119 = vpow.pop %v1118
    %v1120 = vmul.f32 %v977, 1.442695
    %v1121 = vpow.pop %v1120
    %v1122 = vmul.f32 %v978, 1.442695
    %v1123 = vpow.pop %v1122
    %v1124 = vmul.f32 %v979, 1.442695
    %v1125 = vpow.pop %v1124
    %v1126 = vmul.f32 %v980, 1.442695
    %v1127 = vpow.pop %v1126
    %v1128 = vmul.f32 %v981, 1.442695
    %v1129 = vpow.pop %v1128
    %v1130 = vmul.f32 %v982, 1.442695
    %v1131 = vpow.pop %v1130
    %v1132 = vmul.f32 %v983, 1.442695
    %v1133 = vpow.pop %v1132
    %v1134 = vmul.f32 %v984, 1.442695
    %v1135 = vpow.pop %v1134
    %v1136 = vmul.f32 %v985, 1.442695
    %v1137 = vpow.pop %v1136
    %v1138 = vmul.f32 %v986, 1.442695
    %v1139 = vpow.pop %v1138
    %v1140 = vmul.f32 %v987, 1.442695
    %v1141 = vpow.pop %v1140
    %v1142 = vmul.f32 %v988, 1.442695
    %v1143 = vpow.pop %v1142
    %v1144 = vmul.f32 %v989, 1.442695
    %v1145 = vpow.pop %v1144
    %v1146 = vmul.f32 %v990, 1.442695
    %v1147 = vpow.pop %v1146
    %v1148 = vmul.f32 %v991, 1.442695
    %v1149 = vpow.pop %v1148
    %v1150 = vmul.f32 %v992, 1.442695
    %v1151 = vpow.pop %v1150
    %v1152 = vmul.f32 %v993, 1.442695
    %v1153 = vpow.pop %v1152
    %v1154 = vmul.f32 %v994, 1.442695
    %v1155 = vpow.pop %v1154
    %v1156 = vmul.f32 %v995, 1.442695
    %v1157 = vpow.pop %v1156
    %v1158 = vmul.f32 %v996, 1.442695
    %v1159 = vpow.pop %v1158
    %v1160 = vmul.f32 %v997, 1.442695
    %v1161 = vpow.pop %v1160
    %v1162 = vmul.f32 %v998, 1.442695
    %v1163 = vpow.pop %v1162
    %v1164 = vmul.f32 %v999, 1.442695
    %v1165 = vpow.pop %v1164
    %v1166 = vmul.f32 %v1000, 1.442695
    %v1167 = vpow.pop %v1166
    %v1168 = vmul.f32 %v1001, 1.442695
    %v1169 = vpow.pop %v1168
    %v1170 = vmul.f32 %v1002, 1.442695
    %v1171 = vpow.pop %v1170
    %v1172 = vmul.f32 %v1003, 1.442695
    %v1173 = vpow.pop %v1172
    %v1174 = vmul.f32 %v1004, 1.442695
    %v1175 = vpow.pop %v1174
    %v1176 = vmul.f32 %v1005, 1.442695
    %v1177 = vpow.pop %v1176
    %v1178 = vmul.f32 %v1006, 1.442695
    %v1179 = vpow.pop %v1178
    %v1180 = vmul.f32 %v1007, 1.442695
    %v1181 = vpow.pop %v1180
    %v1182 = vmul.f32 %v1008, 1.442695
    %v1183 = vpow.pop %v1182
    %v1184 = vmul.f32 %v1009, 1.442695
    %v1185 = vpow.pop %v1184
    %v1186 = vmul.f32 %v1010, 1.442695
    %v1187 = vpow.pop %v1186
    %v1188 = vmul.f32 %v1011, 1.442695
    %v1189 = vpow.pop %v1188
    %v1190 = vmul.f32 %v1012, 1.442695
    %v1191 = vpow.pop %v1190
    %v1192 = vmul.f32 %v1013, 1.442695
    %v1193 = vpow.pop %v1192
    %v1194 = vmul.f32 %v1014, 1.442695
    %v1195 = vpow.pop %v1194
    %v1196 = vmul.f32 %v1015, 1.442695
    %v1197 = vpow.pop %v1196
    %v1198 = vmul.f32 %v1016, 1.442695
    %v1199 = vpow.pop %v1198
    %v1200 = vmul.f32 %v1017, 1.442695
    %v1201 = vpow.pop %v1200
    %v1202 = vmul.f32 %v1018, 1.442695
    %v1203 = vpow.pop %v1202
    %v1204 = vmul.f32 %v1019, 1.442695
    %v1205 = vpow.pop %v1204
    %v1206 = vmul.f32 %v1020, 1.442695
    %v1207 = vpow.pop %v1206
    %v1208 = vmul.f32 %v1021, 1.442695
    %v1209 = vpow.pop %v1208
    %v1210 = vmul.f32 %v1022, 1.442695
    %v1211 = vpow.pop %v1210
    %v1212 = vmul.f32 %v1023, 1.442695
    %v1213 = vpow.pop %v1212
    %v1214 = vmul.f32 %v1024, 1.442695
    %v1215 = vpow.pop %v1214
    %v1216 = vmul.f32 %v1025, 1.442695
    %v1217 = vpow.pop %v1216
    %v1218 = vmul.f32 %v1026, 1.442695
    %v1219 = vpow.pop %v1218
    %v1220 = vmul.f32 %v1027, 1.442695
    %v1221 = vpow.pop %v1220
    %v1222 = vmul.f32 %v1028, 1.442695
    %v1223 = vpow.pop %v1222
    %v1224 = vmul.f32 %v1029, 1.442695
    %v1225 = vpow.pop %v1224
    %v1226 = vmul.f32 %v1030, 1.442695
    %v1227 = vpow.pop %v1226
    %v1228 = vmul.f32 %v1031, 1.442695
    %v1229 = vpow.pop %v1228
    %v1230 = vmul.f32 %v1032, 1.442695
    %v1231 = vpow.pop %v1230
    %v1232 = vmul.f32 %v1033, 1.442695
    %v1233 = vpow.pop %v1232
    %v1234 = vmul.f32 %v1034, 1.442695
    %v1235 = vpow.pop %v1234
    %v1236 = vmul.f32 %v1035, 1.442695
    %v1237 = vpow.pop %v1236
    %v1238 = vmul.f32 %v1036, 1.442695
    %v1239 = vpow.pop %v1238
    %v1240 = vmul.f32 %v1037, 1.442695
    %v1241 = vpow.pop %v1240
    %v1242 = vmul.f32 %v1038, 1.442695
    %v1243 = vpow.pop %v1242
    %v1244 = vmul.f32 %v1039, 1.442695
    %v1245 = vpow.pop %v1244
    %v1246 = vmul.f32 %v1040, 1.442695
    %v1247 = vpow.pop %v1246
    %v1248 = vmul.f32 %v1041, 1.442695
    %v1249 = vpow.pop %v1248
    %v1250 = vmul.f32 %v1042, 1.442695
    %v1251 = vpow.pop %v1250
    %v1252 = vmul.f32 %v1043, 1.442695
    %v1253 = vpow.pop %v1252
    %v1254 = vmul.f32 %v1044, 1.442695
    %v1255 = vpow.pop %v1254
    %v1256 = vmul.f32 %v1045, 1.442695
    %v1257 = vpow.pop %v1256
    %v1258 = vmul.f32 %v1046, 1.442695
    %v1259 = vpow.pop %v1258
    %v1260 = vmul.f32 %v1047, 1.442695
    %v1261 = vpow.pop %v1260
    %v1262 = vmul.f32 %v1048, 1.442695
    %v1263 = vpow.pop %v1262
    %v1264 = vmul.f32 %v1049, 1.442695
    %v1265 = vpow.pop %v1264
    %v1266 = vmul.f32 %v1050, 1.442695
    %v1267 = vpow.pop %v1266
    %v1268 = vmul.f32 %v1051, 1.442695
    %v1269 = vpow.pop %v1268
    %v1270 = vmul.f32 %v1052, 1.442695
    %v1271 = vpow.pop %v1270
    %v1272 = vmul.f32 %v1053, 1.442695
    %v1273 = vpow.pop %v1272
    %v1274 = vmul.f32 %v1054, 1.442695
    %v1275 = vpow.pop %v1274
    %v1276 = vmul.f32 %v1055, 1.442695
    %v1277 = vpow.pop %v1276
    %v1278 = vmul.f32 %v1056, 1.442695
    %v1279 = vpow.pop %v1278
    %v1280 = vmul.f32 %v1057, 1.442695
    %v1281 = vpow.pop %v1280
    %v1282 = vmul.f32 %v1058, 1.442695
    %v1283 = vpow.pop %v1282
    %v1284 = vmul.f32 %v1059, 1.442695
    %v1285 = vpow.pop %v1284
    %v1286 = vmul.f32 %v1060, 1.442695
    %v1287 = vpow.pop %v1286
    %v1288 = vmul.f32 %v1061, 1.442695
    %v1289 = vpow.pop %v1288
    %v1290 = vmul.f32 %v1062, 1.442695
    %v1291 = vpow.pop %v1290
    %v1292 = vmul.f32 %v1063, 1.442695
    %v1293 = vpow.pop %v1292
    %v1294 = vmul.f32 %v1064, 1.442695
    %v1295 = vpow.pop %v1294
    %v1296 = vmul.f32 %v1065, 1.442695
    %v1297 = vpow.pop %v1296
    %v1298 = vmul.f32 %v1066, 1.442695
    %v1299 = vpow.pop %v1298
    %v1300 = vmul.f32 %v1067, 1.442695
    %v1301 = vpow.pop %v1300
    %v1302 = vmul.f32 %v1068, 1.442695
    %v1303 = vpow.pop %v1302
    %v1304 = vmul.f32 %v1069, 1.442695
    %v1305 = vpow.pop %v1304
    %v1306 = vmul.f32 %v1070, 1.442695
    %v1307 = vpow.pop %v1306
    %v1308 = vmul.f32 %v1071, 1.442695
    %v1309 = vpow.pop %v1308
    %v1310 = vmul.f32 %v1072, 1.442695
    %v1311 = vpow.pop %v1310
    %v1312 = vmul.f32 %v1073, 1.442695
    %v1313 = vpow.pop %v1312
    %v1314 = vmul.f32 %v1074, 1.442695
    %v1315 = vpow.pop %v1314
    %v1316 = vmul.f32 %v1075, 1.442695
    %v1317 = vpow.pop %v1316
    %v1318 = vmul.f32 %v1076, 1.442695
    %v1319 = vpow.pop %v1318
    %v1320 = vmul.f32 %v1077, 1.442695
    %v1321 = vpow.pop %v1320
    %v1322 = vmul.f32 %v1078, 1.442695
    %v1323 = vpow.pop %v1322
    %v1324 = vmul.f32 %v1079, 1.442695
    %v1325 = vpow.pop %v1324
    %v1326 = vmul.f32 %v1080, 1.442695
    %v1327 = vpow.pop %v1326
    %v1328 = vmul.f32 %v1081, 1.442695
    %v1329 = vpow.pop %v1328
    %v1330 = vmul.f32 %v1082, 1.442695
    %v1331 = vpow.pop %v1330
    %v1332 = vmul.f32 %v1083, 1.442695
    %v1333 = vpow.pop %v1332
    %v1334 = vmul.f32 %v1084, 1.442695
    %v1335 = vpow.pop %v1334
    %v1336 = vmul.f32 %v1085, 1.442695
    %v1337 = vpow.pop %v1336
    %v1338 = vmul.f32 %v1086, 1.442695
    %v1339 = vpow.pop %v1338
    %v1340 = vmul.f32 %v1087, 1.442695
    %v1341 = vpow.pop %v1340
    %v1342 = vmul.f32 %v1088, 1.442695
    %v1343 = vpow.pop %v1342
    %v1344 = vmul.f32 %v1089, 1.442695
    %v1345 = vpow.pop %v1344
    %v1346 = vadd.f32 %v1091, 1.0
    %v1347 = vlog2.pop %v1346
    %v1348 = vmul.f32 %v1347, 0.6931472
    %v1349 = vmul.f32 -0.5, %v1091
    %v1350 = vadd.f32 %v1349, 1.0
    %v1351 = vmul.f32 %v1350, %v1091
    %v1352 = vand.u32 2147483647, %v1091
    %vm1353 = vcmp.lt.f32.partialorder %v1352, 0.0004427343
    %v1354 = vsel %vm1353, %v1351, %v1348
    %v1355 = vadd.f32 %v1093, 1.0
    %v1356 = vlog2.pop %v1355
    %v1357 = vmul.f32 %v1356, 0.6931472
    %v1358 = vmul.f32 -0.5, %v1093
    %v1359 = vadd.f32 %v1358, 1.0
    %v1360 = vmul.f32 %v1359, %v1093
    %v1361 = vand.u32 2147483647, %v1093
    %vm1362 = vcmp.lt.f32.partialorder %v1361, 0.0004427343
    %v1363 = vsel %vm1362, %v1360, %v1357
    %v1364 = vadd.f32 %v1095, 1.0
    %v1365 = vlog2.pop %v1364
    %v1366 = vmul.f32 %v1365, 0.6931472
    %v1367 = vmul.f32 -0.5, %v1095
    %v1368 = vadd.f32 %v1367, 1.0
    %v1369 = vmul.f32 %v1368, %v1095
    %v1370 = vand.u32 2147483647, %v1095
    %vm1371 = vcmp.lt.f32.partialorder %v1370, 0.0004427343
    %v1372 = vsel %vm1371, %v1369, %v1366
    %v1373 = vadd.f32 %v1097, 1.0
    %v1374 = vlog2.pop %v1373
    %v1375 = vmul.f32 %v1374, 0.6931472
    %v1376 = vmul.f32 -0.5, %v1097
    %v1377 = vadd.f32 %v1376, 1.0
    %v1378 = vmul.f32 %v1377, %v1097
    %v1379 = vand.u32 2147483647, %v1097
    %vm1380 = vcmp.lt.f32.partialorder %v1379, 0.0004427343
    %v1381 = vsel %vm1380, %v1378, %v1375
    %v1382 = vadd.f32 %v1099, 1.0
    %v1383 = vlog2.pop %v1382
    %v1384 = vmul.f32 %v1383, 0.6931472
    %v1385 = vmul.f32 -0.5, %v1099
    %v1386 = vadd.f32 %v1385, 1.0
    %v1387 = vmul.f32 %v1386, %v1099
    %v1388 = vand.u32 2147483647, %v1099
    %vm1389 = vcmp.lt.f32.partialorder %v1388, 0.0004427343
    %v1390 = vsel %vm1389, %v1387, %v1384
    %v1391 = vadd.f32 %v1101, 1.0
    %v1392 = vlog2.pop %v1391
    %v1393 = vmul.f32 %v1392, 0.6931472
    %v1394 = vmul.f32 -0.5, %v1101
    %v1395 = vadd.f32 %v1394, 1.0
    %v1396 = vmul.f32 %v1395, %v1101
    %v1397 = vand.u32 2147483647, %v1101
    %vm1398 = vcmp.lt.f32.partialorder %v1397, 0.0004427343
    %v1399 = vsel %vm1398, %v1396, %v1393
    %v1400 = vadd.f32 %v1103, 1.0
    %v1401 = vlog2.pop %v1400
    %v1402 = vmul.f32 %v1401, 0.6931472
    %v1403 = vmul.f32 -0.5, %v1103
    %v1404 = vadd.f32 %v1403, 1.0
    %v1405 = vmul.f32 %v1404, %v1103
    %v1406 = vand.u32 2147483647, %v1103
    %vm1407 = vcmp.lt.f32.partialorder %v1406, 0.0004427343
    %v1408 = vsel %vm1407, %v1405, %v1402
    %v1409 = vadd.f32 %v1105, 1.0
    %v1410 = vlog2.pop %v1409
    %v1411 = vmul.f32 %v1410, 0.6931472
    %v1412 = vmul.f32 -0.5, %v1105
    %v1413 = vadd.f32 %v1412, 1.0
    %v1414 = vmul.f32 %v1413, %v1105
    %v1415 = vand.u32 2147483647, %v1105
    %vm1416 = vcmp.lt.f32.partialorder %v1415, 0.0004427343
    %v1417 = vsel %vm1416, %v1414, %v1411
    %v1418 = vadd.f32 %v1107, 1.0
    %v1419 = vlog2.pop %v1418
    %v1420 = vmul.f32 %v1419, 0.6931472
    %v1421 = vmul.f32 -0.5, %v1107
    %v1422 = vadd.f32 %v1421, 1.0
    %v1423 = vmul.f32 %v1422, %v1107
    %v1424 = vand.u32 2147483647, %v1107
    %vm1425 = vcmp.lt.f32.partialorder %v1424, 0.0004427343
    %v1426 = vsel %vm1425, %v1423, %v1420
    %v1427 = vadd.f32 %v1109, 1.0
    %v1428 = vlog2.pop %v1427
    %v1429 = vmul.f32 %v1428, 0.6931472
    %v1430 = vmul.f32 -0.5, %v1109
    %v1431 = vadd.f32 %v1430, 1.0
    %v1432 = vmul.f32 %v1431, %v1109
    %v1433 = vand.u32 2147483647, %v1109
    %vm1434 = vcmp.lt.f32.partialorder %v1433, 0.0004427343
    %v1435 = vsel %vm1434, %v1432, %v1429
    %v1436 = vadd.f32 %v1111, 1.0
    %v1437 = vlog2.pop %v1436
    %v1438 = vmul.f32 %v1437, 0.6931472
    %v1439 = vmul.f32 -0.5, %v1111
    %v1440 = vadd.f32 %v1439, 1.0
    %v1441 = vmul.f32 %v1440, %v1111
    %v1442 = vand.u32 2147483647, %v1111
    %vm1443 = vcmp.lt.f32.partialorder %v1442, 0.0004427343
    %v1444 = vsel %vm1443, %v1441, %v1438
    %v1445 = vadd.f32 %v1113, 1.0
    %v1446 = vlog2.pop %v1445
    %v1447 = vmul.f32 %v1446, 0.6931472
    %v1448 = vmul.f32 -0.5, %v1113
    %v1449 = vadd.f32 %v1448, 1.0
    %v1450 = vmul.f32 %v1449, %v1113
    %v1451 = vand.u32 2147483647, %v1113
    %vm1452 = vcmp.lt.f32.partialorder %v1451, 0.0004427343
    %v1453 = vsel %vm1452, %v1450, %v1447
    %v1454 = vadd.f32 %v1115, 1.0
    %v1455 = vlog2.pop %v1454
    %v1456 = vmul.f32 %v1455, 0.6931472
    %v1457 = vmul.f32 -0.5, %v1115
    %v1458 = vadd.f32 %v1457, 1.0
    %v1459 = vmul.f32 %v1458, %v1115
    %v1460 = vand.u32 2147483647, %v1115
    %vm1461 = vcmp.lt.f32.partialorder %v1460, 0.0004427343
    %v1462 = vsel %vm1461, %v1459, %v1456
    %v1463 = vadd.f32 %v1117, 1.0
    %v1464 = vlog2.pop %v1463
    %v1465 = vmul.f32 %v1464, 0.6931472
    %v1466 = vmul.f32 -0.5, %v1117
    %v1467 = vadd.f32 %v1466, 1.0
    %v1468 = vmul.f32 %v1467, %v1117
    %v1469 = vand.u32 2147483647, %v1117
    %vm1470 = vcmp.lt.f32.partialorder %v1469, 0.0004427343
    %v1471 = vsel %vm1470, %v1468, %v1465
    %v1472 = vadd.f32 %v1119, 1.0
    %v1473 = vlog2.pop %v1472
    %v1474 = vmul.f32 %v1473, 0.6931472
    %v1475 = vmul.f32 -0.5, %v1119
    %v1476 = vadd.f32 %v1475, 1.0
    %v1477 = vmul.f32 %v1476, %v1119
    %v1478 = vand.u32 2147483647, %v1119
    %vm1479 = vcmp.lt.f32.partialorder %v1478, 0.0004427343
    %v1480 = vsel %vm1479, %v1477, %v1474
    %v1481 = vadd.f32 %v1121, 1.0
    %v1482 = vlog2.pop %v1481
    %v1483 = vmul.f32 %v1482, 0.6931472
    %v1484 = vmul.f32 -0.5, %v1121
    %v1485 = vadd.f32 %v1484, 1.0
    %v1486 = vmul.f32 %v1485, %v1121
    %v1487 = vand.u32 2147483647, %v1121
    %vm1488 = vcmp.lt.f32.partialorder %v1487, 0.0004427343
    %v1489 = vsel %vm1488, %v1486, %v1483
    %v1490 = vadd.f32 %v1123, 1.0
    %v1491 = vlog2.pop %v1490
    %v1492 = vmul.f32 %v1491, 0.6931472
    %v1493 = vmul.f32 -0.5, %v1123
    %v1494 = vadd.f32 %v1493, 1.0
    %v1495 = vmul.f32 %v1494, %v1123
    %v1496 = vand.u32 2147483647, %v1123
    %vm1497 = vcmp.lt.f32.partialorder %v1496, 0.0004427343
    %v1498 = vsel %vm1497, %v1495, %v1492
    %v1499 = vadd.f32 %v1125, 1.0
    %v1500 = vlog2.pop %v1499
    %v1501 = vmul.f32 %v1500, 0.6931472
    %v1502 = vmul.f32 -0.5, %v1125
    %v1503 = vadd.f32 %v1502, 1.0
    %v1504 = vmul.f32 %v1503, %v1125
    %v1505 = vand.u32 2147483647, %v1125
    %vm1506 = vcmp.lt.f32.partialorder %v1505, 0.0004427343
    %v1507 = vsel %vm1506, %v1504, %v1501
    %v1508 = vadd.f32 %v1127, 1.0
    %v1509 = vlog2.pop %v1508
    %v1510 = vmul.f32 %v1509, 0.6931472
    %v1511 = vmul.f32 -0.5, %v1127
    %v1512 = vadd.f32 %v1511, 1.0
    %v1513 = vmul.f32 %v1512, %v1127
    %v1514 = vand.u32 2147483647, %v1127
    %vm1515 = vcmp.lt.f32.partialorder %v1514, 0.0004427343
    %v1516 = vsel %vm1515, %v1513, %v1510
    %v1517 = vadd.f32 %v1129, 1.0
    %v1518 = vlog2.pop %v1517
    %v1519 = vmul.f32 %v1518, 0.6931472
    %v1520 = vmul.f32 -0.5, %v1129
    %v1521 = vadd.f32 %v1520, 1.0
    %v1522 = vmul.f32 %v1521, %v1129
    %v1523 = vand.u32 2147483647, %v1129
    %vm1524 = vcmp.lt.f32.partialorder %v1523, 0.0004427343
    %v1525 = vsel %vm1524, %v1522, %v1519
    %v1526 = vadd.f32 %v1131, 1.0
    %v1527 = vlog2.pop %v1526
    %v1528 = vmul.f32 %v1527, 0.6931472
    %v1529 = vmul.f32 -0.5, %v1131
    %v1530 = vadd.f32 %v1529, 1.0
    %v1531 = vmul.f32 %v1530, %v1131
    %v1532 = vand.u32 2147483647, %v1131
    %vm1533 = vcmp.lt.f32.partialorder %v1532, 0.0004427343
    %v1534 = vsel %vm1533, %v1531, %v1528
    %v1535 = vadd.f32 %v1133, 1.0
    %v1536 = vlog2.pop %v1535
    %v1537 = vmul.f32 %v1536, 0.6931472
    %v1538 = vmul.f32 -0.5, %v1133
    %v1539 = vadd.f32 %v1538, 1.0
    %v1540 = vmul.f32 %v1539, %v1133
    %v1541 = vand.u32 2147483647, %v1133
    %vm1542 = vcmp.lt.f32.partialorder %v1541, 0.0004427343
    %v1543 = vsel %vm1542, %v1540, %v1537
    %v1544 = vadd.f32 %v1135, 1.0
    %v1545 = vlog2.pop %v1544
    %v1546 = vmul.f32 %v1545, 0.6931472
    %v1547 = vmul.f32 -0.5, %v1135
    %v1548 = vadd.f32 %v1547, 1.0
    %v1549 = vmul.f32 %v1548, %v1135
    %v1550 = vand.u32 2147483647, %v1135
    %vm1551 = vcmp.lt.f32.partialorder %v1550, 0.0004427343
    %v1552 = vsel %vm1551, %v1549, %v1546
    %v1553 = vadd.f32 %v1137, 1.0
    %v1554 = vlog2.pop %v1553
    %v1555 = vmul.f32 %v1554, 0.6931472
    %v1556 = vmul.f32 -0.5, %v1137
    %v1557 = vadd.f32 %v1556, 1.0
    %v1558 = vmul.f32 %v1557, %v1137
    %v1559 = vand.u32 2147483647, %v1137
    %vm1560 = vcmp.lt.f32.partialorder %v1559, 0.0004427343
    %v1561 = vsel %vm1560, %v1558, %v1555
    %v1562 = vadd.f32 %v1139, 1.0
    %v1563 = vlog2.pop %v1562
    %v1564 = vmul.f32 %v1563, 0.6931472
    %v1565 = vmul.f32 -0.5, %v1139
    %v1566 = vadd.f32 %v1565, 1.0
    %v1567 = vmul.f32 %v1566, %v1139
    %v1568 = vand.u32 2147483647, %v1139
    %vm1569 = vcmp.lt.f32.partialorder %v1568, 0.0004427343
    %v1570 = vsel %vm1569, %v1567, %v1564
    %v1571 = vadd.f32 %v1141, 1.0
    %v1572 = vlog2.pop %v1571
    %v1573 = vmul.f32 %v1572, 0.6931472
    %v1574 = vmul.f32 -0.5, %v1141
    %v1575 = vadd.f32 %v1574, 1.0
    %v1576 = vmul.f32 %v1575, %v1141
    %v1577 = vand.u32 2147483647, %v1141
    %vm1578 = vcmp.lt.f32.partialorder %v1577, 0.0004427343
    %v1579 = vsel %vm1578, %v1576, %v1573
    %v1580 = vadd.f32 %v1143, 1.0
    %v1581 = vlog2.pop %v1580
    %v1582 = vmul.f32 %v1581, 0.6931472
    %v1583 = vmul.f32 -0.5, %v1143
    %v1584 = vadd.f32 %v1583, 1.0
    %v1585 = vmul.f32 %v1584, %v1143
    %v1586 = vand.u32 2147483647, %v1143
    %vm1587 = vcmp.lt.f32.partialorder %v1586, 0.0004427343
    %v1588 = vsel %vm1587, %v1585, %v1582
    %v1589 = vadd.f32 %v1145, 1.0
    %v1590 = vlog2.pop %v1589
    %v1591 = vmul.f32 %v1590, 0.6931472
    %v1592 = vmul.f32 -0.5, %v1145
    %v1593 = vadd.f32 %v1592, 1.0
    %v1594 = vmul.f32 %v1593, %v1145
    %v1595 = vand.u32 2147483647, %v1145
    %vm1596 = vcmp.lt.f32.partialorder %v1595, 0.0004427343
    %v1597 = vsel %vm1596, %v1594, %v1591
    %v1598 = vadd.f32 %v1147, 1.0
    %v1599 = vlog2.pop %v1598
    %v1600 = vmul.f32 %v1599, 0.6931472
    %v1601 = vmul.f32 -0.5, %v1147
    %v1602 = vadd.f32 %v1601, 1.0
    %v1603 = vmul.f32 %v1602, %v1147
    %v1604 = vand.u32 2147483647, %v1147
    %vm1605 = vcmp.lt.f32.partialorder %v1604, 0.0004427343
    %v1606 = vsel %vm1605, %v1603, %v1600
    %v1607 = vadd.f32 %v1149, 1.0
    %v1608 = vlog2.pop %v1607
    %v1609 = vmul.f32 %v1608, 0.6931472
    %v1610 = vmul.f32 -0.5, %v1149
    %v1611 = vadd.f32 %v1610, 1.0
    %v1612 = vmul.f32 %v1611, %v1149
    %v1613 = vand.u32 2147483647, %v1149
    %vm1614 = vcmp.lt.f32.partialorder %v1613, 0.0004427343
    %v1615 = vsel %vm1614, %v1612, %v1609
    %v1616 = vadd.f32 %v1151, 1.0
    %v1617 = vlog2.pop %v1616
    %v1618 = vmul.f32 %v1617, 0.6931472
    %v1619 = vmul.f32 -0.5, %v1151
    %v1620 = vadd.f32 %v1619, 1.0
    %v1621 = vmul.f32 %v1620, %v1151
    %v1622 = vand.u32 2147483647, %v1151
    %vm1623 = vcmp.lt.f32.partialorder %v1622, 0.0004427343
    %v1624 = vsel %vm1623, %v1621, %v1618
    %v1625 = vadd.f32 %v1153, 1.0
    %v1626 = vlog2.pop %v1625
    %v1627 = vmul.f32 %v1626, 0.6931472
    %v1628 = vmul.f32 -0.5, %v1153
    %v1629 = vadd.f32 %v1628, 1.0
    %v1630 = vmul.f32 %v1629, %v1153
    %v1631 = vand.u32 2147483647, %v1153
    %vm1632 = vcmp.lt.f32.partialorder %v1631, 0.0004427343
    %v1633 = vsel %vm1632, %v1630, %v1627
    %v1634 = vadd.f32 %v1155, 1.0
    %v1635 = vlog2.pop %v1634
    %v1636 = vmul.f32 %v1635, 0.6931472
    %v1637 = vmul.f32 -0.5, %v1155
    %v1638 = vadd.f32 %v1637, 1.0
    %v1639 = vmul.f32 %v1638, %v1155
    %v1640 = vand.u32 2147483647, %v1155
    %vm1641 = vcmp.lt.f32.partialorder %v1640, 0.0004427343
    %v1642 = vsel %vm1641, %v1639, %v1636
    %v1643 = vadd.f32 %v1157, 1.0
    %v1644 = vlog2.pop %v1643
    %v1645 = vmul.f32 %v1644, 0.6931472
    %v1646 = vmul.f32 -0.5, %v1157
    %v1647 = vadd.f32 %v1646, 1.0
    %v1648 = vmul.f32 %v1647, %v1157
    %v1649 = vand.u32 2147483647, %v1157
    %vm1650 = vcmp.lt.f32.partialorder %v1649, 0.0004427343
    %v1651 = vsel %vm1650, %v1648, %v1645
    %v1652 = vadd.f32 %v1159, 1.0
    %v1653 = vlog2.pop %v1652
    %v1654 = vmul.f32 %v1653, 0.6931472
    %v1655 = vmul.f32 -0.5, %v1159
    %v1656 = vadd.f32 %v1655, 1.0
    %v1657 = vmul.f32 %v1656, %v1159
    %v1658 = vand.u32 2147483647, %v1159
    %vm1659 = vcmp.lt.f32.partialorder %v1658, 0.0004427343
    %v1660 = vsel %vm1659, %v1657, %v1654
    %v1661 = vadd.f32 %v1161, 1.0
    %v1662 = vlog2.pop %v1661
    %v1663 = vmul.f32 %v1662, 0.6931472
    %v1664 = vmul.f32 -0.5, %v1161
    %v1665 = vadd.f32 %v1664, 1.0
    %v1666 = vmul.f32 %v1665, %v1161
    %v1667 = vand.u32 2147483647, %v1161
    %vm1668 = vcmp.lt.f32.partialorder %v1667, 0.0004427343
    %v1669 = vsel %vm1668, %v1666, %v1663
    %v1670 = vadd.f32 %v1163, 1.0
    %v1671 = vlog2.pop %v1670
    %v1672 = vmul.f32 %v1671, 0.6931472
    %v1673 = vmul.f32 -0.5, %v1163
    %v1674 = vadd.f32 %v1673, 1.0
    %v1675 = vmul.f32 %v1674, %v1163
    %v1676 = vand.u32 2147483647, %v1163
    %vm1677 = vcmp.lt.f32.partialorder %v1676, 0.0004427343
    %v1678 = vsel %vm1677, %v1675, %v1672
    %v1679 = vadd.f32 %v1165, 1.0
    %v1680 = vlog2.pop %v1679
    %v1681 = vmul.f32 %v1680, 0.6931472
    %v1682 = vmul.f32 -0.5, %v1165
    %v1683 = vadd.f32 %v1682, 1.0
    %v1684 = vmul.f32 %v1683, %v1165
    %v1685 = vand.u32 2147483647, %v1165
    %vm1686 = vcmp.lt.f32.partialorder %v1685, 0.0004427343
    %v1687 = vsel %vm1686, %v1684, %v1681
    %v1688 = vadd.f32 %v1167, 1.0
    %v1689 = vlog2.pop %v1688
    %v1690 = vmul.f32 %v1689, 0.6931472
    %v1691 = vmul.f32 -0.5, %v1167
    %v1692 = vadd.f32 %v1691, 1.0
    %v1693 = vmul.f32 %v1692, %v1167
    %v1694 = vand.u32 2147483647, %v1167
    %vm1695 = vcmp.lt.f32.partialorder %v1694, 0.0004427343
    %v1696 = vsel %vm1695, %v1693, %v1690
    %v1697 = vadd.f32 %v1169, 1.0
    %v1698 = vlog2.pop %v1697
    %v1699 = vmul.f32 %v1698, 0.6931472
    %v1700 = vmul.f32 -0.5, %v1169
    %v1701 = vadd.f32 %v1700, 1.0
    %v1702 = vmul.f32 %v1701, %v1169
    %v1703 = vand.u32 2147483647, %v1169
    %vm1704 = vcmp.lt.f32.partialorder %v1703, 0.0004427343
    %v1705 = vsel %vm1704, %v1702, %v1699
    %v1706 = vadd.f32 %v1171, 1.0
    %v1707 = vlog2.pop %v1706
    %v1708 = vmul.f32 %v1707, 0.6931472
    %v1709 = vmul.f32 -0.5, %v1171
    %v1710 = vadd.f32 %v1709, 1.0
    %v1711 = vmul.f32 %v1710, %v1171
    %v1712 = vand.u32 2147483647, %v1171
    %vm1713 = vcmp.lt.f32.partialorder %v1712, 0.0004427343
    %v1714 = vsel %vm1713, %v1711, %v1708
    %v1715 = vadd.f32 %v1173, 1.0
    %v1716 = vlog2.pop %v1715
    %v1717 = vmul.f32 %v1716, 0.6931472
    %v1718 = vmul.f32 -0.5, %v1173
    %v1719 = vadd.f32 %v1718, 1.0
    %v1720 = vmul.f32 %v1719, %v1173
    %v1721 = vand.u32 2147483647, %v1173
    %vm1722 = vcmp.lt.f32.partialorder %v1721, 0.0004427343
    %v1723 = vsel %vm1722, %v1720, %v1717
    %v1724 = vadd.f32 %v1175, 1.0
    %v1725 = vlog2.pop %v1724
    %v1726 = vmul.f32 %v1725, 0.6931472
    %v1727 = vmul.f32 -0.5, %v1175
    %v1728 = vadd.f32 %v1727, 1.0
    %v1729 = vmul.f32 %v1728, %v1175
    %v1730 = vand.u32 2147483647, %v1175
    %vm1731 = vcmp.lt.f32.partialorder %v1730, 0.0004427343
    %v1732 = vsel %vm1731, %v1729, %v1726
    %v1733 = vadd.f32 %v1177, 1.0
    %v1734 = vlog2.pop %v1733
    %v1735 = vmul.f32 %v1734, 0.6931472
    %v1736 = vmul.f32 -0.5, %v1177
    %v1737 = vadd.f32 %v1736, 1.0
    %v1738 = vmul.f32 %v1737, %v1177
    %v1739 = vand.u32 2147483647, %v1177
    %vm1740 = vcmp.lt.f32.partialorder %v1739, 0.0004427343
    %v1741 = vsel %vm1740, %v1738, %v1735
    %v1742 = vadd.f32 %v1179, 1.0
    %v1743 = vlog2.pop %v1742
    %v1744 = vmul.f32 %v1743, 0.6931472
    %v1745 = vmul.f32 -0.5, %v1179
    %v1746 = vadd.f32 %v1745, 1.0
    %v1747 = vmul.f32 %v1746, %v1179
    %v1748 = vand.u32 2147483647, %v1179
    %vm1749 = vcmp.lt.f32.partialorder %v1748, 0.0004427343
    %v1750 = vsel %vm1749, %v1747, %v1744
    %v1751 = vadd.f32 %v1181, 1.0
    %v1752 = vlog2.pop %v1751
    %v1753 = vmul.f32 %v1752, 0.6931472
    %v1754 = vmul.f32 -0.5, %v1181
    %v1755 = vadd.f32 %v1754, 1.0
    %v1756 = vmul.f32 %v1755, %v1181
    %v1757 = vand.u32 2147483647, %v1181
    %vm1758 = vcmp.lt.f32.partialorder %v1757, 0.0004427343
    %v1759 = vsel %vm1758, %v1756, %v1753
    %v1760 = vadd.f32 %v1183, 1.0
    %v1761 = vlog2.pop %v1760
    %v1762 = vmul.f32 %v1761, 0.6931472
    %v1763 = vmul.f32 -0.5, %v1183
    %v1764 = vadd.f32 %v1763, 1.0
    %v1765 = vmul.f32 %v1764, %v1183
    %v1766 = vand.u32 2147483647, %v1183
    %vm1767 = vcmp.lt.f32.partialorder %v1766, 0.0004427343
    %v1768 = vsel %vm1767, %v1765, %v1762
    %v1769 = vadd.f32 %v1185, 1.0
    %v1770 = vlog2.pop %v1769
    %v1771 = vmul.f32 %v1770, 0.6931472
    %v1772 = vmul.f32 -0.5, %v1185
    %v1773 = vadd.f32 %v1772, 1.0
    %v1774 = vmul.f32 %v1773, %v1185
    %v1775 = vand.u32 2147483647, %v1185
    %vm1776 = vcmp.lt.f32.partialorder %v1775, 0.0004427343
    %v1777 = vsel %vm1776, %v1774, %v1771
    %v1778 = vadd.f32 %v1187, 1.0
    %v1779 = vlog2.pop %v1778
    %v1780 = vmul.f32 %v1779, 0.6931472
    %v1781 = vmul.f32 -0.5, %v1187
    %v1782 = vadd.f32 %v1781, 1.0
    %v1783 = vmul.f32 %v1782, %v1187
    %v1784 = vand.u32 2147483647, %v1187
    %vm1785 = vcmp.lt.f32.partialorder %v1784, 0.0004427343
    %v1786 = vsel %vm1785, %v1783, %v1780
    %v1787 = vadd.f32 %v1189, 1.0
    %v1788 = vlog2.pop %v1787
    %v1789 = vmul.f32 %v1788, 0.6931472
    %v1790 = vmul.f32 -0.5, %v1189
    %v1791 = vadd.f32 %v1790, 1.0
    %v1792 = vmul.f32 %v1791, %v1189
    %v1793 = vand.u32 2147483647, %v1189
    %vm1794 = vcmp.lt.f32.partialorder %v1793, 0.0004427343
    %v1795 = vsel %vm1794, %v1792, %v1789
    %v1796 = vadd.f32 %v1191, 1.0
    %v1797 = vlog2.pop %v1796
    %v1798 = vmul.f32 %v1797, 0.6931472
    %v1799 = vmul.f32 -0.5, %v1191
    %v1800 = vadd.f32 %v1799, 1.0
    %v1801 = vmul.f32 %v1800, %v1191
    %v1802 = vand.u32 2147483647, %v1191
    %vm1803 = vcmp.lt.f32.partialorder %v1802, 0.0004427343
    %v1804 = vsel %vm1803, %v1801, %v1798
    %v1805 = vadd.f32 %v1193, 1.0
    %v1806 = vlog2.pop %v1805
    %v1807 = vmul.f32 %v1806, 0.6931472
    %v1808 = vmul.f32 -0.5, %v1193
    %v1809 = vadd.f32 %v1808, 1.0
    %v1810 = vmul.f32 %v1809, %v1193
    %v1811 = vand.u32 2147483647, %v1193
    %vm1812 = vcmp.lt.f32.partialorder %v1811, 0.0004427343
    %v1813 = vsel %vm1812, %v1810, %v1807
    %v1814 = vadd.f32 %v1195, 1.0
    %v1815 = vlog2.pop %v1814
    %v1816 = vmul.f32 %v1815, 0.6931472
    %v1817 = vmul.f32 -0.5, %v1195
    %v1818 = vadd.f32 %v1817, 1.0
    %v1819 = vmul.f32 %v1818, %v1195
    %v1820 = vand.u32 2147483647, %v1195
    %vm1821 = vcmp.lt.f32.partialorder %v1820, 0.0004427343
    %v1822 = vsel %vm1821, %v1819, %v1816
    %v1823 = vadd.f32 %v1197, 1.0
    %v1824 = vlog2.pop %v1823
    %v1825 = vmul.f32 %v1824, 0.6931472
    %v1826 = vmul.f32 -0.5, %v1197
    %v1827 = vadd.f32 %v1826, 1.0
    %v1828 = vmul.f32 %v1827, %v1197
    %v1829 = vand.u32 2147483647, %v1197
    %vm1830 = vcmp.lt.f32.partialorder %v1829, 0.0004427343
    %v1831 = vsel %vm1830, %v1828, %v1825
    %v1832 = vadd.f32 %v1199, 1.0
    %v1833 = vlog2.pop %v1832
    %v1834 = vmul.f32 %v1833, 0.6931472
    %v1835 = vmul.f32 -0.5, %v1199
    %v1836 = vadd.f32 %v1835, 1.0
    %v1837 = vmul.f32 %v1836, %v1199
    %v1838 = vand.u32 2147483647, %v1199
    %vm1839 = vcmp.lt.f32.partialorder %v1838, 0.0004427343
    %v1840 = vsel %vm1839, %v1837, %v1834
    %v1841 = vadd.f32 %v1201, 1.0
    %v1842 = vlog2.pop %v1841
    %v1843 = vmul.f32 %v1842, 0.6931472
    %v1844 = vmul.f32 -0.5, %v1201
    %v1845 = vadd.f32 %v1844, 1.0
    %v1846 = vmul.f32 %v1845, %v1201
    %v1847 = vand.u32 2147483647, %v1201
    %vm1848 = vcmp.lt.f32.partialorder %v1847, 0.0004427343
    %v1849 = vsel %vm1848, %v1846, %v1843
    %v1850 = vadd.f32 %v1203, 1.0
    %v1851 = vlog2.pop %v1850
    %v1852 = vmul.f32 %v1851, 0.6931472
    %v1853 = vmul.f32 -0.5, %v1203
    %v1854 = vadd.f32 %v1853, 1.0
    %v1855 = vmul.f32 %v1854, %v1203
    %v1856 = vand.u32 2147483647, %v1203
    %vm1857 = vcmp.lt.f32.partialorder %v1856, 0.0004427343
    %v1858 = vsel %vm1857, %v1855, %v1852
    %v1859 = vadd.f32 %v1205, 1.0
    %v1860 = vlog2.pop %v1859
    %v1861 = vmul.f32 %v1860, 0.6931472
    %v1862 = vmul.f32 -0.5, %v1205
    %v1863 = vadd.f32 %v1862, 1.0
    %v1864 = vmul.f32 %v1863, %v1205
    %v1865 = vand.u32 2147483647, %v1205
    %vm1866 = vcmp.lt.f32.partialorder %v1865, 0.0004427343
    %v1867 = vsel %vm1866, %v1864, %v1861
    %v1868 = vadd.f32 %v1207, 1.0
    %v1869 = vlog2.pop %v1868
    %v1870 = vmul.f32 %v1869, 0.6931472
    %v1871 = vmul.f32 -0.5, %v1207
    %v1872 = vadd.f32 %v1871, 1.0
    %v1873 = vmul.f32 %v1872, %v1207
    %v1874 = vand.u32 2147483647, %v1207
    %vm1875 = vcmp.lt.f32.partialorder %v1874, 0.0004427343
    %v1876 = vsel %vm1875, %v1873, %v1870
    %v1877 = vadd.f32 %v1209, 1.0
    %v1878 = vlog2.pop %v1877
    %v1879 = vmul.f32 %v1878, 0.6931472
    %v1880 = vmul.f32 -0.5, %v1209
    %v1881 = vadd.f32 %v1880, 1.0
    %v1882 = vmul.f32 %v1881, %v1209
    %v1883 = vand.u32 2147483647, %v1209
    %vm1884 = vcmp.lt.f32.partialorder %v1883, 0.0004427343
    %v1885 = vsel %vm1884, %v1882, %v1879
    %v1886 = vadd.f32 %v1211, 1.0
    %v1887 = vlog2.pop %v1886
    %v1888 = vmul.f32 %v1887, 0.6931472
    %v1889 = vmul.f32 -0.5, %v1211
    %v1890 = vadd.f32 %v1889, 1.0
    %v1891 = vmul.f32 %v1890, %v1211
    %v1892 = vand.u32 2147483647, %v1211
    %vm1893 = vcmp.lt.f32.partialorder %v1892, 0.0004427343
    %v1894 = vsel %vm1893, %v1891, %v1888
    %v1895 = vadd.f32 %v1213, 1.0
    %v1896 = vlog2.pop %v1895
    %v1897 = vmul.f32 %v1896, 0.6931472
    %v1898 = vmul.f32 -0.5, %v1213
    %v1899 = vadd.f32 %v1898, 1.0
    %v1900 = vmul.f32 %v1899, %v1213
    %v1901 = vand.u32 2147483647, %v1213
    %vm1902 = vcmp.lt.f32.partialorder %v1901, 0.0004427343
    %v1903 = vsel %vm1902, %v1900, %v1897
    %v1904 = vadd.f32 %v1215, 1.0
    %v1905 = vlog2.pop %v1904
    %v1906 = vmul.f32 %v1905, 0.6931472
    %v1907 = vmul.f32 -0.5, %v1215
    %v1908 = vadd.f32 %v1907, 1.0
    %v1909 = vmul.f32 %v1908, %v1215
    %v1910 = vand.u32 2147483647, %v1215
    %vm1911 = vcmp.lt.f32.partialorder %v1910, 0.0004427343
    %v1912 = vsel %vm1911, %v1909, %v1906
    %v1913 = vadd.f32 %v1217, 1.0
    %v1914 = vlog2.pop %v1913
    %v1915 = vmul.f32 %v1914, 0.6931472
    %v1916 = vmul.f32 -0.5, %v1217
    %v1917 = vadd.f32 %v1916, 1.0
    %v1918 = vmul.f32 %v1917, %v1217
    %v1919 = vand.u32 2147483647, %v1217
    %vm1920 = vcmp.lt.f32.partialorder %v1919, 0.0004427343
    %v1921 = vsel %vm1920, %v1918, %v1915
    %v1922 = vadd.f32 %v1219, 1.0
    %v1923 = vlog2.pop %v1922
    %v1924 = vmul.f32 %v1923, 0.6931472
    %v1925 = vmul.f32 -0.5, %v1219
    %v1926 = vadd.f32 %v1925, 1.0
    %v1927 = vmul.f32 %v1926, %v1219
    %v1928 = vand.u32 2147483647, %v1219
    %vm1929 = vcmp.lt.f32.partialorder %v1928, 0.0004427343
    %v1930 = vsel %vm1929, %v1927, %v1924
    %v1931 = vadd.f32 %v1221, 1.0
    %v1932 = vlog2.pop %v1931
    %v1933 = vmul.f32 %v1932, 0.6931472
    %v1934 = vmul.f32 -0.5, %v1221
    %v1935 = vadd.f32 %v1934, 1.0
    %v1936 = vmul.f32 %v1935, %v1221
    %v1937 = vand.u32 2147483647, %v1221
    %vm1938 = vcmp.lt.f32.partialorder %v1937, 0.0004427343
    %v1939 = vsel %vm1938, %v1936, %v1933
    %v1940 = vadd.f32 %v1223, 1.0
    %v1941 = vlog2.pop %v1940
    %v1942 = vmul.f32 %v1941, 0.6931472
    %v1943 = vmul.f32 -0.5, %v1223
    %v1944 = vadd.f32 %v1943, 1.0
    %v1945 = vmul.f32 %v1944, %v1223
    %v1946 = vand.u32 2147483647, %v1223
    %vm1947 = vcmp.lt.f32.partialorder %v1946, 0.0004427343
    %v1948 = vsel %vm1947, %v1945, %v1942
    %v1949 = vadd.f32 %v1225, 1.0
    %v1950 = vlog2.pop %v1949
    %v1951 = vmul.f32 %v1950, 0.6931472
    %v1952 = vmul.f32 -0.5, %v1225
    %v1953 = vadd.f32 %v1952, 1.0
    %v1954 = vmul.f32 %v1953, %v1225
    %v1955 = vand.u32 2147483647, %v1225
    %vm1956 = vcmp.lt.f32.partialorder %v1955, 0.0004427343
    %v1957 = vsel %vm1956, %v1954, %v1951
    %v1958 = vadd.f32 %v1227, 1.0
    %v1959 = vlog2.pop %v1958
    %v1960 = vmul.f32 %v1959, 0.6931472
    %v1961 = vmul.f32 -0.5, %v1227
    %v1962 = vadd.f32 %v1961, 1.0
    %v1963 = vmul.f32 %v1962, %v1227
    %v1964 = vand.u32 2147483647, %v1227
    %vm1965 = vcmp.lt.f32.partialorder %v1964, 0.0004427343
    %v1966 = vsel %vm1965, %v1963, %v1960
    %v1967 = vadd.f32 %v1229, 1.0
    %v1968 = vlog2.pop %v1967
    %v1969 = vmul.f32 %v1968, 0.6931472
    %v1970 = vmul.f32 -0.5, %v1229
    %v1971 = vadd.f32 %v1970, 1.0
    %v1972 = vmul.f32 %v1971, %v1229
    %v1973 = vand.u32 2147483647, %v1229
    %vm1974 = vcmp.lt.f32.partialorder %v1973, 0.0004427343
    %v1975 = vsel %vm1974, %v1972, %v1969
    %v1976 = vadd.f32 %v1231, 1.0
    %v1977 = vlog2.pop %v1976
    %v1978 = vmul.f32 %v1977, 0.6931472
    %v1979 = vmul.f32 -0.5, %v1231
    %v1980 = vadd.f32 %v1979, 1.0
    %v1981 = vmul.f32 %v1980, %v1231
    %v1982 = vand.u32 2147483647, %v1231
    %vm1983 = vcmp.lt.f32.partialorder %v1982, 0.0004427343
    %v1984 = vsel %vm1983, %v1981, %v1978
    %v1985 = vadd.f32 %v1233, 1.0
    %v1986 = vlog2.pop %v1985
    %v1987 = vmul.f32 %v1986, 0.6931472
    %v1988 = vmul.f32 -0.5, %v1233
    %v1989 = vadd.f32 %v1988, 1.0
    %v1990 = vmul.f32 %v1989, %v1233
    %v1991 = vand.u32 2147483647, %v1233
    %vm1992 = vcmp.lt.f32.partialorder %v1991, 0.0004427343
    %v1993 = vsel %vm1992, %v1990, %v1987
    %v1994 = vadd.f32 %v1235, 1.0
    %v1995 = vlog2.pop %v1994
    %v1996 = vmul.f32 %v1995, 0.6931472
    %v1997 = vmul.f32 -0.5, %v1235
    %v1998 = vadd.f32 %v1997, 1.0
    %v1999 = vmul.f32 %v1998, %v1235
    %v2000 = vand.u32 2147483647, %v1235
    %vm2001 = vcmp.lt.f32.partialorder %v2000, 0.0004427343
    %v2002 = vsel %vm2001, %v1999, %v1996
    %v2003 = vadd.f32 %v1237, 1.0
    %v2004 = vlog2.pop %v2003
    %v2005 = vmul.f32 %v2004, 0.6931472
    %v2006 = vmul.f32 -0.5, %v1237
    %v2007 = vadd.f32 %v2006, 1.0
    %v2008 = vmul.f32 %v2007, %v1237
    %v2009 = vand.u32 2147483647, %v1237
    %vm2010 = vcmp.lt.f32.partialorder %v2009, 0.0004427343
    %v2011 = vsel %vm2010, %v2008, %v2005
    %v2012 = vadd.f32 %v1239, 1.0
    %v2013 = vlog2.pop %v2012
    %v2014 = vmul.f32 %v2013, 0.6931472
    %v2015 = vmul.f32 -0.5, %v1239
    %v2016 = vadd.f32 %v2015, 1.0
    %v2017 = vmul.f32 %v2016, %v1239
    %v2018 = vand.u32 2147483647, %v1239
    %vm2019 = vcmp.lt.f32.partialorder %v2018, 0.0004427343
    %v2020 = vsel %vm2019, %v2017, %v2014
    %v2021 = vadd.f32 %v1241, 1.0
    %v2022 = vlog2.pop %v2021
    %v2023 = vmul.f32 %v2022, 0.6931472
    %v2024 = vmul.f32 -0.5, %v1241
    %v2025 = vadd.f32 %v2024, 1.0
    %v2026 = vmul.f32 %v2025, %v1241
    %v2027 = vand.u32 2147483647, %v1241
    %vm2028 = vcmp.lt.f32.partialorder %v2027, 0.0004427343
    %v2029 = vsel %vm2028, %v2026, %v2023
    %v2030 = vadd.f32 %v1243, 1.0
    %v2031 = vlog2.pop %v2030
    %v2032 = vmul.f32 %v2031, 0.6931472
    %v2033 = vmul.f32 -0.5, %v1243
    %v2034 = vadd.f32 %v2033, 1.0
    %v2035 = vmul.f32 %v2034, %v1243
    %v2036 = vand.u32 2147483647, %v1243
    %vm2037 = vcmp.lt.f32.partialorder %v2036, 0.0004427343
    %v2038 = vsel %vm2037, %v2035, %v2032
    %v2039 = vadd.f32 %v1245, 1.0
    %v2040 = vlog2.pop %v2039
    %v2041 = vmul.f32 %v2040, 0.6931472
    %v2042 = vmul.f32 -0.5, %v1245
    %v2043 = vadd.f32 %v2042, 1.0
    %v2044 = vmul.f32 %v2043, %v1245
    %v2045 = vand.u32 2147483647, %v1245
    %vm2046 = vcmp.lt.f32.partialorder %v2045, 0.0004427343
    %v2047 = vsel %vm2046, %v2044, %v2041
    %v2048 = vadd.f32 %v1247, 1.0
    %v2049 = vlog2.pop %v2048
    %v2050 = vmul.f32 %v2049, 0.6931472
    %v2051 = vmul.f32 -0.5, %v1247
    %v2052 = vadd.f32 %v2051, 1.0
    %v2053 = vmul.f32 %v2052, %v1247
    %v2054 = vand.u32 2147483647, %v1247
    %vm2055 = vcmp.lt.f32.partialorder %v2054, 0.0004427343
    %v2056 = vsel %vm2055, %v2053, %v2050
    %v2057 = vadd.f32 %v1249, 1.0
    %v2058 = vlog2.pop %v2057
    %v2059 = vmul.f32 %v2058, 0.6931472
    %v2060 = vmul.f32 -0.5, %v1249
    %v2061 = vadd.f32 %v2060, 1.0
    %v2062 = vmul.f32 %v2061, %v1249
    %v2063 = vand.u32 2147483647, %v1249
    %vm2064 = vcmp.lt.f32.partialorder %v2063, 0.0004427343
    %v2065 = vsel %vm2064, %v2062, %v2059
    %v2066 = vadd.f32 %v1251, 1.0
    %v2067 = vlog2.pop %v2066
    %v2068 = vmul.f32 %v2067, 0.6931472
    %v2069 = vmul.f32 -0.5, %v1251
    %v2070 = vadd.f32 %v2069, 1.0
    %v2071 = vmul.f32 %v2070, %v1251
    %v2072 = vand.u32 2147483647, %v1251
    %vm2073 = vcmp.lt.f32.partialorder %v2072, 0.0004427343
    %v2074 = vsel %vm2073, %v2071, %v2068
    %v2075 = vadd.f32 %v1253, 1.0
    %v2076 = vlog2.pop %v2075
    %v2077 = vmul.f32 %v2076, 0.6931472
    %v2078 = vmul.f32 -0.5, %v1253
    %v2079 = vadd.f32 %v2078, 1.0
    %v2080 = vmul.f32 %v2079, %v1253
    %v2081 = vand.u32 2147483647, %v1253
    %vm2082 = vcmp.lt.f32.partialorder %v2081, 0.0004427343
    %v2083 = vsel %vm2082, %v2080, %v2077
    %v2084 = vadd.f32 %v1255, 1.0
    %v2085 = vlog2.pop %v2084
    %v2086 = vmul.f32 %v2085, 0.6931472
    %v2087 = vmul.f32 -0.5, %v1255
    %v2088 = vadd.f32 %v2087, 1.0
    %v2089 = vmul.f32 %v2088, %v1255
    %v2090 = vand.u32 2147483647, %v1255
    %vm2091 = vcmp.lt.f32.partialorder %v2090, 0.0004427343
    %v2092 = vsel %vm2091, %v2089, %v2086
    %v2093 = vadd.f32 %v1257, 1.0
    %v2094 = vlog2.pop %v2093
    %v2095 = vmul.f32 %v2094, 0.6931472
    %v2096 = vmul.f32 -0.5, %v1257
    %v2097 = vadd.f32 %v2096, 1.0
    %v2098 = vmul.f32 %v2097, %v1257
    %v2099 = vand.u32 2147483647, %v1257
    %vm2100 = vcmp.lt.f32.partialorder %v2099, 0.0004427343
    %v2101 = vsel %vm2100, %v2098, %v2095
    %v2102 = vadd.f32 %v1259, 1.0
    %v2103 = vlog2.pop %v2102
    %v2104 = vmul.f32 %v2103, 0.6931472
    %v2105 = vmul.f32 -0.5, %v1259
    %v2106 = vadd.f32 %v2105, 1.0
    %v2107 = vmul.f32 %v2106, %v1259
    %v2108 = vand.u32 2147483647, %v1259
    %vm2109 = vcmp.lt.f32.partialorder %v2108, 0.0004427343
    %v2110 = vsel %vm2109, %v2107, %v2104
    %v2111 = vadd.f32 %v1261, 1.0
    %v2112 = vlog2.pop %v2111
    %v2113 = vmul.f32 %v2112, 0.6931472
    %v2114 = vmul.f32 -0.5, %v1261
    %v2115 = vadd.f32 %v2114, 1.0
    %v2116 = vmul.f32 %v2115, %v1261
    %v2117 = vand.u32 2147483647, %v1261
    %vm2118 = vcmp.lt.f32.partialorder %v2117, 0.0004427343
    %v2119 = vsel %vm2118, %v2116, %v2113
    %v2120 = vadd.f32 %v1263, 1.0
    %v2121 = vlog2.pop %v2120
    %v2122 = vmul.f32 %v2121, 0.6931472
    %v2123 = vmul.f32 -0.5, %v1263
    %v2124 = vadd.f32 %v2123, 1.0
    %v2125 = vmul.f32 %v2124, %v1263
    %v2126 = vand.u32 2147483647, %v1263
    %vm2127 = vcmp.lt.f32.partialorder %v2126, 0.0004427343
    %v2128 = vsel %vm2127, %v2125, %v2122
    %v2129 = vadd.f32 %v1265, 1.0
    %v2130 = vlog2.pop %v2129
    %v2131 = vmul.f32 %v2130, 0.6931472
    %v2132 = vmul.f32 -0.5, %v1265
    %v2133 = vadd.f32 %v2132, 1.0
    %v2134 = vmul.f32 %v2133, %v1265
    %v2135 = vand.u32 2147483647, %v1265
    %vm2136 = vcmp.lt.f32.partialorder %v2135, 0.0004427343
    %v2137 = vsel %vm2136, %v2134, %v2131
    %v2138 = vadd.f32 %v1267, 1.0
    %v2139 = vlog2.pop %v2138
    %v2140 = vmul.f32 %v2139, 0.6931472
    %v2141 = vmul.f32 -0.5, %v1267
    %v2142 = vadd.f32 %v2141, 1.0
    %v2143 = vmul.f32 %v2142, %v1267
    %v2144 = vand.u32 2147483647, %v1267
    %vm2145 = vcmp.lt.f32.partialorder %v2144, 0.0004427343
    %v2146 = vsel %vm2145, %v2143, %v2140
    %v2147 = vadd.f32 %v1269, 1.0
    %v2148 = vlog2.pop %v2147
    %v2149 = vmul.f32 %v2148, 0.6931472
    %v2150 = vmul.f32 -0.5, %v1269
    %v2151 = vadd.f32 %v2150, 1.0
    %v2152 = vmul.f32 %v2151, %v1269
    %v2153 = vand.u32 2147483647, %v1269
    %vm2154 = vcmp.lt.f32.partialorder %v2153, 0.0004427343
    %v2155 = vsel %vm2154, %v2152, %v2149
    %v2156 = vadd.f32 %v1271, 1.0
    %v2157 = vlog2.pop %v2156
    %v2158 = vmul.f32 %v2157, 0.6931472
    %v2159 = vmul.f32 -0.5, %v1271
    %v2160 = vadd.f32 %v2159, 1.0
    %v2161 = vmul.f32 %v2160, %v1271
    %v2162 = vand.u32 2147483647, %v1271
    %vm2163 = vcmp.lt.f32.partialorder %v2162, 0.0004427343
    %v2164 = vsel %vm2163, %v2161, %v2158
    %v2165 = vadd.f32 %v1273, 1.0
    %v2166 = vlog2.pop %v2165
    %v2167 = vmul.f32 %v2166, 0.6931472
    %v2168 = vmul.f32 -0.5, %v1273
    %v2169 = vadd.f32 %v2168, 1.0
    %v2170 = vmul.f32 %v2169, %v1273
    %v2171 = vand.u32 2147483647, %v1273
    %vm2172 = vcmp.lt.f32.partialorder %v2171, 0.0004427343
    %v2173 = vsel %vm2172, %v2170, %v2167
    %v2174 = vadd.f32 %v1275, 1.0
    %v2175 = vlog2.pop %v2174
    %v2176 = vmul.f32 %v2175, 0.6931472
    %v2177 = vmul.f32 -0.5, %v1275
    %v2178 = vadd.f32 %v2177, 1.0
    %v2179 = vmul.f32 %v2178, %v1275
    %v2180 = vand.u32 2147483647, %v1275
    %vm2181 = vcmp.lt.f32.partialorder %v2180, 0.0004427343
    %v2182 = vsel %vm2181, %v2179, %v2176
    %v2183 = vadd.f32 %v1277, 1.0
    %v2184 = vlog2.pop %v2183
    %v2185 = vmul.f32 %v2184, 0.6931472
    %v2186 = vmul.f32 -0.5, %v1277
    %v2187 = vadd.f32 %v2186, 1.0
    %v2188 = vmul.f32 %v2187, %v1277
    %v2189 = vand.u32 2147483647, %v1277
    %vm2190 = vcmp.lt.f32.partialorder %v2189, 0.0004427343
    %v2191 = vsel %vm2190, %v2188, %v2185
    %v2192 = vadd.f32 %v1279, 1.0
    %v2193 = vlog2.pop %v2192
    %v2194 = vmul.f32 %v2193, 0.6931472
    %v2195 = vmul.f32 -0.5, %v1279
    %v2196 = vadd.f32 %v2195, 1.0
    %v2197 = vmul.f32 %v2196, %v1279
    %v2198 = vand.u32 2147483647, %v1279
    %vm2199 = vcmp.lt.f32.partialorder %v2198, 0.0004427343
    %v2200 = vsel %vm2199, %v2197, %v2194
    %v2201 = vadd.f32 %v1281, 1.0
    %v2202 = vlog2.pop %v2201
    %v2203 = vmul.f32 %v2202, 0.6931472
    %v2204 = vmul.f32 -0.5, %v1281
    %v2205 = vadd.f32 %v2204, 1.0
    %v2206 = vmul.f32 %v2205, %v1281
    %v2207 = vand.u32 2147483647, %v1281
    %vm2208 = vcmp.lt.f32.partialorder %v2207, 0.0004427343
    %v2209 = vsel %vm2208, %v2206, %v2203
    %v2210 = vadd.f32 %v1283, 1.0
    %v2211 = vlog2.pop %v2210
    %v2212 = vmul.f32 %v2211, 0.6931472
    %v2213 = vmul.f32 -0.5, %v1283
    %v2214 = vadd.f32 %v2213, 1.0
    %v2215 = vmul.f32 %v2214, %v1283
    %v2216 = vand.u32 2147483647, %v1283
    %vm2217 = vcmp.lt.f32.partialorder %v2216, 0.0004427343
    %v2218 = vsel %vm2217, %v2215, %v2212
    %v2219 = vadd.f32 %v1285, 1.0
    %v2220 = vlog2.pop %v2219
    %v2221 = vmul.f32 %v2220, 0.6931472
    %v2222 = vmul.f32 -0.5, %v1285
    %v2223 = vadd.f32 %v2222, 1.0
    %v2224 = vmul.f32 %v2223, %v1285
    %v2225 = vand.u32 2147483647, %v1285
    %vm2226 = vcmp.lt.f32.partialorder %v2225, 0.0004427343
    %v2227 = vsel %vm2226, %v2224, %v2221
    %v2228 = vadd.f32 %v1287, 1.0
    %v2229 = vlog2.pop %v2228
    %v2230 = vmul.f32 %v2229, 0.6931472
    %v2231 = vmul.f32 -0.5, %v1287
    %v2232 = vadd.f32 %v2231, 1.0
    %v2233 = vmul.f32 %v2232, %v1287
    %v2234 = vand.u32 2147483647, %v1287
    %vm2235 = vcmp.lt.f32.partialorder %v2234, 0.0004427343
    %v2236 = vsel %vm2235, %v2233, %v2230
    %v2237 = vadd.f32 %v1289, 1.0
    %v2238 = vlog2.pop %v2237
    %v2239 = vmul.f32 %v2238, 0.6931472
    %v2240 = vmul.f32 -0.5, %v1289
    %v2241 = vadd.f32 %v2240, 1.0
    %v2242 = vmul.f32 %v2241, %v1289
    %v2243 = vand.u32 2147483647, %v1289
    %vm2244 = vcmp.lt.f32.partialorder %v2243, 0.0004427343
    %v2245 = vsel %vm2244, %v2242, %v2239
    %v2246 = vadd.f32 %v1291, 1.0
    %v2247 = vlog2.pop %v2246
    %v2248 = vmul.f32 %v2247, 0.6931472
    %v2249 = vmul.f32 -0.5, %v1291
    %v2250 = vadd.f32 %v2249, 1.0
    %v2251 = vmul.f32 %v2250, %v1291
    %v2252 = vand.u32 2147483647, %v1291
    %vm2253 = vcmp.lt.f32.partialorder %v2252, 0.0004427343
    %v2254 = vsel %vm2253, %v2251, %v2248
    %v2255 = vadd.f32 %v1293, 1.0
    %v2256 = vlog2.pop %v2255
    %v2257 = vmul.f32 %v2256, 0.6931472
    %v2258 = vmul.f32 -0.5, %v1293
    %v2259 = vadd.f32 %v2258, 1.0
    %v2260 = vmul.f32 %v2259, %v1293
    %v2261 = vand.u32 2147483647, %v1293
    %vm2262 = vcmp.lt.f32.partialorder %v2261, 0.0004427343
    %v2263 = vsel %vm2262, %v2260, %v2257
    %v2264 = vadd.f32 %v1295, 1.0
    %v2265 = vlog2.pop %v2264
    %v2266 = vmul.f32 %v2265, 0.6931472
    %v2267 = vmul.f32 -0.5, %v1295
    %v2268 = vadd.f32 %v2267, 1.0
    %v2269 = vmul.f32 %v2268, %v1295
    %v2270 = vand.u32 2147483647, %v1295
    %vm2271 = vcmp.lt.f32.partialorder %v2270, 0.0004427343
    %v2272 = vsel %vm2271, %v2269, %v2266
    %v2273 = vadd.f32 %v1297, 1.0
    %v2274 = vlog2.pop %v2273
    %v2275 = vmul.f32 %v2274, 0.6931472
    %v2276 = vmul.f32 -0.5, %v1297
    %v2277 = vadd.f32 %v2276, 1.0
    %v2278 = vmul.f32 %v2277, %v1297
    %v2279 = vand.u32 2147483647, %v1297
    %vm2280 = vcmp.lt.f32.partialorder %v2279, 0.0004427343
    %v2281 = vsel %vm2280, %v2278, %v2275
    %v2282 = vadd.f32 %v1299, 1.0
    %v2283 = vlog2.pop %v2282
    %v2284 = vmul.f32 %v2283, 0.6931472
    %v2285 = vmul.f32 -0.5, %v1299
    %v2286 = vadd.f32 %v2285, 1.0
    %v2287 = vmul.f32 %v2286, %v1299
    %v2288 = vand.u32 2147483647, %v1299
    %vm2289 = vcmp.lt.f32.partialorder %v2288, 0.0004427343
    %v2290 = vsel %vm2289, %v2287, %v2284
    %v2291 = vadd.f32 %v1301, 1.0
    %v2292 = vlog2.pop %v2291
    %v2293 = vmul.f32 %v2292, 0.6931472
    %v2294 = vmul.f32 -0.5, %v1301
    %v2295 = vadd.f32 %v2294, 1.0
    %v2296 = vmul.f32 %v2295, %v1301
    %v2297 = vand.u32 2147483647, %v1301
    %vm2298 = vcmp.lt.f32.partialorder %v2297, 0.0004427343
    %v2299 = vsel %vm2298, %v2296, %v2293
    %v2300 = vadd.f32 %v1303, 1.0
    %v2301 = vlog2.pop %v2300
    %v2302 = vmul.f32 %v2301, 0.6931472
    %v2303 = vmul.f32 -0.5, %v1303
    %v2304 = vadd.f32 %v2303, 1.0
    %v2305 = vmul.f32 %v2304, %v1303
    %v2306 = vand.u32 2147483647, %v1303
    %vm2307 = vcmp.lt.f32.partialorder %v2306, 0.0004427343
    %v2308 = vsel %vm2307, %v2305, %v2302
    %v2309 = vadd.f32 %v1305, 1.0
    %v2310 = vlog2.pop %v2309
    %v2311 = vmul.f32 %v2310, 0.6931472
    %v2312 = vmul.f32 -0.5, %v1305
    %v2313 = vadd.f32 %v2312, 1.0
    %v2314 = vmul.f32 %v2313, %v1305
    %v2315 = vand.u32 2147483647, %v1305
    %vm2316 = vcmp.lt.f32.partialorder %v2315, 0.0004427343
    %v2317 = vsel %vm2316, %v2314, %v2311
    %v2318 = vadd.f32 %v1307, 1.0
    %v2319 = vlog2.pop %v2318
    %v2320 = vmul.f32 %v2319, 0.6931472
    %v2321 = vmul.f32 -0.5, %v1307
    %v2322 = vadd.f32 %v2321, 1.0
    %v2323 = vmul.f32 %v2322, %v1307
    %v2324 = vand.u32 2147483647, %v1307
    %vm2325 = vcmp.lt.f32.partialorder %v2324, 0.0004427343
    %v2326 = vsel %vm2325, %v2323, %v2320
    %v2327 = vadd.f32 %v1309, 1.0
    %v2328 = vlog2.pop %v2327
    %v2329 = vmul.f32 %v2328, 0.6931472
    %v2330 = vmul.f32 -0.5, %v1309
    %v2331 = vadd.f32 %v2330, 1.0
    %v2332 = vmul.f32 %v2331, %v1309
    %v2333 = vand.u32 2147483647, %v1309
    %vm2334 = vcmp.lt.f32.partialorder %v2333, 0.0004427343
    %v2335 = vsel %vm2334, %v2332, %v2329
    %v2336 = vadd.f32 %v1311, 1.0
    %v2337 = vlog2.pop %v2336
    %v2338 = vmul.f32 %v2337, 0.6931472
    %v2339 = vmul.f32 -0.5, %v1311
    %v2340 = vadd.f32 %v2339, 1.0
    %v2341 = vmul.f32 %v2340, %v1311
    %v2342 = vand.u32 2147483647, %v1311
    %vm2343 = vcmp.lt.f32.partialorder %v2342, 0.0004427343
    %v2344 = vsel %vm2343, %v2341, %v2338
    %v2345 = vadd.f32 %v1313, 1.0
    %v2346 = vlog2.pop %v2345
    %v2347 = vmul.f32 %v2346, 0.6931472
    %v2348 = vmul.f32 -0.5, %v1313
    %v2349 = vadd.f32 %v2348, 1.0
    %v2350 = vmul.f32 %v2349, %v1313
    %v2351 = vand.u32 2147483647, %v1313
    %vm2352 = vcmp.lt.f32.partialorder %v2351, 0.0004427343
    %v2353 = vsel %vm2352, %v2350, %v2347
    %v2354 = vadd.f32 %v1315, 1.0
    %v2355 = vlog2.pop %v2354
    %v2356 = vmul.f32 %v2355, 0.6931472
    %v2357 = vmul.f32 -0.5, %v1315
    %v2358 = vadd.f32 %v2357, 1.0
    %v2359 = vmul.f32 %v2358, %v1315
    %v2360 = vand.u32 2147483647, %v1315
    %vm2361 = vcmp.lt.f32.partialorder %v2360, 0.0004427343
    %v2362 = vsel %vm2361, %v2359, %v2356
    %v2363 = vadd.f32 %v1317, 1.0
    %v2364 = vlog2.pop %v2363
    %v2365 = vmul.f32 %v2364, 0.6931472
    %v2366 = vmul.f32 -0.5, %v1317
    %v2367 = vadd.f32 %v2366, 1.0
    %v2368 = vmul.f32 %v2367, %v1317
    %v2369 = vand.u32 2147483647, %v1317
    %vm2370 = vcmp.lt.f32.partialorder %v2369, 0.0004427343
    %v2371 = vsel %vm2370, %v2368, %v2365
    %v2372 = vadd.f32 %v1319, 1.0
    %v2373 = vlog2.pop %v2372
    %v2374 = vmul.f32 %v2373, 0.6931472
    %v2375 = vmul.f32 -0.5, %v1319
    %v2376 = vadd.f32 %v2375, 1.0
    %v2377 = vmul.f32 %v2376, %v1319
    %v2378 = vand.u32 2147483647, %v1319
    %vm2379 = vcmp.lt.f32.partialorder %v2378, 0.0004427343
    %v2380 = vsel %vm2379, %v2377, %v2374
    %v2381 = vadd.f32 %v1321, 1.0
    %v2382 = vlog2.pop %v2381
    %v2383 = vmul.f32 %v2382, 0.6931472
    %v2384 = vmul.f32 -0.5, %v1321
    %v2385 = vadd.f32 %v2384, 1.0
    %v2386 = vmul.f32 %v2385, %v1321
    %v2387 = vand.u32 2147483647, %v1321
    %vm2388 = vcmp.lt.f32.partialorder %v2387, 0.0004427343
    %v2389 = vsel %vm2388, %v2386, %v2383
    %v2390 = vadd.f32 %v1323, 1.0
    %v2391 = vlog2.pop %v2390
    %v2392 = vmul.f32 %v2391, 0.6931472
    %v2393 = vmul.f32 -0.5, %v1323
    %v2394 = vadd.f32 %v2393, 1.0
    %v2395 = vmul.f32 %v2394, %v1323
    %v2396 = vand.u32 2147483647, %v1323
    %vm2397 = vcmp.lt.f32.partialorder %v2396, 0.0004427343
    %v2398 = vsel %vm2397, %v2395, %v2392
    %v2399 = vadd.f32 %v1325, 1.0
    %v2400 = vlog2.pop %v2399
    %v2401 = vmul.f32 %v2400, 0.6931472
    %v2402 = vmul.f32 -0.5, %v1325
    %v2403 = vadd.f32 %v2402, 1.0
    %v2404 = vmul.f32 %v2403, %v1325
    %v2405 = vand.u32 2147483647, %v1325
    %vm2406 = vcmp.lt.f32.partialorder %v2405, 0.0004427343
    %v2407 = vsel %vm2406, %v2404, %v2401
    %v2408 = vadd.f32 %v1327, 1.0
    %v2409 = vlog2.pop %v2408
    %v2410 = vmul.f32 %v2409, 0.6931472
    %v2411 = vmul.f32 -0.5, %v1327
    %v2412 = vadd.f32 %v2411, 1.0
    %v2413 = vmul.f32 %v2412, %v1327
    %v2414 = vand.u32 2147483647, %v1327
    %vm2415 = vcmp.lt.f32.partialorder %v2414, 0.0004427343
    %v2416 = vsel %vm2415, %v2413, %v2410
    %v2417 = vadd.f32 %v1329, 1.0
    %v2418 = vlog2.pop %v2417
    %v2419 = vmul.f32 %v2418, 0.6931472
    %v2420 = vmul.f32 -0.5, %v1329
    %v2421 = vadd.f32 %v2420, 1.0
    %v2422 = vmul.f32 %v2421, %v1329
    %v2423 = vand.u32 2147483647, %v1329
    %vm2424 = vcmp.lt.f32.partialorder %v2423, 0.0004427343
    %v2425 = vsel %vm2424, %v2422, %v2419
    %v2426 = vadd.f32 %v1331, 1.0
    %v2427 = vlog2.pop %v2426
    %v2428 = vmul.f32 %v2427, 0.6931472
    %v2429 = vmul.f32 -0.5, %v1331
    %v2430 = vadd.f32 %v2429, 1.0
    %v2431 = vmul.f32 %v2430, %v1331
    %v2432 = vand.u32 2147483647, %v1331
    %vm2433 = vcmp.lt.f32.partialorder %v2432, 0.0004427343
    %v2434 = vsel %vm2433, %v2431, %v2428
    %v2435 = vadd.f32 %v1333, 1.0
    %v2436 = vlog2.pop %v2435
    %v2437 = vmul.f32 %v2436, 0.6931472
    %v2438 = vmul.f32 -0.5, %v1333
    %v2439 = vadd.f32 %v2438, 1.0
    %v2440 = vmul.f32 %v2439, %v1333
    %v2441 = vand.u32 2147483647, %v1333
    %vm2442 = vcmp.lt.f32.partialorder %v2441, 0.0004427343
    %v2443 = vsel %vm2442, %v2440, %v2437
    %v2444 = vadd.f32 %v1335, 1.0
    %v2445 = vlog2.pop %v2444
    %v2446 = vmul.f32 %v2445, 0.6931472
    %v2447 = vmul.f32 -0.5, %v1335
    %v2448 = vadd.f32 %v2447, 1.0
    %v2449 = vmul.f32 %v2448, %v1335
    %v2450 = vand.u32 2147483647, %v1335
    %vm2451 = vcmp.lt.f32.partialorder %v2450, 0.0004427343
    %v2452 = vsel %vm2451, %v2449, %v2446
    %v2453 = vadd.f32 %v1337, 1.0
    %v2454 = vlog2.pop %v2453
    %v2455 = vmul.f32 %v2454, 0.6931472
    %v2456 = vmul.f32 -0.5, %v1337
    %v2457 = vadd.f32 %v2456, 1.0
    %v2458 = vmul.f32 %v2457, %v1337
    %v2459 = vand.u32 2147483647, %v1337
    %vm2460 = vcmp.lt.f32.partialorder %v2459, 0.0004427343
    %v2461 = vsel %vm2460, %v2458, %v2455
    %v2462 = vadd.f32 %v1339, 1.0
    %v2463 = vlog2.pop %v2462
    %v2464 = vmul.f32 %v2463, 0.6931472
    %v2465 = vmul.f32 -0.5, %v1339
    %v2466 = vadd.f32 %v2465, 1.0
    %v2467 = vmul.f32 %v2466, %v1339
    %v2468 = vand.u32 2147483647, %v1339
    %vm2469 = vcmp.lt.f32.partialorder %v2468, 0.0004427343
    %v2470 = vsel %vm2469, %v2467, %v2464
    %v2471 = vadd.f32 %v1341, 1.0
    %v2472 = vlog2.pop %v2471
    %v2473 = vmul.f32 %v2472, 0.6931472
    %v2474 = vmul.f32 -0.5, %v1341
    %v2475 = vadd.f32 %v2474, 1.0
    %v2476 = vmul.f32 %v2475, %v1341
    %v2477 = vand.u32 2147483647, %v1341
    %vm2478 = vcmp.lt.f32.partialorder %v2477, 0.0004427343
    %v2479 = vsel %vm2478, %v2476, %v2473
    %v2480 = vadd.f32 %v1343, 1.0
    %v2481 = vlog2.pop %v2480
    %v2482 = vmul.f32 %v2481, 0.6931472
    %v2483 = vmul.f32 -0.5, %v1343
    %v2484 = vadd.f32 %v2483, 1.0
    %v2485 = vmul.f32 %v2484, %v1343
    %v2486 = vand.u32 2147483647, %v1343
    %vm2487 = vcmp.lt.f32.partialorder %v2486, 0.0004427343
    %v2488 = vsel %vm2487, %v2485, %v2482
    %v2489 = vadd.f32 %v1345, 1.0
    %v2490 = vlog2.pop %v2489
    %v2491 = vmul.f32 %v2490, 0.6931472
    %v2492 = vmul.f32 -0.5, %v1345
    %v2493 = vadd.f32 %v2492, 1.0
    %v2494 = vmul.f32 %v2493, %v1345
    %v2495 = vand.u32 2147483647, %v1345
    %vm2496 = vcmp.lt.f32.partialorder %v2495, 0.0004427343
    %v2497 = vsel %vm2496, %v2494, %v2491
    %v2498 = vsub.f32 0.0, %v43
    %v2499 = vsub.f32 0.0, %v44
    %v2500 = vsub.f32 0.0, %v45
    %v2501 = vsub.f32 0.0, %v46
    %v2502 = vsub.f32 0.0, %v47
    %v2503 = vsub.f32 0.0, %v48
    %v2504 = vsub.f32 0.0, %v49
    %v2505 = vsub.f32 0.0, %v50
    %v2506 = vsub.f32 0.0, %v51
    %v2507 = vsub.f32 0.0, %v52
    %v2508 = vsub.f32 0.0, %v53
    %v2509 = vsub.f32 0.0, %v54
    %v2510 = vsub.f32 0.0, %v55
    %v2511 = vsub.f32 0.0, %v56
    %v2512 = vsub.f32 0.0, %v57
    %v2513 = vsub.f32 0.0, %v58
    %v2514 = vsub.f32 0.0, %v59
    %v2515 = vsub.f32 0.0, %v60
    %v2516 = vsub.f32 0.0, %v61
    %v2517 = vsub.f32 0.0, %v62
    %v2518 = vsub.f32 0.0, %v63
    %v2519 = vsub.f32 0.0, %v64
    %v2520 = vsub.f32 0.0, %v65
    %v2521 = vsub.f32 0.0, %v66
    %v2522 = vsub.f32 0.0, %v67
    %v2523 = vsub.f32 0.0, %v68
    %v2524 = vsub.f32 0.0, %v69
    %v2525 = vsub.f32 0.0, %v70
    %v2526 = vsub.f32 0.0, %v71
    %v2527 = vsub.f32 0.0, %v72
    %v2528 = vsub.f32 0.0, %v73
    %v2529 = vsub.f32 0.0, %v74
    %v2530 = vsub.f32 0.0, %v75
    %v2531 = vsub.f32 0.0, %v76
    %v2532 = vsub.f32 0.0, %v77
    %v2533 = vsub.f32 0.0, %v78
    %v2534 = vsub.f32 0.0, %v79
    %v2535 = vsub.f32 0.0, %v80
    %v2536 = vsub.f32 0.0, %v81
    %v2537 = vsub.f32 0.0, %v82
    %v2538 = vsub.f32 0.0, %v83
    %v2539 = vsub.f32 0.0, %v84
    %v2540 = vsub.f32 0.0, %v85
    %v2541 = vsub.f32 0.0, %v86
    %v2542 = vsub.f32 0.0, %v87
    %v2543 = vsub.f32 0.0, %v88
    %v2544 = vsub.f32 0.0, %v89
    %v2545 = vsub.f32 0.0, %v90
    %v2546 = vsub.f32 0.0, %v91
    %v2547 = vsub.f32 0.0, %v92
    %v2548 = vsub.f32 0.0, %v93
    %v2549 = vsub.f32 0.0, %v94
    %v2550 = vsub.f32 0.0, %v95
    %v2551 = vsub.f32 0.0, %v96
    %v2552 = vsub.f32 0.0, %v97
    %v2553 = vsub.f32 0.0, %v98
    %v2554 = vsub.f32 0.0, %v99
    %v2555 = vsub.f32 0.0, %v100
    %v2556 = vsub.f32 0.0, %v101
    %v2557 = vsub.f32 0.0, %v102
    %v2558 = vsub.f32 0.0, %v103
    %v2559 = vsub.f32 0.0, %v104
    %v2560 = vsub.f32 0.0, %v105
    %v2561 = vsub.f32 0.0, %v106
    %v2562 = vsub.f32 0.0, %v107
    %v2563 = vsub.f32 0.0, %v108
    %v2564 = vsub.f32 0.0, %v109
    %v2565 = vsub.f32 0.0, %v110
    %v2566 = vsub.f32 0.0, %v111
    %v2567 = vsub.f32 0.0, %v112
    %v2568 = vsub.f32 0.0, %v113
    %v2569 = vsub.f32 0.0, %v114
    %v2570 = vsub.f32 0.0, %v115
    %v2571 = vsub.f32 0.0, %v116
    %v2572 = vsub.f32 0.0, %v117
    %v2573 = vsub.f32 0.0, %v118
    %v2574 = vsub.f32 0.0, %v119
    %v2575 = vsub.f32 0.0, %v120
    %v2576 = vsub.f32 0.0, %v121
    %v2577 = vsub.f32 0.0, %v122
    %v2578 = vsub.f32 0.0, %v123
    %v2579 = vsub.f32 0.0, %v124
    %v2580 = vsub.f32 0.0, %v125
    %v2581 = vsub.f32 0.0, %v126
    %v2582 = vsub.f32 0.0, %v127
    %v2583 = vsub.f32 0.0, %v128
    %v2584 = vsub.f32 0.0, %v129
    %v2585 = vsub.f32 0.0, %v130
    %v2586 = vsub.f32 0.0, %v131
    %v2587 = vsub.f32 0.0, %v132
    %v2588 = vsub.f32 0.0, %v133
    %v2589 = vsub.f32 0.0, %v134
    %v2590 = vsub.f32 0.0, %v135
    %v2591 = vsub.f32 0.0, %v136
    %v2592 = vsub.f32 0.0, %v137
    %v2593 = vsub.f32 0.0, %v138
    %v2594 = vsub.f32 0.0, %v139
    %v2595 = vsub.f32 0.0, %v140
    %v2596 = vsub.f32 0.0, %v141
    %v2597 = vsub.f32 0.0, %v142
    %v2598 = vsub.f32 0.0, %v143
    %v2599 = vsub.f32 0.0, %v144
    %v2600 = vsub.f32 0.0, %v145
    %v2601 = vsub.f32 0.0, %v146
    %v2602 = vsub.f32 0.0, %v147
    %v2603 = vsub.f32 0.0, %v148
    %v2604 = vsub.f32 0.0, %v149
    %v2605 = vsub.f32 0.0, %v150
    %v2606 = vsub.f32 0.0, %v151
    %v2607 = vsub.f32 0.0, %v152
    %v2608 = vsub.f32 0.0, %v153
    %v2609 = vsub.f32 0.0, %v154
    %v2610 = vsub.f32 0.0, %v155
    %v2611 = vsub.f32 0.0, %v156
    %v2612 = vsub.f32 0.0, %v157
    %v2613 = vsub.f32 0.0, %v158
    %v2614 = vsub.f32 0.0, %v159
    %v2615 = vsub.f32 0.0, %v160
    %v2616 = vsub.f32 0.0, %v161
    %v2617 = vsub.f32 0.0, %v162
    %v2618 = vsub.f32 0.0, %v163
    %v2619 = vsub.f32 0.0, %v164
    %v2620 = vsub.f32 0.0, %v165
    %v2621 = vsub.f32 0.0, %v166
    %v2622 = vsub.f32 0.0, %v167
    %v2623 = vsub.f32 0.0, %v168
    %v2624 = vsub.f32 0.0, %v169
    %v2625 = vsub.f32 0.0, %v170
    %v2626 = vmax.f32 %v2498, 0.0
    %v2627 = vmax.f32 %v2499, 0.0
    %v2628 = vmax.f32 %v2500, 0.0
    %v2629 = vmax.f32 %v2501, 0.0
    %v2630 = vmax.f32 %v2502, 0.0
    %v2631 = vmax.f32 %v2503, 0.0
    %v2632 = vmax.f32 %v2504, 0.0
    %v2633 = vmax.f32 %v2505, 0.0
    %v2634 = vmax.f32 %v2506, 0.0
    %v2635 = vmax.f32 %v2507, 0.0
    %v2636 = vmax.f32 %v2508, 0.0
    %v2637 = vmax.f32 %v2509, 0.0
    %v2638 = vmax.f32 %v2510, 0.0
    %v2639 = vmax.f32 %v2511, 0.0
    %v2640 = vmax.f32 %v2512, 0.0
    %v2641 = vmax.f32 %v2513, 0.0
    %v2642 = vmax.f32 %v2514, 0.0
    %v2643 = vmax.f32 %v2515, 0.0
    %v2644 = vmax.f32 %v2516, 0.0
    %v2645 = vmax.f32 %v2517, 0.0
    %v2646 = vmax.f32 %v2518, 0.0
    %v2647 = vmax.f32 %v2519, 0.0
    %v2648 = vmax.f32 %v2520, 0.0
    %v2649 = vmax.f32 %v2521, 0.0
    %v2650 = vmax.f32 %v2522, 0.0
    %v2651 = vmax.f32 %v2523, 0.0
    %v2652 = vmax.f32 %v2524, 0.0
    %v2653 = vmax.f32 %v2525, 0.0
    %v2654 = vmax.f32 %v2526, 0.0
    %v2655 = vmax.f32 %v2527, 0.0
    %v2656 = vmax.f32 %v2528, 0.0
    %v2657 = vmax.f32 %v2529, 0.0
    %v2658 = vmax.f32 %v2530, 0.0
    %v2659 = vmax.f32 %v2531, 0.0
    %v2660 = vmax.f32 %v2532, 0.0
    %v2661 = vmax.f32 %v2533, 0.0
    %v2662 = vmax.f32 %v2534, 0.0
    %v2663 = vmax.f32 %v2535, 0.0
    %v2664 = vmax.f32 %v2536, 0.0
    %v2665 = vmax.f32 %v2537, 0.0
    %v2666 = vmax.f32 %v2538, 0.0
    %v2667 = vmax.f32 %v2539, 0.0
    %v2668 = vmax.f32 %v2540, 0.0
    %v2669 = vmax.f32 %v2541, 0.0
    %v2670 = vmax.f32 %v2542, 0.0
    %v2671 = vmax.f32 %v2543, 0.0
    %v2672 = vmax.f32 %v2544, 0.0
    %v2673 = vmax.f32 %v2545, 0.0
    %v2674 = vmax.f32 %v2546, 0.0
    %v2675 = vmax.f32 %v2547, 0.0
    %v2676 = vmax.f32 %v2548, 0.0
    %v2677 = vmax.f32 %v2549, 0.0
    %v2678 = vmax.f32 %v2550, 0.0
    %v2679 = vmax.f32 %v2551, 0.0
    %v2680 = vmax.f32 %v2552, 0.0
    %v2681 = vmax.f32 %v2553, 0.0
    %v2682 = vmax.f32 %v2554, 0.0
    %v2683 = vmax.f32 %v2555, 0.0
    %v2684 = vmax.f32 %v2556, 0.0
    %v2685 = vmax.f32 %v2557, 0.0
    %v2686 = vmax.f32 %v2558, 0.0
    %v2687 = vmax.f32 %v2559, 0.0
    %v2688 = vmax.f32 %v2560, 0.0
    %v2689 = vmax.f32 %v2561, 0.0
    %v2690 = vmax.f32 %v2562, 0.0
    %v2691 = vmax.f32 %v2563, 0.0
    %v2692 = vmax.f32 %v2564, 0.0
    %v2693 = vmax.f32 %v2565, 0.0
    %v2694 = vmax.f32 %v2566, 0.0
    %v2695 = vmax.f32 %v2567, 0.0
    %v2696 = vmax.f32 %v2568, 0.0
    %v2697 = vmax.f32 %v2569, 0.0
    %v2698 = vmax.f32 %v2570, 0.0
    %v2699 = vmax.f32 %v2571, 0.0
    %v2700 = vmax.f32 %v2572, 0.0
    %v2701 = vmax.f32 %v2573, 0.0
    %v2702 = vmax.f32 %v2574, 0.0
    %v2703 = vmax.f32 %v2575, 0.0
    %v2704 = vmax.f32 %v2576, 0.0
    %v2705 = vmax.f32 %v2577, 0.0
    %v2706 = vmax.f32 %v2578, 0.0
    %v2707 = vmax.f32 %v2579, 0.0
    %v2708 = vmax.f32 %v2580, 0.0
    %v2709 = vmax.f32 %v2581, 0.0
    %v2710 = vmax.f32 %v2582, 0.0
    %v2711 = vmax.f32 %v2583, 0.0
    %v2712 = vmax.f32 %v2584, 0.0
    %v2713 = vmax.f32 %v2585, 0.0
    %v2714 = vmax.f32 %v2586, 0.0
    %v2715 = vmax.f32 %v2587, 0.0
    %v2716 = vmax.f32 %v2588, 0.0
    %v2717 = vmax.f32 %v2589, 0.0
    %v2718 = vmax.f32 %v2590, 0.0
    %v2719 = vmax.f32 %v2591, 0.0
    %v2720 = vmax.f32 %v2592, 0.0
    %v2721 = vmax.f32 %v2593, 0.0
    %v2722 = vmax.f32 %v2594, 0.0
    %v2723 = vmax.f32 %v2595, 0.0
    %v2724 = vmax.f32 %v2596, 0.0
    %v2725 = vmax.f32 %v2597, 0.0
    %v2726 = vmax.f32 %v2598, 0.0
    %v2727 = vmax.f32 %v2599, 0.0
    %v2728 = vmax.f32 %v2600, 0.0
    %v2729 = vmax.f32 %v2601, 0.0
    %v2730 = vmax.f32 %v2602, 0.0
    %v2731 = vmax.f32 %v2603, 0.0
    %v2732 = vmax.f32 %v2604, 0.0
    %v2733 = vmax.f32 %v2605, 0.0
    %v2734 = vmax.f32 %v2606, 0.0
    %v2735 = vmax.f32 %v2607, 0.0
    %v2736 = vmax.f32 %v2608, 0.0
    %v2737 = vmax.f32 %v2609, 0.0
    %v2738 = vmax.f32 %v2610, 0.0
    %v2739 = vmax.f32 %v2611, 0.0
    %v2740 = vmax.f32 %v2612, 0.0
    %v2741 = vmax.f32 %v2613, 0.0
    %v2742 = vmax.f32 %v2614, 0.0
    %v2743 = vmax.f32 %v2615, 0.0
    %v2744 = vmax.f32 %v2616, 0.0
    %v2745 = vmax.f32 %v2617, 0.0
    %v2746 = vmax.f32 %v2618, 0.0
    %v2747 = vmax.f32 %v2619, 0.0
    %v2748 = vmax.f32 %v2620, 0.0
    %v2749 = vmax.f32 %v2621, 0.0
    %v2750 = vmax.f32 %v2622, 0.0
    %v2751 = vmax.f32 %v2623, 0.0
    %v2752 = vmax.f32 %v2624, 0.0
    %v2753 = vmax.f32 %v2625, 0.0
    %v2754 = vadd.f32 %v1354, %v2626
    %v2755 = vadd.f32 %v1363, %v2627
    %v2756 = vadd.f32 %v1372, %v2628
    %v2757 = vadd.f32 %v1381, %v2629
    %v2758 = vadd.f32 %v1390, %v2630
    %v2759 = vadd.f32 %v1399, %v2631
    %v2760 = vadd.f32 %v1408, %v2632
    %v2761 = vadd.f32 %v1417, %v2633
    %v2762 = vadd.f32 %v1426, %v2634
    %v2763 = vadd.f32 %v1435, %v2635
    %v2764 = vadd.f32 %v1444, %v2636
    %v2765 = vadd.f32 %v1453, %v2637
    %v2766 = vadd.f32 %v1462, %v2638
    %v2767 = vadd.f32 %v1471, %v2639
    %v2768 = vadd.f32 %v1480, %v2640
    %v2769 = vadd.f32 %v1489, %v2641
    %v2770 = vadd.f32 %v1498, %v2642
    %v2771 = vadd.f32 %v1507, %v2643
    %v2772 = vadd.f32 %v1516, %v2644
    %v2773 = vadd.f32 %v1525, %v2645
    %v2774 = vadd.f32 %v1534, %v2646
    %v2775 = vadd.f32 %v1543, %v2647
    %v2776 = vadd.f32 %v1552, %v2648
    %v2777 = vadd.f32 %v1561, %v2649
    %v2778 = vadd.f32 %v1570, %v2650
    %v2779 = vadd.f32 %v1579, %v2651
    %v2780 = vadd.f32 %v1588, %v2652
    %v2781 = vadd.f32 %v1597, %v2653
    %v2782 = vadd.f32 %v1606, %v2654
    %v2783 = vadd.f32 %v1615, %v2655
    %v2784 = vadd.f32 %v1624, %v2656
    %v2785 = vadd.f32 %v1633, %v2657
    %v2786 = vadd.f32 %v1642, %v2658
    %v2787 = vadd.f32 %v1651, %v2659
    %v2788 = vadd.f32 %v1660, %v2660
    %v2789 = vadd.f32 %v1669, %v2661
    %v2790 = vadd.f32 %v1678, %v2662
    %v2791 = vadd.f32 %v1687, %v2663
    %v2792 = vadd.f32 %v1696, %v2664
    %v2793 = vadd.f32 %v1705, %v2665
    %v2794 = vadd.f32 %v1714, %v2666
    %v2795 = vadd.f32 %v1723, %v2667
    %v2796 = vadd.f32 %v1732, %v2668
    %v2797 = vadd.f32 %v1741, %v2669
    %v2798 = vadd.f32 %v1750, %v2670
    %v2799 = vadd.f32 %v1759, %v2671
    %v2800 = vadd.f32 %v1768, %v2672
    %v2801 = vadd.f32 %v1777, %v2673
    %v2802 = vadd.f32 %v1786, %v2674
    %v2803 = vadd.f32 %v1795, %v2675
    %v2804 = vadd.f32 %v1804, %v2676
    %v2805 = vadd.f32 %v1813, %v2677
    %v2806 = vadd.f32 %v1822, %v2678
    %v2807 = vadd.f32 %v1831, %v2679
    %v2808 = vadd.f32 %v1840, %v2680
    %v2809 = vadd.f32 %v1849, %v2681
    %v2810 = vadd.f32 %v1858, %v2682
    %v2811 = vadd.f32 %v1867, %v2683
    %v2812 = vadd.f32 %v1876, %v2684
    %v2813 = vadd.f32 %v1885, %v2685
    %v2814 = vadd.f32 %v1894, %v2686
    %v2815 = vadd.f32 %v1903, %v2687
    %v2816 = vadd.f32 %v1912, %v2688
    %v2817 = vadd.f32 %v1921, %v2689
    %v2818 = vadd.f32 %v1930, %v2690
    %v2819 = vadd.f32 %v1939, %v2691
    %v2820 = vadd.f32 %v1948, %v2692
    %v2821 = vadd.f32 %v1957, %v2693
    %v2822 = vadd.f32 %v1966, %v2694
    %v2823 = vadd.f32 %v1975, %v2695
    %v2824 = vadd.f32 %v1984, %v2696
    %v2825 = vadd.f32 %v1993, %v2697
    %v2826 = vadd.f32 %v2002, %v2698
    %v2827 = vadd.f32 %v2011, %v2699
    %v2828 = vadd.f32 %v2020, %v2700
    %v2829 = vadd.f32 %v2029, %v2701
    %v2830 = vadd.f32 %v2038, %v2702
    %v2831 = vadd.f32 %v2047, %v2703
    %v2832 = vadd.f32 %v2056, %v2704
    %v2833 = vadd.f32 %v2065, %v2705
    %v2834 = vadd.f32 %v2074, %v2706
    %v2835 = vadd.f32 %v2083, %v2707
    %v2836 = vadd.f32 %v2092, %v2708
    %v2837 = vadd.f32 %v2101, %v2709
    %v2838 = vadd.f32 %v2110, %v2710
    %v2839 = vadd.f32 %v2119, %v2711
    %v2840 = vadd.f32 %v2128, %v2712
    %v2841 = vadd.f32 %v2137, %v2713
    %v2842 = vadd.f32 %v2146, %v2714
    %v2843 = vadd.f32 %v2155, %v2715
    %v2844 = vadd.f32 %v2164, %v2716
    %v2845 = vadd.f32 %v2173, %v2717
    %v2846 = vadd.f32 %v2182, %v2718
    %v2847 = vadd.f32 %v2191, %v2719
    %v2848 = vadd.f32 %v2200, %v2720
    %v2849 = vadd.f32 %v2209, %v2721
    %v2850 = vadd.f32 %v2218, %v2722
    %v2851 = vadd.f32 %v2227, %v2723
    %v2852 = vadd.f32 %v2236, %v2724
    %v2853 = vadd.f32 %v2245, %v2725
    %v2854 = vadd.f32 %v2254, %v2726
    %v2855 = vadd.f32 %v2263, %v2727
    %v2856 = vadd.f32 %v2272, %v2728
    %v2857 = vadd.f32 %v2281, %v2729
    %v2858 = vadd.f32 %v2290, %v2730
    %v2859 = vadd.f32 %v2299, %v2731
    %v2860 = vadd.f32 %v2308, %v2732
    %v2861 = vadd.f32 %v2317, %v2733
    %v2862 = vadd.f32 %v2326, %v2734
    %v2863 = vadd.f32 %v2335, %v2735
    %v2864 = vadd.f32 %v2344, %v2736
    %v2865 = vadd.f32 %v2353, %v2737
    %v2866 = vadd.f32 %v2362, %v2738
    %v2867 = vadd.f32 %v2371, %v2739
    %v2868 = vadd.f32 %v2380, %v2740
    %v2869 = vadd.f32 %v2389, %v2741
    %v2870 = vadd.f32 %v2398, %v2742
    %v2871 = vadd.f32 %v2407, %v2743
    %v2872 = vadd.f32 %v2416, %v2744
    %v2873 = vadd.f32 %v2425, %v2745
    %v2874 = vadd.f32 %v2434, %v2746
    %v2875 = vadd.f32 %v2443, %v2747
    %v2876 = vadd.f32 %v2452, %v2748
    %v2877 = vadd.f32 %v2461, %v2749
    %v2878 = vadd.f32 %v2470, %v2750
    %v2879 = vadd.f32 %v2479, %v2751
    %v2880 = vadd.f32 %v2488, %v2752
    %v2881 = vadd.f32 %v2497, %v2753
    %v2882 = vmul.f32 %v450, %v2754
    %v2883 = vmul.f32 %v451, %v2755
    %v2884 = vmul.f32 %v452, %v2756
    %v2885 = vmul.f32 %v453, %v2757
    %v2886 = vmul.f32 %v454, %v2758
    %v2887 = vmul.f32 %v455, %v2759
    %v2888 = vmul.f32 %v456, %v2760
    %v2889 = vmul.f32 %v457, %v2761
    %v2890 = vmul.f32 %v458, %v2762
    %v2891 = vmul.f32 %v459, %v2763
    %v2892 = vmul.f32 %v460, %v2764
    %v2893 = vmul.f32 %v461, %v2765
    %v2894 = vmul.f32 %v462, %v2766
    %v2895 = vmul.f32 %v463, %v2767
    %v2896 = vmul.f32 %v464, %v2768
    %v2897 = vmul.f32 %v465, %v2769
    %v2898 = vmul.f32 %v466, %v2770
    %v2899 = vmul.f32 %v467, %v2771
    %v2900 = vmul.f32 %v468, %v2772
    %v2901 = vmul.f32 %v469, %v2773
    %v2902 = vmul.f32 %v470, %v2774
    %v2903 = vmul.f32 %v471, %v2775
    %v2904 = vmul.f32 %v472, %v2776
    %v2905 = vmul.f32 %v473, %v2777
    %v2906 = vmul.f32 %v474, %v2778
    %v2907 = vmul.f32 %v475, %v2779
    %v2908 = vmul.f32 %v476, %v2780
    %v2909 = vmul.f32 %v477, %v2781
    %v2910 = vmul.f32 %v478, %v2782
    %v2911 = vmul.f32 %v479, %v2783
    %v2912 = vmul.f32 %v480, %v2784
    %v2913 = vmul.f32 %v481, %v2785
    %v2914 = vmul.f32 %v482, %v2786
    %v2915 = vmul.f32 %v483, %v2787
    %v2916 = vmul.f32 %v484, %v2788
    %v2917 = vmul.f32 %v485, %v2789
    %v2918 = vmul.f32 %v486, %v2790
    %v2919 = vmul.f32 %v487, %v2791
    %v2920 = vmul.f32 %v488, %v2792
    %v2921 = vmul.f32 %v489, %v2793
    %v2922 = vmul.f32 %v490, %v2794
    %v2923 = vmul.f32 %v491, %v2795
    %v2924 = vmul.f32 %v492, %v2796
    %v2925 = vmul.f32 %v493, %v2797
    %v2926 = vmul.f32 %v494, %v2798
    %v2927 = vmul.f32 %v495, %v2799
    %v2928 = vmul.f32 %v496, %v2800
    %v2929 = vmul.f32 %v497, %v2801
    %v2930 = vmul.f32 %v498, %v2802
    %v2931 = vmul.f32 %v499, %v2803
    %v2932 = vmul.f32 %v500, %v2804
    %v2933 = vmul.f32 %v501, %v2805
    %v2934 = vmul.f32 %v502, %v2806
    %v2935 = vmul.f32 %v503, %v2807
    %v2936 = vmul.f32 %v504, %v2808
    %v2937 = vmul.f32 %v505, %v2809
    %v2938 = vmul.f32 %v506, %v2810
    %v2939 = vmul.f32 %v507, %v2811
    %v2940 = vmul.f32 %v508, %v2812
    %v2941 = vmul.f32 %v509, %v2813
    %v2942 = vmul.f32 %v510, %v2814
    %v2943 = vmul.f32 %v511, %v2815
    %v2944 = vmul.f32 %v512, %v2816
    %v2945 = vmul.f32 %v513, %v2817
    %v2946 = vmul.f32 %v514, %v2818
    %v2947 = vmul.f32 %v515, %v2819
    %v2948 = vmul.f32 %v516, %v2820
    %v2949 = vmul.f32 %v517, %v2821
    %v2950 = vmul.f32 %v518, %v2822
    %v2951 = vmul.f32 %v519, %v2823
    %v2952 = vmul.f32 %v520, %v2824
    %v2953 = vmul.f32 %v521, %v2825
    %v2954 = vmul.f32 %v522, %v2826
    %v2955 = vmul.f32 %v523, %v2827
    %v2956 = vmul.f32 %v524, %v2828
    %v2957 = vmul.f32 %v525, %v2829
    %v2958 = vmul.f32 %v526, %v2830
    %v2959 = vmul.f32 %v527, %v2831
    %v2960 = vmul.f32 %v528, %v2832
    %v2961 = vmul.f32 %v529, %v2833
    %v2962 = vmul.f32 %v530, %v2834
    %v2963 = vmul.f32 %v531, %v2835
    %v2964 = vmul.f32 %v532, %v2836
    %v2965 = vmul.f32 %v533, %v2837
    %v2966 = vmul.f32 %v534, %v2838
    %v2967 = vmul.f32 %v535, %v2839
    %v2968 = vmul.f32 %v536, %v2840
    %v2969 = vmul.f32 %v537, %v2841
    %v2970 = vmul.f32 %v538, %v2842
    %v2971 = vmul.f32 %v539, %v2843
    %v2972 = vmul.f32 %v540, %v2844
    %v2973 = vmul.f32 %v541, %v2845
    %v2974 = vmul.f32 %v542, %v2846
    %v2975 = vmul.f32 %v543, %v2847
    %v2976 = vmul.f32 %v544, %v2848
    %v2977 = vmul.f32 %v545, %v2849
    %v2978 = vmul.f32 %v546, %v2850
    %v2979 = vmul.f32 %v547, %v2851
    %v2980 = vmul.f32 %v548, %v2852
    %v2981 = vmul.f32 %v549, %v2853
    %v2982 = vmul.f32 %v550, %v2854
    %v2983 = vmul.f32 %v551, %v2855
    %v2984 = vmul.f32 %v552, %v2856
    %v2985 = vmul.f32 %v553, %v2857
    %v2986 = vmul.f32 %v554, %v2858
    %v2987 = vmul.f32 %v555, %v2859
    %v2988 = vmul.f32 %v556, %v2860
    %v2989 = vmul.f32 %v557, %v2861
    %v2990 = vmul.f32 %v558, %v2862
    %v2991 = vmul.f32 %v559, %v2863
    %v2992 = vmul.f32 %v560, %v2864
    %v2993 = vmul.f32 %v561, %v2865
    %v2994 = vmul.f32 %v562, %v2866
    %v2995 = vmul.f32 %v563, %v2867
    %v2996 = vmul.f32 %v564, %v2868
    %v2997 = vmul.f32 %v565, %v2869
    %v2998 = vmul.f32 %v566, %v2870
    %v2999 = vmul.f32 %v567, %v2871
    %v3000 = vmul.f32 %v568, %v2872
    %v3001 = vmul.f32 %v569, %v2873
    %v3002 = vmul.f32 %v570, %v2874
    %v3003 = vmul.f32 %v571, %v2875
    %v3004 = vmul.f32 %v572, %v2876
    %v3005 = vmul.f32 %v573, %v2877
    %v3006 = vmul.f32 %v574, %v2878
    %v3007 = vmul.f32 %v575, %v2879
    %v3008 = vmul.f32 %v576, %v2880
    %v3009 = vmul.f32 %v577, %v2881
    %v3010 = vadd.f32 %v706, %v2882
    %v3011 = vadd.f32 %v707, %v2883
    %v3012 = vadd.f32 %v708, %v2884
    %v3013 = vadd.f32 %v709, %v2885
    %v3014 = vadd.f32 %v710, %v2886
    %v3015 = vadd.f32 %v711, %v2887
    %v3016 = vadd.f32 %v712, %v2888
    %v3017 = vadd.f32 %v713, %v2889
    %v3018 = vadd.f32 %v714, %v2890
    %v3019 = vadd.f32 %v715, %v2891
    %v3020 = vadd.f32 %v716, %v2892
    %v3021 = vadd.f32 %v717, %v2893
    %v3022 = vadd.f32 %v718, %v2894
    %v3023 = vadd.f32 %v719, %v2895
    %v3024 = vadd.f32 %v720, %v2896
    %v3025 = vadd.f32 %v721, %v2897
    %v3026 = vadd.f32 %v722, %v2898
    %v3027 = vadd.f32 %v723, %v2899
    %v3028 = vadd.f32 %v724, %v2900
    %v3029 = vadd.f32 %v725, %v2901
    %v3030 = vadd.f32 %v726, %v2902
    %v3031 = vadd.f32 %v727, %v2903
    %v3032 = vadd.f32 %v728, %v2904
    %v3033 = vadd.f32 %v729, %v2905
    %v3034 = vadd.f32 %v730, %v2906
    %v3035 = vadd.f32 %v731, %v2907
    %v3036 = vadd.f32 %v732, %v2908
    %v3037 = vadd.f32 %v733, %v2909
    %v3038 = vadd.f32 %v734, %v2910
    %v3039 = vadd.f32 %v735, %v2911
    %v3040 = vadd.f32 %v736, %v2912
    %v3041 = vadd.f32 %v737, %v2913
    %v3042 = vadd.f32 %v738, %v2914
    %v3043 = vadd.f32 %v739, %v2915
    %v3044 = vadd.f32 %v740, %v2916
    %v3045 = vadd.f32 %v741, %v2917
    %v3046 = vadd.f32 %v742, %v2918
    %v3047 = vadd.f32 %v743, %v2919
    %v3048 = vadd.f32 %v744, %v2920
    %v3049 = vadd.f32 %v745, %v2921
    %v3050 = vadd.f32 %v746, %v2922
    %v3051 = vadd.f32 %v747, %v2923
    %v3052 = vadd.f32 %v748, %v2924
    %v3053 = vadd.f32 %v749, %v2925
    %v3054 = vadd.f32 %v750, %v2926
    %v3055 = vadd.f32 %v751, %v2927
    %v3056 = vadd.f32 %v752, %v2928
    %v3057 = vadd.f32 %v753, %v2929
    %v3058 = vadd.f32 %v754, %v2930
    %v3059 = vadd.f32 %v755, %v2931
    %v3060 = vadd.f32 %v756, %v2932
    %v3061 = vadd.f32 %v757, %v2933
    %v3062 = vadd.f32 %v758, %v2934
    %v3063 = vadd.f32 %v759, %v2935
    %v3064 = vadd.f32 %v760, %v2936
    %v3065 = vadd.f32 %v761, %v2937
    %v3066 = vadd.f32 %v762, %v2938
    %v3067 = vadd.f32 %v763, %v2939
    %v3068 = vadd.f32 %v764, %v2940
    %v3069 = vadd.f32 %v765, %v2941
    %v3070 = vadd.f32 %v766, %v2942
    %v3071 = vadd.f32 %v767, %v2943
    %v3072 = vadd.f32 %v768, %v2944
    %v3073 = vadd.f32 %v769, %v2945
    %v3074 = vadd.f32 %v770, %v2946
    %v3075 = vadd.f32 %v771, %v2947
    %v3076 = vadd.f32 %v772, %v2948
    %v3077 = vadd.f32 %v773, %v2949
    %v3078 = vadd.f32 %v774, %v2950
    %v3079 = vadd.f32 %v775, %v2951
    %v3080 = vadd.f32 %v776, %v2952
    %v3081 = vadd.f32 %v777, %v2953
    %v3082 = vadd.f32 %v778, %v2954
    %v3083 = vadd.f32 %v779, %v2955
    %v3084 = vadd.f32 %v780, %v2956
    %v3085 = vadd.f32 %v781, %v2957
    %v3086 = vadd.f32 %v782, %v2958
    %v3087 = vadd.f32 %v783, %v2959
    %v3088 = vadd.f32 %v784, %v2960
    %v3089 = vadd.f32 %v785, %v2961
    %v3090 = vadd.f32 %v786, %v2962
    %v3091 = vadd.f32 %v787, %v2963
    %v3092 = vadd.f32 %v788, %v2964
    %v3093 = vadd.f32 %v789, %v2965
    %v3094 = vadd.f32 %v790, %v2966
    %v3095 = vadd.f32 %v791, %v2967
    %v3096 = vadd.f32 %v792, %v2968
    %v3097 = vadd.f32 %v793, %v2969
    %v3098 = vadd.f32 %v794, %v2970
    %v3099 = vadd.f32 %v795, %v2971
    %v3100 = vadd.f32 %v796, %v2972
    %v3101 = vadd.f32 %v797, %v2973
    %v3102 = vadd.f32 %v798, %v2974
    %v3103 = vadd.f32 %v799, %v2975
    %v3104 = vadd.f32 %v800, %v2976
    %v3105 = vadd.f32 %v801, %v2977
    %v3106 = vadd.f32 %v802, %v2978
    %v3107 = vadd.f32 %v803, %v2979
    %v3108 = vadd.f32 %v804, %v2980
    %v3109 = vadd.f32 %v805, %v2981
    %v3110 = vadd.f32 %v806, %v2982
    %v3111 = vadd.f32 %v807, %v2983
    %v3112 = vadd.f32 %v808, %v2984
    %v3113 = vadd.f32 %v809, %v2985
    %v3114 = vadd.f32 %v810, %v2986
    %v3115 = vadd.f32 %v811, %v2987
    %v3116 = vadd.f32 %v812, %v2988
    %v3117 = vadd.f32 %v813, %v2989
    %v3118 = vadd.f32 %v814, %v2990
    %v3119 = vadd.f32 %v815, %v2991
    %v3120 = vadd.f32 %v816, %v2992
    %v3121 = vadd.f32 %v817, %v2993
    %v3122 = vadd.f32 %v818, %v2994
    %v3123 = vadd.f32 %v819, %v2995
    %v3124 = vadd.f32 %v820, %v2996
    %v3125 = vadd.f32 %v821, %v2997
    %v3126 = vadd.f32 %v822, %v2998
    %v3127 = vadd.f32 %v823, %v2999
    %v3128 = vadd.f32 %v824, %v3000
    %v3129 = vadd.f32 %v825, %v3001
    %v3130 = vadd.f32 %v826, %v3002
    %v3131 = vadd.f32 %v827, %v3003
    %v3132 = vadd.f32 %v828, %v3004
    %v3133 = vadd.f32 %v829, %v3005
    %v3134 = vadd.f32 %v830, %v3006
    %v3135 = vadd.f32 %v831, %v3007
    %v3136 = vadd.f32 %v832, %v3008
    %v3137 = vadd.f32 %v833, %v3009
    %v3138 = vadd.f32 %v3010, %v3014
    %v3139 = vadd.f32 %v3138, %v3018
    %v3140 = vadd.f32 %v3139, %v3022
    %v3141 = vadd.f32 %v3140, %v3026
    %v3142 = vadd.f32 %v3141, %v3030
    %v3143 = vadd.f32 %v3142, %v3034
    %v3144 = vadd.f32 %v3143, %v3038
    %v3145 = vadd.f32 %v3144, %v3042
    %v3146 = vadd.f32 %v3145, %v3046
    %v3147 = vadd.f32 %v3146, %v3050
    %v3148 = vadd.f32 %v3147, %v3054
    %v3149 = vadd.f32 %v3148, %v3058
    %v3150 = vadd.f32 %v3149, %v3062
    %v3151 = vadd.f32 %v3150, %v3066
    %v3152 = vadd.f32 %v3151, %v3070
    %v3153 = vadd.f32 %v3152, %v3074
    %v3154 = vadd.f32 %v3153, %v3078
    %v3155 = vadd.f32 %v3154, %v3082
    %v3156 = vadd.f32 %v3155, %v3086
    %v3157 = vadd.f32 %v3156, %v3090
    %v3158 = vadd.f32 %v3157, %v3094
    %v3159 = vadd.f32 %v3158, %v3098
    %v3160 = vadd.f32 %v3159, %v3102
    %v3161 = vadd.f32 %v3160, %v3106
    %v3162 = vadd.f32 %v3161, %v3110
    %v3163 = vadd.f32 %v3162, %v3114
    %v3164 = vadd.f32 %v3163, %v3118
    %v3165 = vadd.f32 %v3164, %v3122
    %v3166 = vadd.f32 %v3165, %v3126
    %v3167 = vadd.f32 %v3166, %v3130
    %v3168 = vadd.f32 %v3167, %v3134
    %v3169 = vrot.slane %v3168, 4
    %v3170 = vadd.f32 %v3168, %v3169
    %v3171 = vrot.slane %v3170, 2
    %v3172 = vadd.f32 %v3170, %v3171
    %v3173 = vrot.slane %v3172, 1
    %v3174 = vadd.f32 %v3172, %v3173
    %v3175 = vadd.f32 %v3011, %v3015
    %v3176 = vadd.f32 %v3175, %v3019
    %v3177 = vadd.f32 %v3176, %v3023
    %v3178 = vadd.f32 %v3177, %v3027
    %v3179 = vadd.f32 %v3178, %v3031
    %v3180 = vadd.f32 %v3179, %v3035
    %v3181 = vadd.f32 %v3180, %v3039
    %v3182 = vadd.f32 %v3181, %v3043
    %v3183 = vadd.f32 %v3182, %v3047
    %v3184 = vadd.f32 %v3183, %v3051
    %v3185 = vadd.f32 %v3184, %v3055
    %v3186 = vadd.f32 %v3185, %v3059
    %v3187 = vadd.f32 %v3186, %v3063
    %v3188 = vadd.f32 %v3187, %v3067
    %v3189 = vadd.f32 %v3188, %v3071
    %v3190 = vadd.f32 %v3189, %v3075
    %v3191 = vadd.f32 %v3190, %v3079
    %v3192 = vadd.f32 %v3191, %v3083
    %v3193 = vadd.f32 %v3192, %v3087
    %v3194 = vadd.f32 %v3193, %v3091
    %v3195 = vadd.f32 %v3194, %v3095
    %v3196 = vadd.f32 %v3195, %v3099
    %v3197 = vadd.f32 %v3196, %v3103
    %v3198 = vadd.f32 %v3197, %v3107
    %v3199 = vadd.f32 %v3198, %v3111
    %v3200 = vadd.f32 %v3199, %v3115
    %v3201 = vadd.f32 %v3200, %v3119
    %v3202 = vadd.f32 %v3201, %v3123
    %v3203 = vadd.f32 %v3202, %v3127
    %v3204 = vadd.f32 %v3203, %v3131
    %v3205 = vadd.f32 %v3204, %v3135
    %v3206 = vrot.slane %v3205, 4
    %v3207 = vadd.f32 %v3205, %v3206
    %v3208 = vrot.slane %v3207, 2
    %v3209 = vadd.f32 %v3207, %v3208
    %v3210 = vrot.slane %v3209, 1
    %v3211 = vadd.f32 %v3209, %v3210
    %v3212 = vadd.f32 %v3012, %v3016
    %v3213 = vadd.f32 %v3212, %v3020
    %v3214 = vadd.f32 %v3213, %v3024
    %v3215 = vadd.f32 %v3214, %v3028
    %v3216 = vadd.f32 %v3215, %v3032
    %v3217 = vadd.f32 %v3216, %v3036
    %v3218 = vadd.f32 %v3217, %v3040
    %v3219 = vadd.f32 %v3218, %v3044
    %v3220 = vadd.f32 %v3219, %v3048
    %v3221 = vadd.f32 %v3220, %v3052
    %v3222 = vadd.f32 %v3221, %v3056
    %v3223 = vadd.f32 %v3222, %v3060
    %v3224 = vadd.f32 %v3223, %v3064
    %v3225 = vadd.f32 %v3224, %v3068
    %v3226 = vadd.f32 %v3225, %v3072
    %v3227 = vadd.f32 %v3226, %v3076
    %v3228 = vadd.f32 %v3227, %v3080
    %v3229 = vadd.f32 %v3228, %v3084
    %v3230 = vadd.f32 %v3229, %v3088
    %v3231 = vadd.f32 %v3230, %v3092
    %v3232 = vadd.f32 %v3231, %v3096
    %v3233 = vadd.f32 %v3232, %v3100
    %v3234 = vadd.f32 %v3233, %v3104
    %v3235 = vadd.f32 %v3234, %v3108
    %v3236 = vadd.f32 %v3235, %v3112
    %v3237 = vadd.f32 %v3236, %v3116
    %v3238 = vadd.f32 %v3237, %v3120
    %v3239 = vadd.f32 %v3238, %v3124
    %v3240 = vadd.f32 %v3239, %v3128
    %v3241 = vadd.f32 %v3240, %v3132
    %v3242 = vadd.f32 %v3241, %v3136
    %v3243 = vrot.slane %v3242, 4
    %v3244 = vadd.f32 %v3242, %v3243
    %v3245 = vrot.slane %v3244, 2
    %v3246 = vadd.f32 %v3244, %v3245
    %v3247 = vrot.slane %v3246, 1
    %v3248 = vadd.f32 %v3246, %v3247
    %v3249 = vadd.f32 %v3013, %v3017
    %v3250 = vadd.f32 %v3249, %v3021
    %v3251 = vadd.f32 %v3250, %v3025
    %v3252 = vadd.f32 %v3251, %v3029
    %v3253 = vadd.f32 %v3252, %v3033
    %v3254 = vadd.f32 %v3253, %v3037
    %v3255 = vadd.f32 %v3254, %v3041
    %v3256 = vadd.f32 %v3255, %v3045
    %v3257 = vadd.f32 %v3256, %v3049
    %v3258 = vadd.f32 %v3257, %v3053
    %v3259 = vadd.f32 %v3258, %v3057
    %v3260 = vadd.f32 %v3259, %v3061
    %v3261 = vadd.f32 %v3260, %v3065
    %v3262 = vadd.f32 %v3261, %v3069
    %v3263 = vadd.f32 %v3262, %v3073
    %v3264 = vadd.f32 %v3263, %v3077
    %v3265 = vadd.f32 %v3264, %v3081
    %v3266 = vadd.f32 %v3265, %v3085
    %v3267 = vadd.f32 %v3266, %v3089
    %v3268 = vadd.f32 %v3267, %v3093
    %v3269 = vadd.f32 %v3268, %v3097
    %v3270 = vadd.f32 %v3269, %v3101
    %v3271 = vadd.f32 %v3270, %v3105
    %v3272 = vadd.f32 %v3271, %v3109
    %v3273 = vadd.f32 %v3272, %v3113
    %v3274 = vadd.f32 %v3273, %v3117
    %v3275 = vadd.f32 %v3274, %v3121
    %v3276 = vadd.f32 %v3275, %v3125
    %v3277 = vadd.f32 %v3276, %v3129
    %v3278 = vadd.f32 %v3277, %v3133
    %v3279 = vadd.f32 %v3278, %v3137
    %v3280 = vrot.slane %v3279, 4
    %v3281 = vadd.f32 %v3279, %v3280
    %v3282 = vrot.slane %v3281, 2
    %v3283 = vadd.f32 %v3281, %v3282
    %v3284 = vrot.slane %v3283, 1
    %v3285 = vadd.f32 %v3283, %v3284
    %v3290 = vcombine.low %v3174, %v3211
    %v3291 = vcombine.low %v3248, %v3285
    %v3293 = vunpack.c.l.s4 1966171168
    %v3294 = vunpack.c.0.s8 %v3293
    %v3295 = vlaneseq
    %v3296 = vshrl.u32 %v3295, 7
    %v3297 = vsub.s32 %v3294, %v3296
    %v3298 = vrot.slane %v3290, %v3297
    %v3300 = vunpack.c.l.s4 1966171168
    %v3301 = vunpack.c.0.s8 %v3300
    %v3302 = vlaneseq
    %v3303 = vshrl.u32 %v3302, 7
    %v3304 = vsub.s32 %v3301, %v3303
    %v3305 = vrot.slane %v3291, %v3304
    %v3306 = vcombine.low %v3298, %v3305
    %v3308 = vunpack.c.l.s4 1966171168
    %v3309 = vunpack.c.0.s8 %v3308
    %v3310 = vlaneseq
    %v3311 = vshrl.u32 %v3310, 7
    %v3312 = vsub.s32 %v3309, %v3311
    %v3313 = vrot.slane %v3306, %v3312
    %v3315 = vlaneseq
    %vm3316 = vcmp.ge.s32.totalorder %v3315, 0
    %vm3317 = vcmp.lt.s32.totalorder %v3315, 512
    %vm3318 = vmand %vm3316, %vm3317
    %3319 = vst.msk [vmem:[#allocation7] sm:$0xf] %vm3318, %v3313
    // Predicated region
    $region22: #{tpu_custom_call.1} parent=1 // pred_check
      _
    $region23: #{tpu_custom_call.1} parent=1 // pred_check_branch
      %3321 = sbr.rel (0) target = $region25
    $region24: #{tpu_custom_call.1} parent=1 // pred_region
      %s3323 = ssub.s32 64, 64
      %3324 = vsyncadd [#allocation4], %s3323
      %s3326 = sshll.u32 [#allocation7], 4
      %s3327 = int_to_ptr.vmem [resolvable:$true] %s3326
      %3329 = dma.vmem_to_hbm [thread:$0]  %s3327, 64, %s3, [#allocation4]
    $region25: #{tpu_custom_call.1} parent=1 // pred_fallthru
      _
    // Predicated region
    $region26: #{tpu_custom_call.1} parent=1 // pred_check
      _
    $region27: #{tpu_custom_call.1} parent=1 // pred_check_branch
      %3331 = sbr.rel (0) target = $region29
    $region28: #{tpu_custom_call.1} parent=1 // pred_region
      %3332 = dma.done [#allocation4], 64
    $region29: #{tpu_custom_call.1} parent=1 // pred_fallthru
      _
    %3333 = vsyncpa [#allocation3], 1
    %3334 = vsyncpa [#allocation6], 1
    %3335 = vsyncpa [#allocation4], 1

</llo_original>
